<compile_context>
chip_gen: v7x
topology: tpu7x:2x2x1
jax: 0.10.0
libtpu: 0.0.40
codegen_flags: <defaults>
</compile_context>

<pallas_src>
import functools

import jax
import jax.numpy as jnp
from jax.experimental import pallas as pl
from jax.experimental.pallas import tpu as pltpu

# ----------------------------- configuration -------------------------------
N_CLASS = 2
N_HIGH = 2            # == number of small_mag descriptions per class
N_SMALL_DESC = N_HIGH
N_BIG_DESC = 2        # big_mag descriptions per class
N_TPRO = 2
N_VPRO = 3            # vision sequence length becomes 8 (sublane aligned)

D_TXT = 32            # ctx_dim (text hidden)
D_VIS = 32            # vision hidden
D_PROJ = 32           # projection dim
N_HEADS = 4
MLP_TXT = 64
MLP_VIS = 64
TEXT_LAYERS = 2
VIS_LAYERS = 2

L_TXT = 16            # tokenizer max_length (64 in reference, shrunk)
VOCAB = 512           # EOS token id = VOCAB - 1 (largest id, so argmax == EOS pos)

N_BIG_IMG = 6         # number of big images (>= 5 needed for topk(.,5))
IMG_H = IMG_W = 16
PATCH = 8
NUM_PATCHES = (IMG_H // PATCH) * (IMG_W // PATCH)
N_SMALL = 100         # number of small embeddings (>= 100 needed for topk(.,100))

NEG = -1e9
STD = 0.02
W_DTYPE = jnp.bfloat16   # matmul-weight storage dtype (halves weight DMA)

LAYER_W = ("wq", "bq", "wk", "bk", "wv", "bv", "wo", "bo",
           "ln1_g", "ln1_b", "ln2_g", "ln2_b", "w1", "b1", "w2", "b2")


# ----------------------------- in-kernel helpers ----------------------------
def _dot2(a, b, dims, cast=True):
    if cast:  # bf16 MXU operands, f32 accumulation
        a = a.astype(jnp.bfloat16)
        b = b.astype(jnp.bfloat16)
    return jax.lax.dot_general(a, b, dims, preferred_element_type=jnp.float32)


def _mm(a, b, cast=True):          # a @ b
    return _dot2(a, b, (((1,), (0,)), ((), ())), cast)


def _mm_tb(a, b, cast=True):       # a @ b.T
    return _dot2(a, b, (((1,), (1,)), ((), ())), cast)


def _mm_ta(a, b, cast=True):       # a.T @ b
    return _dot2(a, b, (((0,), (0,)), ((), ())), cast)


def _bmm_nt(a, b):                 # (B,M,K)x(B,N,K)->(B,M,N)
    return _dot2(a, b, (((2,), (2,)), ((0,), (0,))), True)


def _bmm_nn(a, b):                 # (B,M,K)x(B,K,N)->(B,M,N)
    return _dot2(a, b, (((2,), (1,)), ((0,), (0,))), True)


def _ln(x2, g, b):
    mu = jnp.mean(x2, axis=-1, keepdims=True)
    var = jnp.mean((x2 - mu) ** 2, axis=-1, keepdims=True)
    return (x2 - mu) * jax.lax.rsqrt(var + 1e-5) * g + b


def _l2n(t):
    n = jnp.sqrt(jnp.sum(t * t, axis=-1, keepdims=True))
    return t / jnp.maximum(n, 1e-12)


def _pool(x3, sel):
    """EOS pooling: sel (B,1,L) one-hot @ x3 (B,L,D) -> (B,D), exact f32."""
    out = jax.lax.dot_general(sel, x3, (((2,), (1,)), ((0,), (0,))),
                              preferred_element_type=jnp.float32)
    return out.reshape(x3.shape[0], x3.shape[2])


def _clip_layer(x3, bias, w, n_heads):
    """HF CLIPEncoderLayer (ln1->MHA->res->ln2->MLP(quick_gelu)->res).

    Fused-head attention: one D-wide Q/K/V projection and one D-wide output
    projection; per-head scores via lane slices, batched over the text/image dim.
    """
    B, L, D = x3.shape
    dh = D // n_heads
    scale = dh ** -0.5
    x2 = x3.reshape(B * L, D)
    h2 = _ln(x2, w["ln1_g"], w["ln1_b"])
    q = (_mm(h2, w["wq"]) + w["bq"]) * scale
    k = _mm(h2, w["wk"]) + w["bk"]
    v = _mm(h2, w["wv"]) + w["bv"]
    q3 = q.reshape(B, L, D)
    k3 = k.reshape(B, L, D)
    v3 = v.reshape(B, L, D)
    heads = []
    for hd in range(n_heads):
        lo, hi = hd * dh, (hd + 1) * dh
        s = _bmm_nt(q3[:, :, lo:hi], k3[:, :, lo:hi])                # (B,L,L)
        if bias is not None:
            s = s + bias
        m = jnp.max(s, axis=-1, keepdims=True)
        e = jnp.exp(s - m)
        p = e * pl.reciprocal(jnp.sum(e, axis=-1, keepdims=True), approx=True)
        heads.append(_bmm_nn(p, v3[:, :, lo:hi]))                    # (B,L,dh)
    o2 = jnp.concatenate(heads, axis=-1).reshape(B * L, D)
    x2 = x2 + _mm(o2, w["wo"]) + w["bo"]
    h2 = _ln(x2, w["ln2_g"], w["ln2_b"])
    h2 = _mm(h2, w["w1"]) + w["b1"]
    h2 = h2 * jax.nn.sigmoid(1.702 * h2)                             # quick_gelu
    h2 = _mm(h2, w["w2"]) + w["b2"]
    return (x2 + h2).reshape(B, L, D)


def _gcn_conv(x, adj, w, b, relu):
    """torch_geometric-style GCNConv: adj[i, j] = weight of directed edge i->j."""
    # TODO(synk): verify against torch_geometric's exact gcn_norm for the real model.
    n = x.shape[0]
    ones_col = jnp.ones((n, 1), jnp.float32)
    deg = _mm_ta(adj, ones_col, cast=False) + 1.0      # in-degree + self loop (n,1)
    dis = jax.lax.rsqrt(deg)
    xw = _mm(x, w)
    y = dis * xw
    agg = _mm_ta(adj, y, cast=False)                   # sum_i adj[i, j] * y[i]
    out = dis * (agg + y) + b
    if relu:
        out = jnp.maximum(out, 0.0)
    return out


def _softmax_rows(a):
    m = jnp.max(a, axis=-1, keepdims=True)
    e = jnp.exp(a - m)
    return e / jnp.sum(e, axis=-1, keepdims=True)


# ----------------------------- fused kernels --------------------------------
def _text_zs_kernel(*refs, n_heads):
    """TextEncoderZS, layer-streamed: one grid step per layer, x in VMEM scratch."""
    nw = len(LAYER_W)
    x_ref, bias_ref, eos_ref = refs[:3]
    wrefs = refs[3:3 + nw]
    fg, fb, proj = refs[3 + nw:6 + nw]
    out_ref, feats_ref = refs[6 + nw:8 + nw]
    x_vmem = refs[8 + nw]

    li = pl.program_id(0)
    nl = pl.num_programs(0)

    @pl.when(li == 0)
    def _():
        x_vmem[...] = x_ref[...]

    w = {name: r[0] for name, r in zip(LAYER_W, wrefs)}
    x3 = _clip_layer(x_vmem[...], bias_ref[...], w, n_heads)
    x_vmem[...] = x3
    feats_ref[0] = _l2n(_pool(x3, eos_ref[...]))       # per-layer EOS features

    @pl.when(li == nl - 1)
    def _():
        B, L, D = x3.shape
        h2 = _ln(x3.reshape(B * L, D), fg[...], fb[...])
        pooled = _pool(h2.reshape(B, L, D), eos_ref[...])
        out_ref[...] = _l2n(_mm(pooled, proj[...]))


def _text_prompt_kernel(*refs, n_heads, n_tpro, n_high):
    """TextEncoder with per-layer prompt re-injection, layer-streamed."""
    nw = len(LAYER_W)
    x_ref, bias_ref, eos_ref, inj_ref = refs[:4]
    wrefs = refs[4:4 + nw]
    fg, fb, proj = refs[4 + nw:7 + nw]
    out_ref = refs[7 + nw]
    x_vmem = refs[8 + nw]

    li = pl.program_id(0)
    nl = pl.num_programs(0)

    @pl.when(li == 0)
    def _():
        x_vmem[...] = x_ref[...]

    @pl.when(li > 0)
    def _():
        L = x_vmem.shape[1]
        pos = jax.lax.broadcasted_iota(jnp.int32, (1, L, 1), 1)
        injm = ((pos >= 1) & (pos < 1 + n_tpro + n_high)).astype(jnp.float32)
        x_vmem[...] = x_vmem[...] * (1.0 - injm) + inj_ref[0] * injm

    w = {name: r[0] for name, r in zip(LAYER_W, wrefs)}
    x_vmem[...] = _clip_layer(x_vmem[...], bias_ref[...], w, n_heads)

    @pl.when(li == nl - 1)
    def _():
        x3 = x_vmem[...]
        B, L, D = x3.shape
        h2 = _ln(x3.reshape(B * L, D), fg[...], fb[...])
        pooled = _pool(h2.reshape(B, L, D), eos_ref[...])
        out_ref[...] = _l2n(_mm(pooled, proj[...]))


def _vision_kernel(*refs, n_heads, n_vpro):
    """VisionEncoder, layer-streamed: pre-LN, layers (+batch-row prompt overwrite),
    CLS pooling, post-LN, projection, l2norm."""
    nw = len(LAYER_W)
    x_ref, inj_ref = refs[:2]
    wrefs = refs[2:2 + nw]
    pre_g, pre_b, post_g, post_b, proj = refs[2 + nw:7 + nw]
    out_ref = refs[7 + nw]
    x_vmem = refs[8 + nw]

    li = pl.program_id(0)
    nl = pl.num_programs(0)
    N, S, D = x_vmem.shape

    @pl.when(li == 0)
    def _():
        x3 = x_ref[...]
        x_vmem[...] = _ln(x3.reshape(N * S, D), pre_g[...], pre_b[...]).reshape(N, S, D)

    @pl.when(li > 0)
    def _():
        # TODO(synk): reference overwrites the last n_vpro *batch* rows (images);
        # reproduced verbatim.
        ridx = jax.lax.broadcasted_iota(jnp.int32, (N, 1, 1), 0)
        bm = (ridx >= N - n_vpro).astype(jnp.float32)
        x_vmem[...] = x_vmem[...] * (1.0 - bm) + inj_ref[0] * bm

    w = {name: r[0] for name, r in zip(LAYER_W, wrefs)}
    x_vmem[...] = _clip_layer(x_vmem[...], None, w, n_heads)

    @pl.when(li == nl - 1)
    def _():
        x3 = x_vmem[...]
        pooled = x3[:, 0, :]                            # CLS token
        pooled = _ln(pooled, post_g[...], post_b[...])
        out_ref[...] = _l2n(_mm(pooled, proj[...]))


def _prep_kernel(patch_ref, pw_ref, f_ref, wi_ref, bi_ref, pe_o, pi_o):
    """Patch embedding + p_ins projector in one launch."""
    pe_o[...] = _mm(patch_ref[...], pw_ref[...])
    f = f_ref[...]
    pi_o[...] = f + _mm(f, wi_ref[...]) + bi_ref[...]


def _tail_kernel(se_ref, vproj_ref, imgf_ref, tzs_ref, tf_ref,
                 bw1, bb1, bw2, bb2, sw1, sb1, sw2, sb2,
                 lb_ref, ls_ref, *, n_class):
    """Fused tail: small-emb proj+l2norm, big & small similarity->adjacency->
    softmax->2x GCNConv graphs, and all four logits matmuls (concatenated)."""
    img_zs = _l2n(_mm(se_ref[...], vproj_ref[...]))            # (Ns, Dp)
    imgf = imgf_ref[...]                                       # (Nb, Dp)
    tzs3 = tzs_ref[...]                                        # (C, ns, Dp)
    tf = tf_ref[...]                                           # (C*nbig, Dp)
    C, ns, Dp = tzs3.shape
    nbig = tf.shape[0] // C
    tf3 = tf.reshape(C, nbig, Dp)
    nb = imgf.shape[0]
    nsm = img_zs.shape[0]

    # ---- big graph ----
    a_big = None
    for c in range(n_class):
        s_c = _mm_tb(imgf, tzs3[c])                            # (Nb, ns)
        a_c = _mm_tb(s_c, s_c, cast=False)                     # (Nb, Nb)
        a_big = a_c if a_big is None else jnp.maximum(a_big, a_c)
    a_big = _softmax_rows(a_big)
    row = jax.lax.broadcasted_iota(jnp.int32, (nb, nb), 0)
    col = jax.lax.broadcasted_iota(jnp.int32, (nb, nb), 1)
    upper_b = (row < col).astype(jnp.float32)                  # directed i -> j, i < j
    x_big = _gcn_conv(imgf, a_big * upper_b, bw1[...], bb1[...], relu=True)
    # TODO(synk): F.dropout between the two GCN convs skipped (deterministic eval).
    x_big = _gcn_conv(x_big, upper_b, bw2[...], bb2[...], relu=False)

    # ---- small graph ----
    a_sm = None
    for c in range(n_class):
        s_c = _mm_tb(img_zs, tf3[c])                           # (Ns, nbig)
        a_c = _mm_ta(s_c, s_c, cast=False)                     # (nbig, nbig)
        a_sm = a_c if a_sm is None else jnp.maximum(a_sm, a_c)
    a_sm = _softmax_rows(a_sm)
    r_e = jax.lax.broadcasted_iota(jnp.int32, (nsm, nbig), 0)
    c_e = jax.lax.broadcasted_iota(jnp.int32, (nsm, nbig), 1)
    sel = (r_e == c_e).astype(jnp.float32)                     # (Ns, nbig) selector
    a_pad = _mm_tb(_mm(sel, a_sm, cast=False), sel, cast=False)  # (Ns, Ns) top-left blk
    rown = jax.lax.broadcasted_iota(jnp.int32, (nsm, nsm), 0)
    coln = jax.lax.broadcasted_iota(jnp.int32, (nsm, nsm), 1)
    upper_s = (rown < coln).astype(jnp.float32)
    in_blk = (coln < nbig).astype(jnp.float32)
    x_sm = _gcn_conv(img_zs, a_pad * upper_s, sw1[...], sb1[...], relu=True)
    x_sm = _gcn_conv(x_sm, upper_s * in_blk, sw2[...], sb2[...], relu=False)

    # ---- logits (four matmuls, two concatenated outputs) ----
    tzs_flat = tzs3.reshape(C * ns, Dp)
    tf_mean = jnp.mean(tf3, axis=1, keepdims=True).reshape(C, Dp)
    tzs_mean = jnp.mean(tzs3, axis=1, keepdims=True).reshape(C, Dp)
    lb_full = _mm_tb(x_big, tzs_flat)                          # (Nb, C*ns)
    lb_cross = _mm_tb(x_big, tf_mean)                          # (Nb, C)
    ls_full = _mm_tb(x_sm, tf)                                 # (Ns, C*nbig)
    ls_cross = _mm_tb(x_sm, tzs_mean)                          # (Ns, C)
    lb_ref[...] = jnp.concatenate([lb_full, lb_cross], axis=-1)
    ls_ref[...] = jnp.concatenate([ls_full, ls_cross], axis=-1)


# ----------------------------- pallas_call plumbing --------------------------
def _const_spec(shape):
    nd = len(shape)

    def idx(l):
        return (0,) * nd

    return pl.BlockSpec(tuple(shape), idx)


def _layer_spec(shape):
    nd = len(shape)

    def idx(l):
        return (l,) + (0,) * (nd - 1)

    return pl.BlockSpec((1,) + tuple(shape[1:]), idx)


def _run_simple(kernel, inputs, out_shapes):
    """grid=(1,) pallas_call; every ref is a whole-array VMEM block."""
    inputs = [jnp.asarray(a) for a in inputs]
    in_specs = [_const_spec(a.shape) for a in inputs]
    out_shape = [jax.ShapeDtypeStruct(s, jnp.float32) for s in out_shapes]
    out_specs = [_const_spec(s) for s in out_shapes]
    return pl.pallas_call(
        kernel,
        out_shape=out_shape,
        grid=(1,),
        in_specs=in_specs,
        out_specs=out_specs,
        compiler_params=pltpu.CompilerParams(dimension_semantics=("arbitrary",)),
    )(*inputs)


def text_zs_call(tp, x, bias, eos_sel):
    layer_w = [tp["layers"][n] for n in LAYER_W]
    B = x.shape[0]
    inputs = [x, bias, eos_sel] + layer_w + [tp["final_ln_g"], tp["final_ln_b"], tp["proj"]]
    in_specs = ([_const_spec(x.shape), _const_spec(bias.shape), _const_spec(eos_sel.shape)]
                + [_layer_spec(a.shape) for a in layer_w]
                + [_const_spec(tp["final_ln_g"].shape),
                   _const_spec(tp["final_ln_b"].shape),
                   _const_spec(tp["proj"].shape)])
    out_shape = [jax.ShapeDtypeStruct((B, D_PROJ), jnp.float32),
                 jax.ShapeDtypeStruct((TEXT_LAYERS, B, D_TXT), jnp.float32)]
    out_specs = [_const_spec((B, D_PROJ)), _layer_spec((TEXT_LAYERS, B, D_TXT))]
    kernel = functools.partial(_text_zs_kernel, n_heads=N_HEADS)
    out, feats = pl.pallas_call(
        kernel,
        out_shape=out_shape,
        grid=(TEXT_LAYERS,),
        in_specs=in_specs,
        out_specs=out_specs,
        scratch_shapes=[pltpu.VMEM(x.shape, jnp.float32)],
        compiler_params=pltpu.CompilerParams(dimension_semantics=("arbitrary",)),
    )(*inputs)
    return out, feats


def text_prompt_call(tp, x, bias, eos_sel, inject):
    layer_w = [tp["layers"][n] for n in LAYER_W]
    B = x.shape[0]
    inputs = [x, bias, eos_sel, inject] + layer_w + \
        [tp["final_ln_g"], tp["final_ln_b"], tp["proj"]]
    in_specs = ([_const_spec(x.shape), _const_spec(bias.shape),
                 _const_spec(eos_sel.shape), _layer_spec(inject.shape)]
                + [_layer_spec(a.shape) for a in layer_w]
                + [_const_spec(tp["final_ln_g"].shape),
                   _const_spec(tp["final_ln_b"].shape),
                   _const_spec(tp["proj"].shape)])
    kernel = functools.partial(_text_prompt_kernel, n_heads=N_HEADS,
                               n_tpro=N_TPRO, n_high=N_HIGH)
    return pl.pallas_call(
        kernel,
        out_shape=jax.ShapeDtypeStruct((B, D_PROJ), jnp.float32),
        grid=(TEXT_LAYERS,),
        in_specs=in_specs,
        out_specs=_const_spec((B, D_PROJ)),
        scratch_shapes=[pltpu.VMEM(x.shape, jnp.float32)],
        compiler_params=pltpu.CompilerParams(dimension_semantics=("arbitrary",)),
    )(*inputs)


def vision_call(vp, x, inject):
    layer_w = [vp["layers"][n] for n in LAYER_W]
    N = x.shape[0]
    inputs = [x, inject] + layer_w + \
        [vp["pre_ln_g"], vp["pre_ln_b"], vp["post_ln_g"], vp["post_ln_b"], vp["proj"]]
    in_specs = ([_const_spec(x.shape), _layer_spec(inject.shape)]
                + [_layer_spec(a.shape) for a in layer_w]
                + [_const_spec(vp["pre_ln_g"].shape), _const_spec(vp["pre_ln_b"].shape),
                   _const_spec(vp["post_ln_g"].shape), _const_spec(vp["post_ln_b"].shape),
                   _const_spec(vp["proj"].shape)])
    kernel = functools.partial(_vision_kernel, n_heads=N_HEADS, n_vpro=N_VPRO)
    return pl.pallas_call(
        kernel,
        out_shape=jax.ShapeDtypeStruct((N, D_PROJ), jnp.float32),
        grid=(VIS_LAYERS,),
        in_specs=in_specs,
        out_specs=_const_spec((N, D_PROJ)),
        scratch_shapes=[pltpu.VMEM(x.shape, jnp.float32)],
        compiler_params=pltpu.CompilerParams(dimension_semantics=("arbitrary",)),
    )(*inputs)


def prep_call(params, patches2d, feats_flat):
    vp, pr = params["vision"], params["prompt"]
    outs = _run_simple(
        _prep_kernel,
        [patches2d, vp["patch_w"], feats_flat, pr["p_ins_w"], pr["p_ins_b"]],
        [(patches2d.shape[0], D_VIS), (feats_flat.shape[0], D_TXT)])
    return outs[0], outs[1]


def tail_call(params, small_emb, image_features, tfzs3, text_features):
    gb, gs = params["gcn_big"], params["gcn_small"]
    kernel = functools.partial(_tail_kernel, n_class=N_CLASS)
    outs = _run_simple(
        kernel,
        [small_emb, params["vision"]["proj"], image_features, tfzs3, text_features,
         gb["w1"], gb["b1"], gb["w2"], gb["b2"],
         gs["w1"], gs["b1"], gs["w2"], gs["b2"]],
        [(image_features.shape[0], N_CLASS * N_SMALL_DESC + N_CLASS),
         (small_emb.shape[0], N_CLASS * N_BIG_DESC + N_CLASS)])
    return outs[0], outs[1]


# ----------------------------- parameter init -------------------------------
def init_stacked_layers(key, d, mlp, n_layers):
    """Encoder-layer weights stacked along a leading layer axis, heads fused on D."""
    ks = jax.random.split(key, 6)
    f32 = jnp.float32
    return {
        "wq": (jax.random.normal(ks[0], (n_layers, d, d)) * STD).astype(W_DTYPE),
        "bq": jnp.zeros((n_layers, 1, d), f32),
        "wk": (jax.random.normal(ks[1], (n_layers, d, d)) * STD).astype(W_DTYPE),
        "bk": jnp.zeros((n_layers, 1, d), f32),
        "wv": (jax.random.normal(ks[2], (n_layers, d, d)) * STD).astype(W_DTYPE),
        "bv": jnp.zeros((n_layers, 1, d), f32),
        "wo": (jax.random.normal(ks[3], (n_layers, d, d)) * STD).astype(W_DTYPE),
        "bo": jnp.zeros((n_layers, 1, d), f32),
        "ln1_g": jnp.ones((n_layers, 1, d), f32), "ln1_b": jnp.zeros((n_layers, 1, d), f32),
        "ln2_g": jnp.ones((n_layers, 1, d), f32), "ln2_b": jnp.zeros((n_layers, 1, d), f32),
        "w1": (jax.random.normal(ks[4], (n_layers, d, mlp)) * STD).astype(W_DTYPE),
        "b1": jnp.zeros((n_layers, 1, mlp), f32),
        "w2": (jax.random.normal(ks[5], (n_layers, mlp, d)) * STD).astype(W_DTYPE),
        "b2": jnp.zeros((n_layers, 1, d), f32),
    }


def _init_gcn(key):
    k1, k2 = jax.random.split(key)
    return {"w1": (jax.random.normal(k1, (D_PROJ, D_PROJ)) * STD).astype(W_DTYPE),
            "b1": jnp.zeros((1, D_PROJ), jnp.float32),
            "w2": (jax.random.normal(k2, (D_PROJ, D_PROJ)) * STD).astype(W_DTYPE),
            "b2": jnp.zeros((1, D_PROJ), jnp.float32)}


def init_params(key):
    k = iter(jax.random.split(key, 16))
    return {
        "text": {
            "token_emb": jax.random.normal(next(k), (VOCAB, D_TXT)) * STD,
            "pos": jax.random.normal(next(k), (L_TXT, D_TXT)) * STD,
            "layers": init_stacked_layers(next(k), D_TXT, MLP_TXT, TEXT_LAYERS),
            "final_ln_g": jnp.ones((1, D_TXT)), "final_ln_b": jnp.zeros((1, D_TXT)),
            "proj": (jax.random.normal(next(k), (D_TXT, D_PROJ)) * STD).astype(W_DTYPE),
        },
        "vision": {
            "patch_w": (jax.random.normal(next(k), (3 * PATCH * PATCH, D_VIS)) * STD
                        ).astype(W_DTYPE),
            "class_emb": jax.random.normal(next(k), (D_VIS,)) * STD,
            "pos": jax.random.normal(next(k), (NUM_PATCHES + 1, D_VIS)) * STD,
            "pre_ln_g": jnp.ones((1, D_VIS)), "pre_ln_b": jnp.zeros((1, D_VIS)),
            "layers": init_stacked_layers(next(k), D_VIS, MLP_VIS, VIS_LAYERS),
            "post_ln_g": jnp.ones((1, D_VIS)), "post_ln_b": jnp.zeros((1, D_VIS)),
            "proj": (jax.random.normal(next(k), (D_VIS, D_PROJ)) * STD).astype(W_DTYPE),
        },
        "prompt": {
            "p_uni": jax.random.normal(next(k), (TEXT_LAYERS - 1, N_TPRO, D_TXT)) * STD,
            "p_ins_w": (jax.random.normal(next(k), (D_TXT, D_TXT)) * STD).astype(W_DTYPE),
            "p_ins_b": jnp.zeros((1, D_TXT)),
            "p_input": jax.random.normal(next(k), (N_TPRO + N_HIGH, D_TXT)) * STD,
        },
        "vprompt": {
            "p_visual": jax.random.normal(next(k), (VIS_LAYERS - 1, N_VPRO, D_VIS)) * STD,
            "vp_input": jax.random.normal(next(k), (N_VPRO, D_VIS)) * STD,
        },
        "gcn_big": _init_gcn(next(k)),
        "gcn_small": _init_gcn(next(k)),
        "logit_scale": jnp.asarray(jnp.log(1.0 / 0.07), jnp.float32),
    }


# TODO(synk): tokenizer + JSON description loading replaced by deterministic
#             synthetic token ids (EOS id == VOCAB-1, so argmax == EOS position).
def make_tokens(key, n_texts, L, min_len, max_len):
    k1, k2 = jax.random.split(key)
    lengths = jax.random.randint(k1, (n_texts,), min_len, max_len + 1)
    ids = jax.random.randint(k2, (n_texts, L), 1, VOCAB - 2)
    pos = jnp.arange(L)[None, :]
    ids = jnp.where(pos < lengths[:, None], ids, 0)
    ids = jnp.where(pos == lengths[:, None], VOCAB - 1, ids)
    mask = (pos <= lengths[:, None]).astype(jnp.float32)
    return ids.astype(jnp.int32), mask


def causal_mask(L):
    i = jnp.arange(L)
    return jnp.where(i[:, None] >= i[None, :], 0.0, NEG).astype(jnp.float32)


# ----------------------------- init-time ZS precompute -----------------------
def build_state(params, key):
    """Replicates CustomCLIP.__init__ (text_features_zs / text_features_ft)."""
    k_small, k_big = jax.random.split(key)
    tp = params["text"]
    ids, mask = make_tokens(k_small, N_CLASS * N_SMALL_DESC, L_TXT, 3, L_TXT - 2)
    x = tp["token_emb"][ids] + tp["pos"][None, :L_TXT]
    bias = causal_mask(L_TXT)[None] + (1.0 - mask)[:, None, :] * NEG
    eos_sel = jax.nn.one_hot(jnp.argmax(ids, axis=-1), L_TXT,
                             dtype=jnp.float32)[:, None, :]
    out, feats = text_zs_call(tp, x, bias, eos_sel)            # already l2-normalized
    text_features_zs = out.reshape(N_CLASS, N_SMALL_DESC, D_PROJ)
    text_features_ft = jnp.transpose(
        feats.reshape(TEXT_LAYERS, N_CLASS, N_SMALL_DESC, D_TXT), (1, 0, 2, 3))
    big_ids, big_mask = make_tokens(k_big, N_CLASS * N_BIG_DESC, L_TXT,
                                    1 + N_TPRO + N_HIGH + 2, L_TXT - 2)
    return {"text_features_zs": text_features_zs,
            "text_features_ft": text_features_ft,
            "big_ids": big_ids, "big_mask": big_mask}


# ----------------------------- CustomCLIP.forward ----------------------------
def custom_clip_forward(params, state, big_image, small_embeddings, train=True):
    big_image = big_image[0]                       # (N_big, 3, H, W), NCHW
    small_embeddings = small_embeddings[0]         # (N_small, D_VIS)
    logit_scale = jnp.exp(params["logit_scale"])
    tp, vp = params["text"], params["vision"]

    # ---- glue: patch extraction + flattening of the stored ZS features ----
    N, C, H, W = big_image.shape
    p = PATCH
    patches = big_image.reshape(N, C, H // p, p, W // p, p)
    patches = patches.transpose(0, 2, 4, 1, 3, 5).reshape(N * NUM_PATCHES, C * p * p)
    feats_ft = state["text_features_ft"]                       # (C, layers, ns, D)
    feats_l = jnp.transpose(feats_ft, (1, 0, 2, 3)).reshape(
        TEXT_LAYERS, N_CLASS * N_SMALL_DESC, D_TXT)
    feats_flat = feats_l[:TEXT_LAYERS - 1].reshape(-1, D_TXT)

    # ---- prep kernel: patch embedding + p_ins projector ----
    patch_emb, p_ins_flat = prep_call(params, patches, feats_flat)
    p_ins = p_ins_flat.reshape(TEXT_LAYERS - 1, N_CLASS * N_SMALL_DESC, D_TXT)

    # ---- prompted text branch (MYPromptLearner + TextEncoder) ----
    big_ids, big_mask = state["big_ids"], state["big_mask"]
    P_, L = big_ids.shape
    embedding = tp["token_emb"][big_ids] + tp["pos"][None, :L]
    prefix = embedding[:, :1]
    suffix = embedding[:, 1 + N_TPRO + N_HIGH:]
    p_input = jnp.broadcast_to(params["prompt"]["p_input"][None],
                               (P_, N_TPRO + N_HIGH, D_TXT))
    p_ori = jnp.concatenate([prefix, p_input, suffix], axis=1)
    bias = causal_mask(L)[None] + (1.0 - big_mask)[:, None, :] * NEG
    # TODO(synk): EOS extraction via argmax relies on the synthetic EOS id being the max.
    eos_sel = jax.nn.one_hot(jnp.argmax(big_ids, axis=-1), L,
                             dtype=jnp.float32)[:, None, :]
    pins = p_ins.reshape(TEXT_LAYERS - 1, N_CLASS, N_HIGH, D_TXT)
    pins = jnp.broadcast_to(pins[:, :, None],
                            (TEXT_LAYERS - 1, N_CLASS, P_ // N_CLASS, N_HIGH, D_TXT))
    pins = pins.reshape(TEXT_LAYERS - 1, P_, N_HIGH, D_TXT)
    ctx_g = jnp.broadcast_to(params["prompt"]["p_uni"][:, None],
                             (TEXT_LAYERS - 1, P_, N_TPRO, D_TXT))
    ctx = jnp.concatenate([ctx_g, pins], axis=2)
    inject = jnp.zeros((TEXT_LAYERS, P_, L, D_TXT), jnp.float32)   # slot 0 unused
    inject = inject.at[1:, :, 1:1 + N_TPRO + N_HIGH].set(ctx)
    text_features = text_prompt_call(tp, p_ori, bias, eos_sel, inject)   # (P, Dp)

    # ---- vision branch (VisionPromptLearner + VisionEncoder) ----
    x_patch = patch_emb.reshape(N, NUM_PATCHES, D_VIS)
    cls = jnp.broadcast_to(vp["class_emb"][None, None, :], (N, 1, D_VIS))
    x_vis = jnp.concatenate([cls, x_patch], axis=1) + vp["pos"][None]
    vpro = jnp.broadcast_to(params["vprompt"]["vp_input"][None], (N, N_VPRO, D_VIS))
    x_vis = jnp.concatenate([x_vis, vpro], axis=1)                     # (N, S, D)
    S = x_vis.shape[1]
    rep = jnp.broadcast_to(params["vprompt"]["p_visual"][:, :, None, :],
                           (VIS_LAYERS - 1, N_VPRO, S, D_VIS))
    vis_inject = jnp.zeros((VIS_LAYERS, N, S, D_VIS), jnp.float32)     # slot 0 unused
    vis_inject = vis_inject.at[1:, N - N_VPRO:].set(rep)
    image_features = vision_call(vp, x_vis, vis_inject)               # (N, Dp)

    # ---- fused tail: small-emb proj + graphs + logits ----
    tfzs3 = state["text_features_zs"]                                  # (C, ns, Dp)
    lb, ls = tail_call(params, small_embeddings, image_features, tfzs3, text_features)
    nzs = N_CLASS * N_SMALL_DESC
    nft = N_CLASS * N_BIG_DESC
    li_full, li_cross = lb[:, :nzs], lb[:, nzs:]
    lt_full, lt_cross = ls[:, :nft], ls[:, nft:]

    return_sim_big = li_full.reshape(li_full.shape[0], N_CLASS, -1)
    logits_i = li_full.reshape(-1, N_CLASS)
    logits_i = logit_scale * jnp.mean(jax.lax.top_k(logits_i.T, 5)[0], axis=-1)
    logits_i = logits_i + logit_scale * jnp.mean(jax.lax.top_k(li_cross.T, 5)[0], axis=-1)

    return_sim_small = lt_full.reshape(lt_full.shape[0], N_CLASS, -1)
    logits_t = lt_full.reshape(-1, N_CLASS)
    logits_t = logit_scale * jnp.mean(jax.lax.top_k(logits_t.T, 100)[0], axis=-1)
    logits_t = logits_t + logit_scale * jnp.mean(jax.lax.top_k(lt_cross.T, 100)[0], axis=-1)

    logits = (logits_i + logits_t) / 2.0
    if train:
        return logits, logits_i, logits_t
    return logits, (return_sim_small, return_sim_big)


# ----------------------------- main ------------------------------------------
if __name__ == "__main__":
    root = jax.random.PRNGKey(0)
    k_params, k_state, k_img, k_emb = jax.random.split(root, 4)

    params = init_params(k_params)
    state = build_state(params, k_state)

    # layout: big_image is (1, N_big, C, H, W) — NCHW images with a leading dummy batch
    big_image = jax.random.normal(k_img, (1, N_BIG_IMG, 3, IMG_H, IMG_W), jnp.float32)
    small_embeddings = jax.random.normal(k_emb, (1, N_SMALL, D_VIS), jnp.float32)

    fwd = jax.jit(lambda bi, se: custom_clip_forward(params, state, bi, se, train=True))
    logits, logits_i, logits_t = fwd(big_image, small_embeddings)
    jax.block_until_ready((logits, logits_i, logits_t))

    assert logits.shape == (N_CLASS,)
    assert logits_i.shape == (N_CLASS,)
    assert logits_t.shape == (N_CLASS,)
    assert bool(jnp.all(jnp.isfinite(logits)))
    print("KERNEL_OK")
</pallas_src>

<mosaic_0001>
module attributes {stable_mosaic.version = 11 : i64} {
  func.func @_text_zs_kernel(%arg0: i32, %arg1: memref<4x16x32xf32, #tpu.memory_space<vmem>>, %arg2: memref<4x16x16xf32, #tpu.memory_space<vmem>>, %arg3: memref<4x1x16xf32, #tpu.memory_space<vmem>>, %arg4: memref<1x32x32xbf16, #tpu.memory_space<vmem>>, %arg5: memref<1x1x32xf32, #tpu.memory_space<vmem>>, %arg6: memref<1x32x32xbf16, #tpu.memory_space<vmem>>, %arg7: memref<1x1x32xf32, #tpu.memory_space<vmem>>, %arg8: memref<1x32x32xbf16, #tpu.memory_space<vmem>>, %arg9: memref<1x1x32xf32, #tpu.memory_space<vmem>>, %arg10: memref<1x32x32xbf16, #tpu.memory_space<vmem>>, %arg11: memref<1x1x32xf32, #tpu.memory_space<vmem>>, %arg12: memref<1x1x32xf32, #tpu.memory_space<vmem>>, %arg13: memref<1x1x32xf32, #tpu.memory_space<vmem>>, %arg14: memref<1x1x32xf32, #tpu.memory_space<vmem>>, %arg15: memref<1x1x32xf32, #tpu.memory_space<vmem>>, %arg16: memref<1x32x64xbf16, #tpu.memory_space<vmem>>, %arg17: memref<1x1x64xf32, #tpu.memory_space<vmem>>, %arg18: memref<1x64x32xbf16, #tpu.memory_space<vmem>>, %arg19: memref<1x1x32xf32, #tpu.memory_space<vmem>>, %arg20: memref<1x32xf32, #tpu.memory_space<vmem>>, %arg21: memref<1x32xf32, #tpu.memory_space<vmem>>, %arg22: memref<32x32xbf16, #tpu.memory_space<vmem>>, %arg23: memref<4x32xf32, #tpu.memory_space<vmem>>, %arg24: memref<1x4x32xf32, #tpu.memory_space<vmem>>, %arg25: memref<4x16x32xf32, #tpu.memory_space<vmem>>) attributes {dimension_semantics = [#tpu.dimension_semantics<arbitrary>], iteration_bounds = array<i64: 2>, scalar_prefetch = 0 : i64, scratch_operands = 1 : i64, tpu.core_type = #tpu.core_type<tc>, window_params = [{pipeline_mode = #tpu.pipeline_mode<synchronous>, transform_indices = @transform_0, window_bounds = array<i64: 4, 16, 32>}, {pipeline_mode = #tpu.pipeline_mode<synchronous>, transform_indices = @transform_1, window_bounds = array<i64: 4, 16, 16>}, {pipeline_mode = #tpu.pipeline_mode<synchronous>, transform_indices = @transform_2, window_bounds = array<i64: 4, 1, 16>}, {transform_indices = @transform_3, window_bounds = array<i64: 1, 32, 32>}, {transform_indices = @transform_4, window_bounds = array<i64: 1, 1, 32>}, {transform_indices = @transform_5, window_bounds = array<i64: 1, 32, 32>}, {transform_indices = @transform_6, window_bounds = array<i64: 1, 1, 32>}, {transform_indices = @transform_7, window_bounds = array<i64: 1, 32, 32>}, {transform_indices = @transform_8, window_bounds = array<i64: 1, 1, 32>}, {transform_indices = @transform_9, window_bounds = array<i64: 1, 32, 32>}, {transform_indices = @transform_10, window_bounds = array<i64: 1, 1, 32>}, {transform_indices = @transform_11, window_bounds = array<i64: 1, 1, 32>}, {transform_indices = @transform_12, window_bounds = array<i64: 1, 1, 32>}, {transform_indices = @transform_13, window_bounds = array<i64: 1, 1, 32>}, {transform_indices = @transform_14, window_bounds = array<i64: 1, 1, 32>}, {transform_indices = @transform_15, window_bounds = array<i64: 1, 32, 64>}, {transform_indices = @transform_16, window_bounds = array<i64: 1, 1, 64>}, {transform_indices = @transform_17, window_bounds = array<i64: 1, 64, 32>}, {transform_indices = @transform_18, window_bounds = array<i64: 1, 1, 32>}, {pipeline_mode = #tpu.pipeline_mode<synchronous>, transform_indices = @transform_19, window_bounds = array<i64: 1, 32>}, {pipeline_mode = #tpu.pipeline_mode<synchronous>, transform_indices = @transform_20, window_bounds = array<i64: 1, 32>}, {pipeline_mode = #tpu.pipeline_mode<synchronous>, transform_indices = @transform_21, window_bounds = array<i64: 32, 32>}, {pipeline_mode = #tpu.pipeline_mode<synchronous>, transform_indices = @transform_22, window_bounds = array<i64: 4, 32>}, {transform_indices = @transform_23, window_bounds = array<i64: 1, 4, 32>}]} {
    %c0_i32 = arith.constant 0 : i32
    %0 = arith.cmpi eq, %arg0, %c0_i32 : i32
    %1 = arith.extui %0 : i1 to i32
    %c0_i32_0 = arith.constant 0 : i32
    %2 = arith.cmpi ne, %1, %c0_i32_0 : i32
    scf.if %2 {
      %c0_101 = arith.constant 0 : index
      %c0_102 = arith.constant 0 : index
      %c0_103 = arith.constant 0 : index
      %222 = vector.load %arg1[%c0_101, %c0_102, %c0_103] : memref<4x16x32xf32, #tpu.memory_space<vmem>>, vector<4x16x32xf32>
      %c0_104 = arith.constant 0 : index
      %c0_105 = arith.constant 0 : index
      %c0_106 = arith.constant 0 : index
      %223 = vector.load %arg25[%c0_104, %c0_105, %c0_106] : memref<4x16x32xf32, #tpu.memory_space<vmem>>, vector<4x16x32xf32>
      tpu.vector_store %arg25[%c0_104, %c0_105, %c0_106], %222 {strides = array<i32>} : memref<4x16x32xf32, #tpu.memory_space<vmem>>, vector<4x16x32xf32>,
    } else {
    }
    %c0 = arith.constant 0 : index
    %c0_1 = arith.constant 0 : index
    %c0_2 = arith.constant 0 : index
    %3 = vector.load %arg4[%c0, %c0_1, %c0_2] : memref<1x32x32xbf16, #tpu.memory_space<vmem>>, vector<1x32x32xbf16>
    %4 = vector.shape_cast %3 : vector<1x32x32xbf16> to vector<32x32xbf16>
    %c0_3 = arith.constant 0 : index
    %c0_4 = arith.constant 0 : index
    %c0_5 = arith.constant 0 : index
    %5 = vector.load %arg5[%c0_3, %c0_4, %c0_5] : memref<1x1x32xf32, #tpu.memory_space<vmem>>, vector<1x1x32xf32>
    %6 = vector.shape_cast %5 : vector<1x1x32xf32> to vector<1x32xf32>
    %c0_6 = arith.constant 0 : index
    %c0_7 = arith.constant 0 : index
    %c0_8 = arith.constant 0 : index
    %7 = vector.load %arg6[%c0_6, %c0_7, %c0_8] : memref<1x32x32xbf16, #tpu.memory_space<vmem>>, vector<1x32x32xbf16>
    %8 = vector.shape_cast %7 : vector<1x32x32xbf16> to vector<32x32xbf16>
    %c0_9 = arith.constant 0 : index
    %c0_10 = arith.constant 0 : index
    %c0_11 = arith.constant 0 : index
    %9 = vector.load %arg7[%c0_9, %c0_10, %c0_11] : memref<1x1x32xf32, #tpu.memory_space<vmem>>, vector<1x1x32xf32>
    %10 = vector.shape_cast %9 : vector<1x1x32xf32> to vector<1x32xf32>
    %c0_12 = arith.constant 0 : index
    %c0_13 = arith.constant 0 : index
    %c0_14 = arith.constant 0 : index
    %11 = vector.load %arg8[%c0_12, %c0_13, %c0_14] : memref<1x32x32xbf16, #tpu.memory_space<vmem>>, vector<1x32x32xbf16>
    %12 = vector.shape_cast %11 : vector<1x32x32xbf16> to vector<32x32xbf16>
    %c0_15 = arith.constant 0 : index
    %c0_16 = arith.constant 0 : index
    %c0_17 = arith.constant 0 : index
    %13 = vector.load %arg9[%c0_15, %c0_16, %c0_17] : memref<1x1x32xf32, #tpu.memory_space<vmem>>, vector<1x1x32xf32>
    %14 = vector.shape_cast %13 : vector<1x1x32xf32> to vector<1x32xf32>
    %c0_18 = arith.constant 0 : index
    %c0_19 = arith.constant 0 : index
    %c0_20 = arith.constant 0 : index
    %15 = vector.load %arg10[%c0_18, %c0_19, %c0_20] : memref<1x32x32xbf16, #tpu.memory_space<vmem>>, vector<1x32x32xbf16>
    %16 = vector.shape_cast %15 : vector<1x32x32xbf16> to vector<32x32xbf16>
    %c0_21 = arith.constant 0 : index
    %c0_22 = arith.constant 0 : index
    %c0_23 = arith.constant 0 : index
    %17 = vector.load %arg11[%c0_21, %c0_22, %c0_23] : memref<1x1x32xf32, #tpu.memory_space<vmem>>, vector<1x1x32xf32>
    %18 = vector.shape_cast %17 : vector<1x1x32xf32> to vector<1x32xf32>
    %c0_24 = arith.constant 0 : index
    %c0_25 = arith.constant 0 : index
    %c0_26 = arith.constant 0 : index
    %19 = vector.load %arg12[%c0_24, %c0_25, %c0_26] : memref<1x1x32xf32, #tpu.memory_space<vmem>>, vector<1x1x32xf32>
    %20 = vector.shape_cast %19 : vector<1x1x32xf32> to vector<1x32xf32>
    %c0_27 = arith.constant 0 : index
    %c0_28 = arith.constant 0 : index
    %c0_29 = arith.constant 0 : index
    %21 = vector.load %arg13[%c0_27, %c0_28, %c0_29] : memref<1x1x32xf32, #tpu.memory_space<vmem>>, vector<1x1x32xf32>
    %22 = vector.shape_cast %21 : vector<1x1x32xf32> to vector<1x32xf32>
    %c0_30 = arith.constant 0 : index
    %c0_31 = arith.constant 0 : index
    %c0_32 = arith.constant 0 : index
    %23 = vector.load %arg14[%c0_30, %c0_31, %c0_32] : memref<1x1x32xf32, #tpu.memory_space<vmem>>, vector<1x1x32xf32>
    %24 = vector.shape_cast %23 : vector<1x1x32xf32> to vector<1x32xf32>
    %c0_33 = arith.constant 0 : index
    %c0_34 = arith.constant 0 : index
    %c0_35 = arith.constant 0 : index
    %25 = vector.load %arg15[%c0_33, %c0_34, %c0_35] : memref<1x1x32xf32, #tpu.memory_space<vmem>>, vector<1x1x32xf32>
    %26 = vector.shape_cast %25 : vector<1x1x32xf32> to vector<1x32xf32>
    %c0_36 = arith.constant 0 : index
    %c0_37 = arith.constant 0 : index
    %c0_38 = arith.constant 0 : index
    %27 = vector.load %arg16[%c0_36, %c0_37, %c0_38] : memref<1x32x64xbf16, #tpu.memory_space<vmem>>, vector<1x32x64xbf16>
    %28 = vector.shape_cast %27 : vector<1x32x64xbf16> to vector<32x64xbf16>
    %c0_39 = arith.constant 0 : index
    %c0_40 = arith.constant 0 : index
    %c0_41 = arith.constant 0 : index
    %29 = vector.load %arg17[%c0_39, %c0_40, %c0_41] : memref<1x1x64xf32, #tpu.memory_space<vmem>>, vector<1x1x64xf32>
    %30 = vector.shape_cast %29 : vector<1x1x64xf32> to vector<1x64xf32>
    %c0_42 = arith.constant 0 : index
    %c0_43 = arith.constant 0 : index
    %c0_44 = arith.constant 0 : index
    %31 = vector.load %arg18[%c0_42, %c0_43, %c0_44] : memref<1x64x32xbf16, #tpu.memory_space<vmem>>, vector<1x64x32xbf16>
    %32 = vector.shape_cast %31 : vector<1x64x32xbf16> to vector<64x32xbf16>
    %c0_45 = arith.constant 0 : index
    %c0_46 = arith.constant 0 : index
    %c0_47 = arith.constant 0 : index
    %33 = vector.load %arg19[%c0_45, %c0_46, %c0_47] : memref<1x1x32xf32, #tpu.memory_space<vmem>>, vector<1x1x32xf32>
    %34 = vector.shape_cast %33 : vector<1x1x32xf32> to vector<1x32xf32>
    %c0_48 = arith.constant 0 : index
    %c0_49 = arith.constant 0 : index
    %c0_50 = arith.constant 0 : index
    %35 = vector.load %arg25[%c0_48, %c0_49, %c0_50] : memref<4x16x32xf32, #tpu.memory_space<vmem>>, vector<4x16x32xf32>
    %c0_51 = arith.constant 0 : index
    %c0_52 = arith.constant 0 : index
    %c0_53 = arith.constant 0 : index
    %36 = vector.load %arg2[%c0_51, %c0_52, %c0_53] : memref<4x16x16xf32, #tpu.memory_space<vmem>>, vector<4x16x16xf32>
    %37 = vector.shape_cast %35 : vector<4x16x32xf32> to vector<64x32xf32>
    %cst = arith.constant dense<0.000000e+00> : vector<64xf32>
    %38 = vector.multi_reduction <add>, %37, %cst [1] : vector<64x32xf32> to vector<64xf32>
    %39 = vector.shape_cast %38 : vector<64xf32> to vector<64x1xf32>
    %cst_54 = arith.constant 3.200000e+01 : f32
    %40 = vector.broadcast %cst_54 : f32 to vector<64x1xf32>
    %41 = arith.divf %39, %40 : vector<64x1xf32>
    %42 = vector.broadcast %41 : vector<64x1xf32> to vector<64x32xf32>
    %43 = arith.subf %37, %42 : vector<64x32xf32>
    %44 = arith.mulf %43, %43 : vector<64x32xf32>
    %cst_55 = arith.constant dense<0.000000e+00> : vector<64xf32>
    %45 = vector.multi_reduction <add>, %44, %cst_55 [1] : vector<64x32xf32> to vector<64xf32>
    %46 = vector.shape_cast %45 : vector<64xf32> to vector<64x1xf32>
    %cst_56 = arith.constant 3.200000e+01 : f32
    %47 = vector.broadcast %cst_56 : f32 to vector<64x1xf32>
    %48 = arith.divf %46, %47 : vector<64x1xf32>
    %49 = vector.broadcast %41 : vector<64x1xf32> to vector<64x32xf32>
    %50 = arith.subf %37, %49 : vector<64x32xf32>
    %cst_57 = arith.constant 9.99999974E-6 : f32
    %51 = vector.broadcast %cst_57 : f32 to vector<64x1xf32>
    %52 = arith.addf %48, %51 : vector<64x1xf32>
    %53 = math.rsqrt %52 : vector<64x1xf32>
    %54 = vector.broadcast %53 : vector<64x1xf32> to vector<64x32xf32>
    %55 = arith.mulf %50, %54 : vector<64x32xf32>
    %56 = vector.broadcast %20 : vector<1x32xf32> to vector<64x32xf32>
    %57 = arith.mulf %55, %56 : vector<64x32xf32>
    %58 = vector.broadcast %22 : vector<1x32xf32> to vector<64x32xf32>
    %59 = arith.addf %57, %58 : vector<64x32xf32>
    %60 = arith.truncf %59 : vector<64x32xf32> to vector<64x32xbf16>
    %cst_58 = arith.constant dense<0.000000e+00> : vector<64x32xf32>
    %61 = tpu.matmul %60, %4, %cst_58 {dimension_numbers = #tpu.dot_dimension_numbers<[1], [0], [0], [1], [0, 0, 1, 1], [], []>} : vector<64x32xbf16>, vector<32x32xbf16>, vector<64x32xf32> -> vector<64x32xf32>
    %62 = vector.broadcast %6 : vector<1x32xf32> to vector<64x32xf32>
    %63 = arith.addf %61, %62 : vector<64x32xf32>
    %cst_59 = arith.constant 0.353553385 : f32
    %64 = vector.broadcast %cst_59 : f32 to vector<64x32xf32>
    %65 = arith.mulf %63, %64 : vector<64x32xf32>
    %66 = arith.truncf %59 : vector<64x32xf32> to vector<64x32xbf16>
    %cst_60 = arith.constant dense<0.000000e+00> : vector<64x32xf32>
    %67 = tpu.matmul %66, %8, %cst_60 {dimension_numbers = #tpu.dot_dimension_numbers<[1], [0], [0], [1], [0, 0, 1, 1], [], []>} : vector<64x32xbf16>, vector<32x32xbf16>, vector<64x32xf32> -> vector<64x32xf32>
    %68 = vector.broadcast %10 : vector<1x32xf32> to vector<64x32xf32>
    %69 = arith.addf %67, %68 : vector<64x32xf32>
    %70 = arith.truncf %59 : vector<64x32xf32> to vector<64x32xbf16>
    %cst_61 = arith.constant dense<0.000000e+00> : vector<64x32xf32>
    %71 = tpu.matmul %70, %12, %cst_61 {dimension_numbers = #tpu.dot_dimension_numbers<[1], [0], [0], [1], [0, 0, 1, 1], [], []>} : vector<64x32xbf16>, vector<32x32xbf16>, vector<64x32xf32> -> vector<64x32xf32>
    %72 = vector.broadcast %14 : vector<1x32xf32> to vector<64x32xf32>
    %73 = arith.addf %71, %72 : vector<64x32xf32>
    %74 = vector.shape_cast %65 : vector<64x32xf32> to vector<4x16x32xf32>
    %75 = vector.shape_cast %69 : vector<64x32xf32> to vector<4x16x32xf32>
    %76 = vector.shape_cast %73 : vector<64x32xf32> to vector<4x16x32xf32>
    %77 = vector.extract_strided_slice %74 {offsets = [0, 0, 0], sizes = [4, 16, 8], strides = [1, 1, 1]} : vector<4x16x32xf32> to vector<4x16x8xf32>
    %78 = vector.extract_strided_slice %75 {offsets = [0, 0, 0], sizes = [4, 16, 8], strides = [1, 1, 1]} : vector<4x16x32xf32> to vector<4x16x8xf32>
    %79 = arith.truncf %77 : vector<4x16x8xf32> to vector<4x16x8xbf16>
    %80 = arith.truncf %78 : vector<4x16x8xf32> to vector<4x16x8xbf16>
    %cst_62 = arith.constant dense<0.000000e+00> : vector<4x16x16xf32>
    %81 = tpu.matmul %79, %80, %cst_62 {dimension_numbers = #tpu.dot_dimension_numbers<[2], [2], [1], [1], [0, 0, 0, 1, 1, 1], [0], [0]>} : vector<4x16x8xbf16>, vector<4x16x8xbf16>, vector<4x16x16xf32> -> vector<4x16x16xf32>
    %82 = arith.addf %81, %36 : vector<4x16x16xf32>
    %cst_63 = arith.constant dense<0xFF800000> : vector<4x16xf32>
    %83 = vector.multi_reduction <maximumf>, %82, %cst_63 [2] : vector<4x16x16xf32> to vector<4x16xf32>
    %84 = vector.shape_cast %83 : vector<4x16xf32> to vector<4x16x1xf32>
    %85 = vector.broadcast %84 : vector<4x16x1xf32> to vector<4x16x16xf32>
    %86 = arith.subf %82, %85 : vector<4x16x16xf32>
    %87 = math.exp %86 : vector<4x16x16xf32>
    %cst_64 = arith.constant dense<0.000000e+00> : vector<4x16xf32>
    %88 = vector.multi_reduction <add>, %87, %cst_64 [2] : vector<4x16x16xf32> to vector<4x16xf32>
    %89 = vector.shape_cast %88 : vector<4x16xf32> to vector<4x16x1xf32>
    %90 = tpu.reciprocal %89 {approx = true} : vector<4x16x1xf32> -> vector<4x16x1xf32>
    %91 = vector.broadcast %90 : vector<4x16x1xf32> to vector<4x16x16xf32>
    %92 = arith.mulf %87, %91 : vector<4x16x16xf32>
    %93 = vector.extract_strided_slice %76 {offsets = [0, 0, 0], sizes = [4, 16, 8], strides = [1, 1, 1]} : vector<4x16x32xf32> to vector<4x16x8xf32>
    %94 = arith.truncf %92 : vector<4x16x16xf32> to vector<4x16x16xbf16>
    %95 = arith.truncf %93 : vector<4x16x8xf32> to vector<4x16x8xbf16>
    %cst_65 = arith.constant dense<0.000000e+00> : vector<4x16x8xf32>
    %96 = tpu.matmul %94, %95, %cst_65 {dimension_numbers = #tpu.dot_dimension_numbers<[2], [1], [1], [2], [0, 0, 0, 1, 1, 2], [0], [0]>} : vector<4x16x16xbf16>, vector<4x16x8xbf16>, vector<4x16x8xf32> -> vector<4x16x8xf32>
    %97 = vector.extract_strided_slice %74 {offsets = [0, 0, 8], sizes = [4, 16, 8], strides = [1, 1, 1]} : vector<4x16x32xf32> to vector<4x16x8xf32>
    %98 = vector.extract_strided_slice %75 {offsets = [0, 0, 8], sizes = [4, 16, 8], strides = [1, 1, 1]} : vector<4x16x32xf32> to vector<4x16x8xf32>
    %99 = arith.truncf %97 : vector<4x16x8xf32> to vector<4x16x8xbf16>
    %100 = arith.truncf %98 : vector<4x16x8xf32> to vector<4x16x8xbf16>
    %cst_66 = arith.constant dense<0.000000e+00> : vector<4x16x16xf32>
    %101 = tpu.matmul %99, %100, %cst_66 {dimension_numbers = #tpu.dot_dimension_numbers<[2], [2], [1], [1], [0, 0, 0, 1, 1, 1], [0], [0]>} : vector<4x16x8xbf16>, vector<4x16x8xbf16>, vector<4x16x16xf32> -> vector<4x16x16xf32>
    %102 = arith.addf %101, %36 : vector<4x16x16xf32>
    %cst_67 = arith.constant dense<0xFF800000> : vector<4x16xf32>
    %103 = vector.multi_reduction <maximumf>, %102, %cst_67 [2] : vector<4x16x16xf32> to vector<4x16xf32>
    %104 = vector.shape_cast %103 : vector<4x16xf32> to vector<4x16x1xf32>
    %105 = vector.broadcast %104 : vector<4x16x1xf32> to vector<4x16x16xf32>
    %106 = arith.subf %102, %105 : vector<4x16x16xf32>
    %107 = math.exp %106 : vector<4x16x16xf32>
    %cst_68 = arith.constant dense<0.000000e+00> : vector<4x16xf32>
    %108 = vector.multi_reduction <add>, %107, %cst_68 [2] : vector<4x16x16xf32> to vector<4x16xf32>
    %109 = vector.shape_cast %108 : vector<4x16xf32> to vector<4x16x1xf32>
    %110 = tpu.reciprocal %109 {approx = true} : vector<4x16x1xf32> -> vector<4x16x1xf32>
    %111 = vector.broadcast %110 : vector<4x16x1xf32> to vector<4x16x16xf32>
    %112 = arith.mulf %107, %111 : vector<4x16x16xf32>
    %113 = vector.extract_strided_slice %76 {offsets = [0, 0, 8], sizes = [4, 16, 8], strides = [1, 1, 1]} : vector<4x16x32xf32> to vector<4x16x8xf32>
    %114 = arith.truncf %112 : vector<4x16x16xf32> to vector<4x16x16xbf16>
    %115 = arith.truncf %113 : vector<4x16x8xf32> to vector<4x16x8xbf16>
    %cst_69 = arith.constant dense<0.000000e+00> : vector<4x16x8xf32>
    %116 = tpu.matmul %114, %115, %cst_69 {dimension_numbers = #tpu.dot_dimension_numbers<[2], [1], [1], [2], [0, 0, 0, 1, 1, 2], [0], [0]>} : vector<4x16x16xbf16>, vector<4x16x8xbf16>, vector<4x16x8xf32> -> vector<4x16x8xf32>
    %117 = vector.extract_strided_slice %74 {offsets = [0, 0, 16], sizes = [4, 16, 8], strides = [1, 1, 1]} : vector<4x16x32xf32> to vector<4x16x8xf32>
    %118 = vector.extract_strided_slice %75 {offsets = [0, 0, 16], sizes = [4, 16, 8], strides = [1, 1, 1]} : vector<4x16x32xf32> to vector<4x16x8xf32>
    %119 = arith.truncf %117 : vector<4x16x8xf32> to vector<4x16x8xbf16>
    %120 = arith.truncf %118 : vector<4x16x8xf32> to vector<4x16x8xbf16>
    %cst_70 = arith.constant dense<0.000000e+00> : vector<4x16x16xf32>
    %121 = tpu.matmul %119, %120, %cst_70 {dimension_numbers = #tpu.dot_dimension_numbers<[2], [2], [1], [1], [0, 0, 0, 1, 1, 1], [0], [0]>} : vector<4x16x8xbf16>, vector<4x16x8xbf16>, vector<4x16x16xf32> -> vector<4x16x16xf32>
    %122 = arith.addf %121, %36 : vector<4x16x16xf32>
    %cst_71 = arith.constant dense<0xFF800000> : vector<4x16xf32>
    %123 = vector.multi_reduction <maximumf>, %122, %cst_71 [2] : vector<4x16x16xf32> to vector<4x16xf32>
    %124 = vector.shape_cast %123 : vector<4x16xf32> to vector<4x16x1xf32>
    %125 = vector.broadcast %124 : vector<4x16x1xf32> to vector<4x16x16xf32>
    %126 = arith.subf %122, %125 : vector<4x16x16xf32>
    %127 = math.exp %126 : vector<4x16x16xf32>
    %cst_72 = arith.constant dense<0.000000e+00> : vector<4x16xf32>
    %128 = vector.multi_reduction <add>, %127, %cst_72 [2] : vector<4x16x16xf32> to vector<4x16xf32>
    %129 = vector.shape_cast %128 : vector<4x16xf32> to vector<4x16x1xf32>
    %130 = tpu.reciprocal %129 {approx = true} : vector<4x16x1xf32> -> vector<4x16x1xf32>
    %131 = vector.broadcast %130 : vector<4x16x1xf32> to vector<4x16x16xf32>
    %132 = arith.mulf %127, %131 : vector<4x16x16xf32>
    %133 = vector.extract_strided_slice %76 {offsets = [0, 0, 16], sizes = [4, 16, 8], strides = [1, 1, 1]} : vector<4x16x32xf32> to vector<4x16x8xf32>
    %134 = arith.truncf %132 : vector<4x16x16xf32> to vector<4x16x16xbf16>
    %135 = arith.truncf %133 : vector<4x16x8xf32> to vector<4x16x8xbf16>
    %cst_73 = arith.constant dense<0.000000e+00> : vector<4x16x8xf32>
    %136 = tpu.matmul %134, %135, %cst_73 {dimension_numbers = #tpu.dot_dimension_numbers<[2], [1], [1], [2], [0, 0, 0, 1, 1, 2], [0], [0]>} : vector<4x16x16xbf16>, vector<4x16x8xbf16>, vector<4x16x8xf32> -> vector<4x16x8xf32>
    %137 = vector.extract_strided_slice %74 {offsets = [0, 0, 24], sizes = [4, 16, 8], strides = [1, 1, 1]} : vector<4x16x32xf32> to vector<4x16x8xf32>
    %138 = vector.extract_strided_slice %75 {offsets = [0, 0, 24], sizes = [4, 16, 8], strides = [1, 1, 1]} : vector<4x16x32xf32> to vector<4x16x8xf32>
    %139 = arith.truncf %137 : vector<4x16x8xf32> to vector<4x16x8xbf16>
    %140 = arith.truncf %138 : vector<4x16x8xf32> to vector<4x16x8xbf16>
    %cst_74 = arith.constant dense<0.000000e+00> : vector<4x16x16xf32>
    %141 = tpu.matmul %139, %140, %cst_74 {dimension_numbers = #tpu.dot_dimension_numbers<[2], [2], [1], [1], [0, 0, 0, 1, 1, 1], [0], [0]>} : vector<4x16x8xbf16>, vector<4x16x8xbf16>, vector<4x16x16xf32> -> vector<4x16x16xf32>
    %142 = arith.addf %141, %36 : vector<4x16x16xf32>
    %cst_75 = arith.constant dense<0xFF800000> : vector<4x16xf32>
    %143 = vector.multi_reduction <maximumf>, %142, %cst_75 [2] : vector<4x16x16xf32> to vector<4x16xf32>
    %144 = vector.shape_cast %143 : vector<4x16xf32> to vector<4x16x1xf32>
    %145 = vector.broadcast %144 : vector<4x16x1xf32> to vector<4x16x16xf32>
    %146 = arith.subf %142, %145 : vector<4x16x16xf32>
    %147 = math.exp %146 : vector<4x16x16xf32>
    %cst_76 = arith.constant dense<0.000000e+00> : vector<4x16xf32>
    %148 = vector.multi_reduction <add>, %147, %cst_76 [2] : vector<4x16x16xf32> to vector<4x16xf32>
    %149 = vector.shape_cast %148 : vector<4x16xf32> to vector<4x16x1xf32>
    %150 = tpu.reciprocal %149 {approx = true} : vector<4x16x1xf32> -> vector<4x16x1xf32>
    %151 = vector.broadcast %150 : vector<4x16x1xf32> to vector<4x16x16xf32>
    %152 = arith.mulf %147, %151 : vector<4x16x16xf32>
    %153 = vector.extract_strided_slice %76 {offsets = [0, 0, 24], sizes = [4, 16, 8], strides = [1, 1, 1]} : vector<4x16x32xf32> to vector<4x16x8xf32>
    %154 = arith.truncf %152 : vector<4x16x16xf32> to vector<4x16x16xbf16>
    %155 = arith.truncf %153 : vector<4x16x8xf32> to vector<4x16x8xbf16>
    %cst_77 = arith.constant dense<0.000000e+00> : vector<4x16x8xf32>
    %156 = tpu.matmul %154, %155, %cst_77 {dimension_numbers = #tpu.dot_dimension_numbers<[2], [1], [1], [2], [0, 0, 0, 1, 1, 2], [0], [0]>} : vector<4x16x16xbf16>, vector<4x16x8xbf16>, vector<4x16x8xf32> -> vector<4x16x8xf32>
    %157 = tpu.concatenate %96, %116, %136, %156 in 2 : vector<4x16x8xf32>, vector<4x16x8xf32>, vector<4x16x8xf32>, vector<4x16x8xf32> -> vector<4x16x32xf32>
    %158 = vector.shape_cast %157 : vector<4x16x32xf32> to vector<64x32xf32>
    %159 = arith.truncf %158 : vector<64x32xf32> to vector<64x32xbf16>
    %cst_78 = arith.constant dense<0.000000e+00> : vector<64x32xf32>
    %160 = tpu.matmul %159, %16, %cst_78 {dimension_numbers = #tpu.dot_dimension_numbers<[1], [0], [0], [1], [0, 0, 1, 1], [], []>} : vector<64x32xbf16>, vector<32x32xbf16>, vector<64x32xf32> -> vector<64x32xf32>
    %161 = arith.addf %37, %160 : vector<64x32xf32>
    %162 = vector.broadcast %18 : vector<1x32xf32> to vector<64x32xf32>
    %163 = arith.addf %161, %162 : vector<64x32xf32>
    %cst_79 = arith.constant dense<0.000000e+00> : vector<64xf32>
    %164 = vector.multi_reduction <add>, %163, %cst_79 [1] : vector<64x32xf32> to vector<64xf32>
    %165 = vector.shape_cast %164 : vector<64xf32> to vector<64x1xf32>
    %cst_80 = arith.constant 3.200000e+01 : f32
    %166 = vector.broadcast %cst_80 : f32 to vector<64x1xf32>
    %167 = arith.divf %165, %166 : vector<64x1xf32>
    %168 = vector.broadcast %167 : vector<64x1xf32> to vector<64x32xf32>
    %169 = arith.subf %163, %168 : vector<64x32xf32>
    %170 = arith.mulf %169, %169 : vector<64x32xf32>
    %cst_81 = arith.constant dense<0.000000e+00> : vector<64xf32>
    %171 = vector.multi_reduction <add>, %170, %cst_81 [1] : vector<64x32xf32> to vector<64xf32>
    %172 = vector.shape_cast %171 : vector<64xf32> to vector<64x1xf32>
    %cst_82 = arith.constant 3.200000e+01 : f32
    %173 = vector.broadcast %cst_82 : f32 to vector<64x1xf32>
    %174 = arith.divf %172, %173 : vector<64x1xf32>
    %175 = vector.broadcast %167 : vector<64x1xf32> to vector<64x32xf32>
    %176 = arith.subf %163, %175 : vector<64x32xf32>
    %cst_83 = arith.constant 9.99999974E-6 : f32
    %177 = vector.broadcast %cst_83 : f32 to vector<64x1xf32>
    %178 = arith.addf %174, %177 : vector<64x1xf32>
    %179 = math.rsqrt %178 : vector<64x1xf32>
    %180 = vector.broadcast %179 : vector<64x1xf32> to vector<64x32xf32>
    %181 = arith.mulf %176, %180 : vector<64x32xf32>
    %182 = vector.broadcast %24 : vector<1x32xf32> to vector<64x32xf32>
    %183 = arith.mulf %181, %182 : vector<64x32xf32>
    %184 = vector.broadcast %26 : vector<1x32xf32> to vector<64x32xf32>
    %185 = arith.addf %183, %184 : vector<64x32xf32>
    %186 = arith.truncf %185 : vector<64x32xf32> to vector<64x32xbf16>
    %cst_84 = arith.constant dense<0.000000e+00> : vector<64x64xf32>
    %187 = tpu.matmul %186, %28, %cst_84 {dimension_numbers = #tpu.dot_dimension_numbers<[1], [0], [0], [1], [0, 0, 1, 1], [], []>} : vector<64x32xbf16>, vector<32x64xbf16>, vector<64x64xf32> -> vector<64x64xf32>
    %188 = vector.broadcast %30 : vector<1x64xf32> to vector<64x64xf32>
    %189 = arith.addf %187, %188 : vector<64x64xf32>
    %cst_85 = arith.constant 1.702000e+00 : f32
    %190 = vector.broadcast %cst_85 : f32 to vector<64x64xf32>
    %191 = arith.mulf %190, %189 : vector<64x64xf32>
    %192 = arith.negf %191 : vector<64x64xf32>
    %193 = math.exp %192 : vector<64x64xf32>
    %cst_86 = arith.constant 1.000000e+00 : f32
    %194 = vector.broadcast %cst_86 : f32 to vector<64x64xf32>
    %195 = arith.addf %194, %193 : vector<64x64xf32>
    %196 = arith.divf %194, %195 : vector<64x64xf32>
    %197 = arith.mulf %189, %196 : vector<64x64xf32>
    %198 = arith.truncf %197 : vector<64x64xf32> to vector<64x64xbf16>
    %cst_87 = arith.constant dense<0.000000e+00> : vector<64x32xf32>
    %199 = tpu.matmul %198, %32, %cst_87 {dimension_numbers = #tpu.dot_dimension_numbers<[1], [0], [0], [1], [0, 0, 1, 1], [], []>} : vector<64x64xbf16>, vector<64x32xbf16>, vector<64x32xf32> -> vector<64x32xf32>
    %200 = vector.broadcast %34 : vector<1x32xf32> to vector<64x32xf32>
    %201 = arith.addf %199, %200 : vector<64x32xf32>
    %202 = arith.addf %163, %201 : vector<64x32xf32>
    %203 = vector.shape_cast %202 : vector<64x32xf32> to vector<4x16x32xf32>
    %c0_88 = arith.constant 0 : index
    %c0_89 = arith.constant 0 : index
    %c0_90 = arith.constant 0 : index
    %204 = vector.load %arg25[%c0_88, %c0_89, %c0_90] : memref<4x16x32xf32, #tpu.memory_space<vmem>>, vector<4x16x32xf32>
    tpu.vector_store %arg25[%c0_88, %c0_89, %c0_90], %203 {strides = array<i32>} : memref<4x16x32xf32, #tpu.memory_space<vmem>>, vector<4x16x32xf32>,
    %c0_91 = arith.constant 0 : index
    %c0_92 = arith.constant 0 : index
    %c0_93 = arith.constant 0 : index
    %205 = vector.load %arg3[%c0_91, %c0_92, %c0_93] : memref<4x1x16xf32, #tpu.memory_space<vmem>>, vector<4x1x16xf32>
    %cst_94 = arith.constant dense<0.000000e+00> : vector<4x1x32xf32>
    %206 = tpu.matmul %205, %203, %cst_94 {dimension_numbers = #tpu.dot_dimension_numbers<[2], [1], [1], [2], [0, 0, 0, 1, 1, 2], [0], [0]>} : vector<4x1x16xf32>, vector<4x16x32xf32>, vector<4x1x32xf32> -> vector<4x1x32xf32>
    %207 = vector.shape_cast %206 : vector<4x1x32xf32> to vector<4x32xf32>
    %208 = arith.mulf %207, %207 : vector<4x32xf32>
    %cst_95 = arith.constant dense<0.000000e+00> : vector<4xf32>
    %209 = vector.multi_reduction <add>, %208, %cst_95 [1] : vector<4x32xf32> to vector<4xf32>
    %210 = vector.shape_cast %209 : vector<4xf32> to vector<4x1xf32>
    %211 = math.sqrt %210 : vector<4x1xf32>
    %cst_96 = arith.constant 9.99999996E-13 : f32
    %212 = vector.broadcast %cst_96 : f32 to vector<4x1xf32>
    %213 = arith.maximumf %211, %212 : vector<4x1xf32>
    %214 = vector.broadcast %213 : vector<4x1xf32> to vector<4x32xf32>
    %215 = arith.divf %207, %214 : vector<4x32xf32>
    %c0_97 = arith.constant 0 : index
    %c0_98 = arith.constant 0 : index
    %c0_99 = arith.constant 0 : index
    %216 = vector.load %arg24[%c0_97, %c0_98, %c0_99] : memref<1x4x32xf32, #tpu.memory_space<vmem>>, vector<1x4x32xf32>
    %217 = vector.shape_cast %216 : vector<1x4x32xf32> to vector<4x32xf32>
    %218 = vector.shape_cast %215 : vector<4x32xf32> to vector<1x4x32xf32>
    tpu.vector_store %arg24[%c0_97, %c0_98, %c0_99], %218 {strides = array<i32>} : memref<1x4x32xf32, #tpu.memory_space<vmem>>, vector<1x4x32xf32>,
    %c1_i32 = arith.constant 1 : i32
    %219 = arith.cmpi eq, %arg0, %c1_i32 : i32
    %220 = arith.extui %219 : i1 to i32
    %c0_i32_100 = arith.constant 0 : i32
    %221 = arith.cmpi ne, %220, %c0_i32_100 : i32
    scf.if %221 {
      %222 = vector.shape_cast %203 : vector<4x16x32xf32> to vector<64x32xf32>
      %c0_101 = arith.constant 0 : index
      %c0_102 = arith.constant 0 : index
      %223 = vector.load %arg20[%c0_101, %c0_102] : memref<1x32xf32, #tpu.memory_space<vmem>>, vector<1x32xf32>
      %c0_103 = arith.constant 0 : index
      %c0_104 = arith.constant 0 : index
      %224 = vector.load %arg21[%c0_103, %c0_104] : memref<1x32xf32, #tpu.memory_space<vmem>>, vector<1x32xf32>
      %cst_105 = arith.constant dense<0.000000e+00> : vector<64xf32>
      %225 = vector.multi_reduction <add>, %222, %cst_105 [1] : vector<64x32xf32> to vector<64xf32>
      %226 = vector.shape_cast %225 : vector<64xf32> to vector<64x1xf32>
      %cst_106 = arith.constant 3.200000e+01 : f32
      %227 = vector.broadcast %cst_106 : f32 to vector<64x1xf32>
      %228 = arith.divf %226, %227 : vector<64x1xf32>
      %229 = vector.broadcast %228 : vector<64x1xf32> to vector<64x32xf32>
      %230 = arith.subf %222, %229 : vector<64x32xf32>
      %231 = arith.mulf %230, %230 : vector<64x32xf32>
      %cst_107 = arith.constant dense<0.000000e+00> : vector<64xf32>
      %232 = vector.multi_reduction <add>, %231, %cst_107 [1] : vector<64x32xf32> to vector<64xf32>
      %233 = vector.shape_cast %232 : vector<64xf32> to vector<64x1xf32>
      %cst_108 = arith.constant 3.200000e+01 : f32
      %234 = vector.broadcast %cst_108 : f32 to vector<64x1xf32>
      %235 = arith.divf %233, %234 : vector<64x1xf32>
      %236 = vector.broadcast %228 : vector<64x1xf32> to vector<64x32xf32>
      %237 = arith.subf %222, %236 : vector<64x32xf32>
      %cst_109 = arith.constant 9.99999974E-6 : f32
      %238 = vector.broadcast %cst_109 : f32 to vector<64x1xf32>
      %239 = arith.addf %235, %238 : vector<64x1xf32>
      %240 = math.rsqrt %239 : vector<64x1xf32>
      %241 = vector.broadcast %240 : vector<64x1xf32> to vector<64x32xf32>
      %242 = arith.mulf %237, %241 : vector<64x32xf32>
      %243 = vector.broadcast %223 : vector<1x32xf32> to vector<64x32xf32>
      %244 = arith.mulf %242, %243 : vector<64x32xf32>
      %245 = vector.broadcast %224 : vector<1x32xf32> to vector<64x32xf32>
      %246 = arith.addf %244, %245 : vector<64x32xf32>
      %247 = vector.shape_cast %246 : vector<64x32xf32> to vector<4x16x32xf32>
      %c0_110 = arith.constant 0 : index
      %c0_111 = arith.constant 0 : index
      %c0_112 = arith.constant 0 : index
      %248 = vector.load %arg3[%c0_110, %c0_111, %c0_112] : memref<4x1x16xf32, #tpu.memory_space<vmem>>, vector<4x1x16xf32>
      %cst_113 = arith.constant dense<0.000000e+00> : vector<4x1x32xf32>
      %249 = tpu.matmul %248, %247, %cst_113 {dimension_numbers = #tpu.dot_dimension_numbers<[2], [1], [1], [2], [0, 0, 0, 1, 1, 2], [0], [0]>} : vector<4x1x16xf32>, vector<4x16x32xf32>, vector<4x1x32xf32> -> vector<4x1x32xf32>
      %250 = vector.shape_cast %249 : vector<4x1x32xf32> to vector<4x32xf32>
      %c0_114 = arith.constant 0 : index
      %c0_115 = arith.constant 0 : index
      %251 = vector.load %arg22[%c0_114, %c0_115] : memref<32x32xbf16, #tpu.memory_space<vmem>>, vector<32x32xbf16>
      %252 = arith.truncf %250 : vector<4x32xf32> to vector<4x32xbf16>
      %cst_116 = arith.constant dense<0.000000e+00> : vector<4x32xf32>
      %253 = tpu.matmul %252, %251, %cst_116 {dimension_numbers = #tpu.dot_dimension_numbers<[1], [0], [0], [1], [0, 0, 1, 1], [], []>} : vector<4x32xbf16>, vector<32x32xbf16>, vector<4x32xf32> -> vector<4x32xf32>
      %254 = arith.mulf %253, %253 : vector<4x32xf32>
      %cst_117 = arith.constant dense<0.000000e+00> : vector<4xf32>
      %255 = vector.multi_reduction <add>, %254, %cst_117 [1] : vector<4x32xf32> to vector<4xf32>
      %256 = vector.shape_cast %255 : vector<4xf32> to vector<4x1xf32>
      %257 = math.sqrt %256 : vector<4x1xf32>
      %cst_118 = arith.constant 9.99999996E-13 : f32
      %258 = vector.broadcast %cst_118 : f32 to vector<4x1xf32>
      %259 = arith.maximumf %257, %258 : vector<4x1xf32>
      %260 = vector.broadcast %259 : vector<4x1xf32> to vector<4x32xf32>
      %261 = arith.divf %253, %260 : vector<4x32xf32>
      %c0_119 = arith.constant 0 : index
      %c0_120 = arith.constant 0 : index
      %262 = vector.load %arg23[%c0_119, %c0_120] : memref<4x32xf32, #tpu.memory_space<vmem>>, vector<4x32xf32>
      tpu.vector_store %arg23[%c0_119, %c0_120], %261 {strides = array<i32>} : memref<4x32xf32, #tpu.memory_space<vmem>>, vector<4x32xf32>,
    } else {
    }
    return
  }
  func.func @transform_0(%arg0: i32) -> (i32, i32, i32) {
    %c0_i32 = arith.constant 0 : i32
    %c0_i32_0 = arith.constant 0 : i32
    %c0_i32_1 = arith.constant 0 : i32
    %c0_i32_2 = arith.constant 0 : i32
    return %c0_i32, %c0_i32_0, %c0_i32_1 : i32, i32, i32
  }
  func.func @transform_1(%arg0: i32) -> (i32, i32, i32) {
    %c0_i32 = arith.constant 0 : i32
    %c0_i32_0 = arith.constant 0 : i32
    %c0_i32_1 = arith.constant 0 : i32
    %c0_i32_2 = arith.constant 0 : i32
    return %c0_i32, %c0_i32_0, %c0_i32_1 : i32, i32, i32
  }
  func.func @transform_2(%arg0: i32) -> (i32, i32, i32) {
    %c0_i32 = arith.constant 0 : i32
    %c0_i32_0 = arith.constant 0 : i32
    %c0_i32_1 = arith.constant 0 : i32
    %c0_i32_2 = arith.constant 0 : i32
    return %c0_i32, %c0_i32_0, %c0_i32_1 : i32, i32, i32
  }
  func.func @transform_3(%arg0: i32) -> (i32, i32, i32) {
    %c0_i32 = arith.constant 0 : i32
    %c0_i32_0 = arith.constant 0 : i32
    %c0_i32_1 = arith.constant 0 : i32
    return %arg0, %c0_i32, %c0_i32_0 : i32, i32, i32
  }
  func.func @transform_4(%arg0: i32) -> (i32, i32, i32) {
    %c0_i32 = arith.constant 0 : i32
    %c0_i32_0 = arith.constant 0 : i32
    %c0_i32_1 = arith.constant 0 : i32
    return %arg0, %c0_i32, %c0_i32_0 : i32, i32, i32
  }
  func.func @transform_5(%arg0: i32) -> (i32, i32, i32) {
    %c0_i32 = arith.constant 0 : i32
    %c0_i32_0 = arith.constant 0 : i32
    %c0_i32_1 = arith.constant 0 : i32
    return %arg0, %c0_i32, %c0_i32_0 : i32, i32, i32
  }
  func.func @transform_6(%arg0: i32) -> (i32, i32, i32) {
    %c0_i32 = arith.constant 0 : i32
    %c0_i32_0 = arith.constant 0 : i32
    %c0_i32_1 = arith.constant 0 : i32
    return %arg0, %c0_i32, %c0_i32_0 : i32, i32, i32
  }
  func.func @transform_7(%arg0: i32) -> (i32, i32, i32) {
    %c0_i32 = arith.constant 0 : i32
    %c0_i32_0 = arith.constant 0 : i32
    %c0_i32_1 = arith.constant 0 : i32
    return %arg0, %c0_i32, %c0_i32_0 : i32, i32, i32
  }
  func.func @transform_8(%arg0: i32) -> (i32, i32, i32) {
    %c0_i32 = arith.constant 0 : i32
    %c0_i32_0 = arith.constant 0 : i32
    %c0_i32_1 = arith.constant 0 : i32
    return %arg0, %c0_i32, %c0_i32_0 : i32, i32, i32
  }
  func.func @transform_9(%arg0: i32) -> (i32, i32, i32) {
    %c0_i32 = arith.constant 0 : i32
    %c0_i32_0 = arith.constant 0 : i32
    %c0_i32_1 = arith.constant 0 : i32
    return %arg0, %c0_i32, %c0_i32_0 : i32, i32, i32
  }
  func.func @transform_10(%arg0: i32) -> (i32, i32, i32) {
    %c0_i32 = arith.constant 0 : i32
    %c0_i32_0 = arith.constant 0 : i32
    %c0_i32_1 = arith.constant 0 : i32
    return %arg0, %c0_i32, %c0_i32_0 : i32, i32, i32
  }
  func.func @transform_11(%arg0: i32) -> (i32, i32, i32) {
    %c0_i32 = arith.constant 0 : i32
    %c0_i32_0 = arith.constant 0 : i32
    %c0_i32_1 = arith.constant 0 : i32
    return %arg0, %c0_i32, %c0_i32_0 : i32, i32, i32
  }
  func.func @transform_12(%arg0: i32) -> (i32, i32, i32) {
    %c0_i32 = arith.constant 0 : i32
    %c0_i32_0 = arith.constant 0 : i32
    %c0_i32_1 = arith.constant 0 : i32
    return %arg0, %c0_i32, %c0_i32_0 : i32, i32, i32
  }
  func.func @transform_13(%arg0: i32) -> (i32, i32, i32) {
    %c0_i32 = arith.constant 0 : i32
    %c0_i32_0 = arith.constant 0 : i32
    %c0_i32_1 = arith.constant 0 : i32
    return %arg0, %c0_i32, %c0_i32_0 : i32, i32, i32
  }
  func.func @transform_14(%arg0: i32) -> (i32, i32, i32) {
    %c0_i32 = arith.constant 0 : i32
    %c0_i32_0 = arith.constant 0 : i32
    %c0_i32_1 = arith.constant 0 : i32
    return %arg0, %c0_i32, %c0_i32_0 : i32, i32, i32
  }
  func.func @transform_15(%arg0: i32) -> (i32, i32, i32) {
    %c0_i32 = arith.constant 0 : i32
    %c0_i32_0 = arith.constant 0 : i32
    %c0_i32_1 = arith.constant 0 : i32
    return %arg0, %c0_i32, %c0_i32_0 : i32, i32, i32
  }
  func.func @transform_16(%arg0: i32) -> (i32, i32, i32) {
    %c0_i32 = arith.constant 0 : i32
    %c0_i32_0 = arith.constant 0 : i32
    %c0_i32_1 = arith.constant 0 : i32
    return %arg0, %c0_i32, %c0_i32_0 : i32, i32, i32
  }
  func.func @transform_17(%arg0: i32) -> (i32, i32, i32) {
    %c0_i32 = arith.constant 0 : i32
    %c0_i32_0 = arith.constant 0 : i32
    %c0_i32_1 = arith.constant 0 : i32
    return %arg0, %c0_i32, %c0_i32_0 : i32, i32, i32
  }
  func.func @transform_18(%arg0: i32) -> (i32, i32, i32) {
    %c0_i32 = arith.constant 0 : i32
    %c0_i32_0 = arith.constant 0 : i32
    %c0_i32_1 = arith.constant 0 : i32
    return %arg0, %c0_i32, %c0_i32_0 : i32, i32, i32
  }
  func.func @transform_19(%arg0: i32) -> (i32, i32) {
    %c0_i32 = arith.constant 0 : i32
    %c0_i32_0 = arith.constant 0 : i32
    %c0_i32_1 = arith.constant 0 : i32
    return %c0_i32, %c0_i32_0 : i32, i32
  }
  func.func @transform_20(%arg0: i32) -> (i32, i32) {
    %c0_i32 = arith.constant 0 : i32
    %c0_i32_0 = arith.constant 0 : i32
    %c0_i32_1 = arith.constant 0 : i32
    return %c0_i32, %c0_i32_0 : i32, i32
  }
  func.func @transform_21(%arg0: i32) -> (i32, i32) {
    %c0_i32 = arith.constant 0 : i32
    %c0_i32_0 = arith.constant 0 : i32
    %c0_i32_1 = arith.constant 0 : i32
    return %c0_i32, %c0_i32_0 : i32, i32
  }
  func.func @transform_22(%arg0: i32) -> (i32, i32) {
    %c0_i32 = arith.constant 0 : i32
    %c0_i32_0 = arith.constant 0 : i32
    %c0_i32_1 = arith.constant 0 : i32
    return %c0_i32, %c0_i32_0 : i32, i32
  }
  func.func @transform_23(%arg0: i32) -> (i32, i32, i32) {
    %c0_i32 = arith.constant 0 : i32
    %c0_i32_0 = arith.constant 0 : i32
    %c0_i32_1 = arith.constant 0 : i32
    return %arg0, %c0_i32, %c0_i32_0 : i32, i32, i32
  }
}

</mosaic_0001>

<llo_original>
// kernel: tpu_custom_call.1
$region0: #{tpu_custom_call.1}
  #allocation0 [shape = 'u32[]', space=smem, size = 0x4, offset = 0x4, fixed_abs, tag = 'smem constant byte address 0x4 - core index']
  #allocation1 [shape = 'u32[144,128]{1,0:T(1,128)}', space=vmem, size = 0x12000, scoped, tag = 'internal scratch']
  #allocation2 [shape = 'f32[4,16,32]{2,1,0:T(8,128)}', space=vmem, size = 0x8000, scoped, tag = 'scratch operand']
  %s0 = inlined_call_operand.vmem [shape: f32[4,16,32], index: 0, kind: input, shape index: {}]
  %s1 = inlined_call_operand.hbm [shape: f32[4,16,16], index: 1, kind: input, shape index: {}]
  %s2 = inlined_call_operand.hbm [shape: f32[4,1,16], index: 2, kind: input, shape index: {}]
  %s3 = inlined_call_operand.vmem [shape: bf16[2,32,32], index: 3, kind: input, shape index: {}]
  %s4 = inlined_call_operand.hbm [shape: f32[2,1,32], index: 4, kind: input, shape index: {}]
  %s5 = inlined_call_operand.hbm [shape: bf16[2,32,32], index: 5, kind: input, shape index: {}]
  %s6 = inlined_call_operand.hbm [shape: f32[2,1,32], index: 6, kind: input, shape index: {}]
  %s7 = inlined_call_operand.hbm [shape: bf16[2,32,32], index: 7, kind: input, shape index: {}]
  %s8 = inlined_call_operand.hbm [shape: f32[2,1,32], index: 8, kind: input, shape index: {}]
  %s9 = inlined_call_operand.vmem [shape: bf16[2,32,32], index: 9, kind: input, shape index: {}]
  %s10 = inlined_call_operand.hbm [shape: f32[2,1,32], index: 10, kind: input, shape index: {}]
  %s11 = inlined_call_operand.hbm [shape: f32[2,1,32], index: 11, kind: input, shape index: {}]
  %s12 = inlined_call_operand.hbm [shape: f32[2,1,32], index: 12, kind: input, shape index: {}]
  %s13 = inlined_call_operand.hbm [shape: f32[2,1,32], index: 13, kind: input, shape index: {}]
  %s14 = inlined_call_operand.hbm [shape: f32[2,1,32], index: 14, kind: input, shape index: {}]
  %s15 = inlined_call_operand.hbm [shape: bf16[2,32,64], index: 15, kind: input, shape index: {}]
  %s16 = inlined_call_operand.hbm [shape: f32[2,1,64], index: 16, kind: input, shape index: {}]
  %s17 = inlined_call_operand.vmem [shape: bf16[2,64,32], index: 17, kind: input, shape index: {}]
  %s18 = inlined_call_operand.vmem [shape: f32[2,1,32], index: 18, kind: input, shape index: {}]
  %s19 = inlined_call_operand.vmem [shape: f32[1,32], index: 19, kind: input, shape index: {}]
  %s20 = inlined_call_operand.vmem [shape: f32[1,32], index: 20, kind: input, shape index: {}]
  %s21 = inlined_call_operand.hbm [shape: bf16[32,32], index: 21, kind: input, shape index: {}]
  %s22 = inlined_call_operand.hbm [shape: f32[4,32], index: 22, kind: output, shape index: {0}]
  %s23 = inlined_call_operand.hbm [shape: f32[2,4,32], index: 23, kind: output, shape index: {1}]
  %24 = xla_tuple %s22, %s23
  %s25 = sld [smem:[#allocation0]]
  $region197: #{tpu_custom_call.1} parent=0
    _
  %s27 = ssub.s32 1, %s25
  %s28 = scalar_select 0, %s27, %s25
  $region1: #{tpu_custom_call.1} parent=0
    #allocation3 [shape = 'u8[32768]{0}', space=vmem, size = 0x8000, scoped, tag = 'input window, operand 1, single buffered']
    #allocation4 [shape = 's32[2]{0}', space=sflag, size = 0x8, scoped, tag = 'scoped memory for tpu_custom_call.1']
    #allocation5 [shape = 's32[2]{0}', space=sflag, size = 0x8, scoped, tag = 'scoped memory for tpu_custom_call.1']
    #allocation6 [shape = 'u8[2048]{0}', space=vmem, size = 0x800, scoped, tag = 'input window, operand 2, single buffered']
    #allocation7 [shape = 's32[1]{0}', space=sflag, size = 0x4, scoped, tag = 'scoped memory for tpu_custom_call.1']
    #allocation8 [shape = 'u8[1024]{0}', space=vmem, size = 0x400, scoped, tag = 'input window, operand 4']
    #allocation9 [shape = 'u8[16384]{0}', space=vmem, size = 0x4000, scoped, tag = 'input window, operand 5']
    #allocation10 [shape = 'u8[1024]{0}', space=vmem, size = 0x400, scoped, tag = 'input window, operand 6']
    #allocation11 [shape = 'u8[16384]{0}', space=vmem, size = 0x4000, scoped, tag = 'input window, operand 7']
    #allocation12 [shape = 'u8[1024]{0}', space=vmem, size = 0x400, scoped, tag = 'input window, operand 8']
    #allocation13 [shape = 'u8[1024]{0}', space=vmem, size = 0x400, scoped, tag = 'input window, operand 10']
    #allocation14 [shape = 'u8[1024]{0}', space=vmem, size = 0x400, scoped, tag = 'input window, operand 11']
    #allocation15 [shape = 'u8[1024]{0}', space=vmem, size = 0x400, scoped, tag = 'input window, operand 12']
    #allocation16 [shape = 'u8[1024]{0}', space=vmem, size = 0x400, scoped, tag = 'input window, operand 13']
    #allocation17 [shape = 'u8[1024]{0}', space=vmem, size = 0x400, scoped, tag = 'input window, operand 14']
    #allocation18 [shape = 'u8[16384]{0}', space=vmem, size = 0x4000, scoped, tag = 'input window, operand 15']
    #allocation19 [shape = 'u8[1024]{0}', space=vmem, size = 0x400, scoped, tag = 'input window, operand 16']
    #allocation20 [shape = 'u8[8192]{0}', space=vmem, size = 0x2000, scoped, tag = 'input window, operand 21, single buffered']
    #allocation21 [shape = 'u8[2048]{0}', space=vmem, size = 0x800, scoped, tag = 'output window, operand 0, single buffered']
    #allocation22 [shape = 'u8[4096]{0}', space=vmem, size = 0x1000, scoped, tag = 'output window, operand 1']
    #allocation23 [shape = 's32[2]{0}', space=sflag, size = 0x8, scoped, tag = 'scoped memory for tpu_custom_call.1']
    %29 = vsyncpa [#allocation4], 0
    %30 = vsyncpa [#allocation7], 0
    %31 = vsyncpa [#allocation5], 0
    %32 = vsyncpa [#allocation23], 0
    %s33 = scalar_lea.sflag [#allocation23], 1
    %34 = vsyncpa %s33, 0
    loop: start=0, step=1, limit=4
    $region2: #{tpu_custom_call.1} parent=1 // loop_pre_header
      _
    $region3: #{tpu_custom_call.1} parent=1 // loop_header
      %s36 = sphi 0, %s40
      %p37 = scmp.ge.s32.totalorder %s36, 4
      %s44 = sphi 0, %s44
      %s46 = sphi 0, %s44
      %s47 = sphi 0, %s46
      %s61 = sphi 0, %s47
      %s65 = sphi 0, %s65
      %s67 = sphi 0, %s65
      %s68 = sphi 0, %s67
      %s82 = sphi 0, %s68
      %s86 = sphi 0, %s86
      %s88 = sphi 0, %s86
      %s89 = sphi 0, %s88
      %s103 = sphi 0, %s89
      %s109 = sphi 0, %s111
      %s112 = sphi 0, %s109
      %s113 = sphi 0, %s112
      %s129 = sphi 0, %s113
      %s135 = sphi 0, %s137
      %s138 = sphi 0, %s135
      %s139 = sphi 0, %s138
      %s155 = sphi 0, %s139
      %s161 = sphi 0, %s163
      %s164 = sphi 0, %s161
      %s165 = sphi 0, %s164
      %s181 = sphi 0, %s165
      %s187 = sphi 0, %s189
      %s190 = sphi 0, %s187
      %s191 = sphi 0, %s190
      %s207 = sphi 0, %s191
      %s213 = sphi 0, %s215
      %s216 = sphi 0, %s213
      %s217 = sphi 0, %s216
      %s233 = sphi 0, %s217
      %s239 = sphi 0, %s241
      %s242 = sphi 0, %s239
      %s243 = sphi 0, %s242
      %s259 = sphi 0, %s243
      %s265 = sphi 0, %s267
      %s268 = sphi 0, %s265
      %s269 = sphi 0, %s268
      %s285 = sphi 0, %s269
      %s291 = sphi 0, %s293
      %s294 = sphi 0, %s291
      %s295 = sphi 0, %s294
      %s311 = sphi 0, %s295
      %s317 = sphi 0, %s319
      %s320 = sphi 0, %s317
      %s321 = sphi 0, %s320
      %s337 = sphi 0, %s321
      %s343 = sphi 0, %s345
      %s346 = sphi 0, %s343
      %s347 = sphi 0, %s346
      %s363 = sphi 0, %s347
      %s369 = sphi 0, %s371
      %s372 = sphi 0, %s369
      %s373 = sphi 0, %s372
      %s389 = sphi 0, %s373
      %s395 = sphi 0, %s397
      %s398 = sphi 0, %s395
      %s399 = sphi 0, %s398
      %s415 = sphi 0, %s399
      %s421 = sphi 0, %s423
      %s424 = sphi 0, %s421
      %s425 = sphi 0, %s424
      %s441 = sphi 0, %s425
      %s447 = sphi 0, %s449
      %s450 = sphi 0, %s447
      %s451 = sphi 0, %s450
      %s467 = sphi 0, %s451
      %s473 = sphi 0, %s475
      %s476 = sphi 0, %s473
      %s477 = sphi 0, %s476
      %s493 = sphi 0, %s477
      %s499 = sphi 0, %s501
      %s502 = sphi 0, %s499
      %s503 = sphi 0, %s502
      %s519 = sphi 0, %s503
      %s523 = sphi 0, %s523
      %s525 = sphi 0, %s523
      %s526 = sphi 0, %s525
      %s540 = sphi 0, %s526
      %s544 = sphi 0, %s544
      %s546 = sphi 0, %s544
      %s547 = sphi 0, %s546
      %s561 = sphi 0, %s547
      %s565 = sphi 0, %s565
      %s567 = sphi 0, %s565
      %s568 = sphi 0, %s567
      %s582 = sphi 0, %s568
      %s586 = sphi 0, %s586
      %s588 = sphi 0, %s586
      %s589 = sphi 0, %s588
      %s603 = sphi 0, %s589
      %s609 = sphi 0, %s611
      %s612 = sphi 0, %s609
      %s613 = sphi 0, %s612
      %s629 = sphi 0, %s613
    $region4: #{tpu_custom_call.1} parent=1 // loop_header_branch
      %39 = sbr.rel (%p37) target = $region8
    $region5: #{tpu_custom_call.1} parent=1 // loop_body
      %s41 = ssub.s32 %s36, 1
      %s42 = ssub.s32 %s36, 2
      %s43 = sadd.s32 %s36, 1
      %s45 = sadd.s32 %s44, 1
      %p48 = scmp.eq.s32.totalorder %s36, 1
      %p49 = scmp.ne.s32.totalorder %s44, %s46
      %p50 = scmp.eq.s32.totalorder %s36, 0
      %p51 = por %p49, %p50
      %p52 = scmp.ne.s32.totalorder %s44, %s46
      %p53 = scmp.eq.s32.totalorder %s41, 1
      %p54 = por %p52, %p53
      %p55 = scmp.ne.s32.totalorder %s46, %s47
      %p56 = scmp.eq.s32.totalorder %s41, 0
      %p57 = por %p55, %p56
      %p58 = scmp.ne.s32.totalorder %s46, %s47
      %p59 = scmp.eq.s32.totalorder %s42, 1
      %p60 = por %p58, %p59
      %p62 = scmp.ne.s32.totalorder %s47, %s61
      %p63 = scmp.eq.s32.totalorder %s42, 0
      %p64 = por %p62, %p63
      %s66 = sadd.s32 %s65, 1
      %p69 = scmp.eq.s32.totalorder %s36, 1
      %p70 = scmp.ne.s32.totalorder %s65, %s67
      %p71 = scmp.eq.s32.totalorder %s36, 0
      %p72 = por %p70, %p71
      %p73 = scmp.ne.s32.totalorder %s65, %s67
      %p74 = scmp.eq.s32.totalorder %s41, 1
      %p75 = por %p73, %p74
      %p76 = scmp.ne.s32.totalorder %s67, %s68
      %p77 = scmp.eq.s32.totalorder %s41, 0
      %p78 = por %p76, %p77
      %p79 = scmp.ne.s32.totalorder %s67, %s68
      %p80 = scmp.eq.s32.totalorder %s42, 1
      %p81 = por %p79, %p80
      %p83 = scmp.ne.s32.totalorder %s68, %s82
      %p84 = scmp.eq.s32.totalorder %s42, 0
      %p85 = por %p83, %p84
      %s87 = sadd.s32 %s86, 1
      %p90 = scmp.eq.s32.totalorder %s36, 1
      %p91 = scmp.ne.s32.totalorder %s86, %s88
      %p92 = scmp.eq.s32.totalorder %s36, 0
      %p93 = por %p91, %p92
      %p94 = scmp.ne.s32.totalorder %s86, %s88
      %p95 = scmp.eq.s32.totalorder %s41, 1
      %p96 = por %p94, %p95
      %p97 = scmp.ne.s32.totalorder %s88, %s89
      %p98 = scmp.eq.s32.totalorder %s41, 0
      %p99 = por %p97, %p98
      %p100 = scmp.ne.s32.totalorder %s88, %s89
      %p101 = scmp.eq.s32.totalorder %s42, 1
      %p102 = por %p100, %p101
      %p104 = scmp.ne.s32.totalorder %s89, %s103
      %p105 = scmp.eq.s32.totalorder %s42, 0
      %p106 = por %p104, %p105
      %s107 = ssub.s32 %s36, %s43
      %p108 = scmp.eq.s32.totalorder %s107, 0
      %s110 = sadd.s32 %s109, 1
      %s111 = scalar_select %p108, %s109, %s110
      %p114 = pneg %p108
      %p115 = scmp.eq.s32.totalorder %s36, 1
      %p116 = por %p114, %p115
      %p117 = scmp.ne.s32.totalorder %s109, %s112
      %p118 = scmp.eq.s32.totalorder %s36, 0
      %p119 = por %p117, %p118
      %p120 = scmp.ne.s32.totalorder %s109, %s112
      %p121 = scmp.eq.s32.totalorder %s41, 1
      %p122 = por %p120, %p121
      %p123 = scmp.ne.s32.totalorder %s112, %s113
      %p124 = scmp.eq.s32.totalorder %s41, 0
      %p125 = por %p123, %p124
      %p126 = scmp.ne.s32.totalorder %s112, %s113
      %p127 = scmp.eq.s32.totalorder %s42, 1
      %p128 = por %p126, %p127
      %p130 = scmp.ne.s32.totalorder %s113, %s129
      %p131 = scmp.eq.s32.totalorder %s42, 0
      %p132 = por %p130, %p131
      %s133 = ssub.s32 %s36, %s43
      %p134 = scmp.eq.s32.totalorder %s133, 0
      %s136 = sadd.s32 %s135, 1
      %s137 = scalar_select %p134, %s135, %s136
      %p140 = pneg %p134
      %p141 = scmp.eq.s32.totalorder %s36, 1
      %p142 = por %p140, %p141
      %p143 = scmp.ne.s32.totalorder %s135, %s138
      %p144 = scmp.eq.s32.totalorder %s36, 0
      %p145 = por %p143, %p144
      %p146 = scmp.ne.s32.totalorder %s135, %s138
      %p147 = scmp.eq.s32.totalorder %s41, 1
      %p148 = por %p146, %p147
      %p149 = scmp.ne.s32.totalorder %s138, %s139
      %p150 = scmp.eq.s32.totalorder %s41, 0
      %p151 = por %p149, %p150
      %p152 = scmp.ne.s32.totalorder %s138, %s139
      %p153 = scmp.eq.s32.totalorder %s42, 1
      %p154 = por %p152, %p153
      %p156 = scmp.ne.s32.totalorder %s139, %s155
      %p157 = scmp.eq.s32.totalorder %s42, 0
      %p158 = por %p156, %p157
      %s159 = ssub.s32 %s36, %s43
      %p160 = scmp.eq.s32.totalorder %s159, 0
      %s162 = sadd.s32 %s161, 1
      %s163 = scalar_select %p160, %s161, %s162
      %p166 = pneg %p160
      %p167 = scmp.eq.s32.totalorder %s36, 1
      %p168 = por %p166, %p167
      %p169 = scmp.ne.s32.totalorder %s161, %s164
      %p170 = scmp.eq.s32.totalorder %s36, 0
      %p171 = por %p169, %p170
      %p172 = scmp.ne.s32.totalorder %s161, %s164
      %p173 = scmp.eq.s32.totalorder %s41, 1
      %p174 = por %p172, %p173
      %p175 = scmp.ne.s32.totalorder %s164, %s165
      %p176 = scmp.eq.s32.totalorder %s41, 0
      %p177 = por %p175, %p176
      %p178 = scmp.ne.s32.totalorder %s164, %s165
      %p179 = scmp.eq.s32.totalorder %s42, 1
      %p180 = por %p178, %p179
      %p182 = scmp.ne.s32.totalorder %s165, %s181
      %p183 = scmp.eq.s32.totalorder %s42, 0
      %p184 = por %p182, %p183
      %s185 = ssub.s32 %s36, %s43
      %p186 = scmp.eq.s32.totalorder %s185, 0
      %s188 = sadd.s32 %s187, 1
      %s189 = scalar_select %p186, %s187, %s188
      %p192 = pneg %p186
      %p193 = scmp.eq.s32.totalorder %s36, 1
      %p194 = por %p192, %p193
      %p195 = scmp.ne.s32.totalorder %s187, %s190
      %p196 = scmp.eq.s32.totalorder %s36, 0
      %p197 = por %p195, %p196
      %p198 = scmp.ne.s32.totalorder %s187, %s190
      %p199 = scmp.eq.s32.totalorder %s41, 1
      %p200 = por %p198, %p199
      %p201 = scmp.ne.s32.totalorder %s190, %s191
      %p202 = scmp.eq.s32.totalorder %s41, 0
      %p203 = por %p201, %p202
      %p204 = scmp.ne.s32.totalorder %s190, %s191
      %p205 = scmp.eq.s32.totalorder %s42, 1
      %p206 = por %p204, %p205
      %p208 = scmp.ne.s32.totalorder %s191, %s207
      %p209 = scmp.eq.s32.totalorder %s42, 0
      %p210 = por %p208, %p209
      %s211 = ssub.s32 %s36, %s43
      %p212 = scmp.eq.s32.totalorder %s211, 0
      %s214 = sadd.s32 %s213, 1
      %s215 = scalar_select %p212, %s213, %s214
      %p218 = pneg %p212
      %p219 = scmp.eq.s32.totalorder %s36, 1
      %p220 = por %p218, %p219
      %p221 = scmp.ne.s32.totalorder %s213, %s216
      %p222 = scmp.eq.s32.totalorder %s36, 0
      %p223 = por %p221, %p222
      %p224 = scmp.ne.s32.totalorder %s213, %s216
      %p225 = scmp.eq.s32.totalorder %s41, 1
      %p226 = por %p224, %p225
      %p227 = scmp.ne.s32.totalorder %s216, %s217
      %p228 = scmp.eq.s32.totalorder %s41, 0
      %p229 = por %p227, %p228
      %p230 = scmp.ne.s32.totalorder %s216, %s217
      %p231 = scmp.eq.s32.totalorder %s42, 1
      %p232 = por %p230, %p231
      %p234 = scmp.ne.s32.totalorder %s217, %s233
      %p235 = scmp.eq.s32.totalorder %s42, 0
      %p236 = por %p234, %p235
      %s237 = ssub.s32 %s36, %s43
      %p238 = scmp.eq.s32.totalorder %s237, 0
      %s240 = sadd.s32 %s239, 1
      %s241 = scalar_select %p238, %s239, %s240
      %p244 = pneg %p238
      %p245 = scmp.eq.s32.totalorder %s36, 1
      %p246 = por %p244, %p245
      %p247 = scmp.ne.s32.totalorder %s239, %s242
      %p248 = scmp.eq.s32.totalorder %s36, 0
      %p249 = por %p247, %p248
      %p250 = scmp.ne.s32.totalorder %s239, %s242
      %p251 = scmp.eq.s32.totalorder %s41, 1
      %p252 = por %p250, %p251
      %p253 = scmp.ne.s32.totalorder %s242, %s243
      %p254 = scmp.eq.s32.totalorder %s41, 0
      %p255 = por %p253, %p254
      %p256 = scmp.ne.s32.totalorder %s242, %s243
      %p257 = scmp.eq.s32.totalorder %s42, 1
      %p258 = por %p256, %p257
      %p260 = scmp.ne.s32.totalorder %s243, %s259
      %p261 = scmp.eq.s32.totalorder %s42, 0
      %p262 = por %p260, %p261
      %s263 = ssub.s32 %s36, %s43
      %p264 = scmp.eq.s32.totalorder %s263, 0
      %s266 = sadd.s32 %s265, 1
      %s267 = scalar_select %p264, %s265, %s266
      %p270 = pneg %p264
      %p271 = scmp.eq.s32.totalorder %s36, 1
      %p272 = por %p270, %p271
      %p273 = scmp.ne.s32.totalorder %s265, %s268
      %p274 = scmp.eq.s32.totalorder %s36, 0
      %p275 = por %p273, %p274
      %p276 = scmp.ne.s32.totalorder %s265, %s268
      %p277 = scmp.eq.s32.totalorder %s41, 1
      %p278 = por %p276, %p277
      %p279 = scmp.ne.s32.totalorder %s268, %s269
      %p280 = scmp.eq.s32.totalorder %s41, 0
      %p281 = por %p279, %p280
      %p282 = scmp.ne.s32.totalorder %s268, %s269
      %p283 = scmp.eq.s32.totalorder %s42, 1
      %p284 = por %p282, %p283
      %p286 = scmp.ne.s32.totalorder %s269, %s285
      %p287 = scmp.eq.s32.totalorder %s42, 0
      %p288 = por %p286, %p287
      %s289 = ssub.s32 %s36, %s43
      %p290 = scmp.eq.s32.totalorder %s289, 0
      %s292 = sadd.s32 %s291, 1
      %s293 = scalar_select %p290, %s291, %s292
      %p296 = pneg %p290
      %p297 = scmp.eq.s32.totalorder %s36, 1
      %p298 = por %p296, %p297
      %p299 = scmp.ne.s32.totalorder %s291, %s294
      %p300 = scmp.eq.s32.totalorder %s36, 0
      %p301 = por %p299, %p300
      %p302 = scmp.ne.s32.totalorder %s291, %s294
      %p303 = scmp.eq.s32.totalorder %s41, 1
      %p304 = por %p302, %p303
      %p305 = scmp.ne.s32.totalorder %s294, %s295
      %p306 = scmp.eq.s32.totalorder %s41, 0
      %p307 = por %p305, %p306
      %p308 = scmp.ne.s32.totalorder %s294, %s295
      %p309 = scmp.eq.s32.totalorder %s42, 1
      %p310 = por %p308, %p309
      %p312 = scmp.ne.s32.totalorder %s295, %s311
      %p313 = scmp.eq.s32.totalorder %s42, 0
      %p314 = por %p312, %p313
      %s315 = ssub.s32 %s36, %s43
      %p316 = scmp.eq.s32.totalorder %s315, 0
      %s318 = sadd.s32 %s317, 1
      %s319 = scalar_select %p316, %s317, %s318
      %p322 = pneg %p316
      %p323 = scmp.eq.s32.totalorder %s36, 1
      %p324 = por %p322, %p323
      %p325 = scmp.ne.s32.totalorder %s317, %s320
      %p326 = scmp.eq.s32.totalorder %s36, 0
      %p327 = por %p325, %p326
      %p328 = scmp.ne.s32.totalorder %s317, %s320
      %p329 = scmp.eq.s32.totalorder %s41, 1
      %p330 = por %p328, %p329
      %p331 = scmp.ne.s32.totalorder %s320, %s321
      %p332 = scmp.eq.s32.totalorder %s41, 0
      %p333 = por %p331, %p332
      %p334 = scmp.ne.s32.totalorder %s320, %s321
      %p335 = scmp.eq.s32.totalorder %s42, 1
      %p336 = por %p334, %p335
      %p338 = scmp.ne.s32.totalorder %s321, %s337
      %p339 = scmp.eq.s32.totalorder %s42, 0
      %p340 = por %p338, %p339
      %s341 = ssub.s32 %s36, %s43
      %p342 = scmp.eq.s32.totalorder %s341, 0
      %s344 = sadd.s32 %s343, 1
      %s345 = scalar_select %p342, %s343, %s344
      %p348 = pneg %p342
      %p349 = scmp.eq.s32.totalorder %s36, 1
      %p350 = por %p348, %p349
      %p351 = scmp.ne.s32.totalorder %s343, %s346
      %p352 = scmp.eq.s32.totalorder %s36, 0
      %p353 = por %p351, %p352
      %p354 = scmp.ne.s32.totalorder %s343, %s346
      %p355 = scmp.eq.s32.totalorder %s41, 1
      %p356 = por %p354, %p355
      %p357 = scmp.ne.s32.totalorder %s346, %s347
      %p358 = scmp.eq.s32.totalorder %s41, 0
      %p359 = por %p357, %p358
      %p360 = scmp.ne.s32.totalorder %s346, %s347
      %p361 = scmp.eq.s32.totalorder %s42, 1
      %p362 = por %p360, %p361
      %p364 = scmp.ne.s32.totalorder %s347, %s363
      %p365 = scmp.eq.s32.totalorder %s42, 0
      %p366 = por %p364, %p365
      %s367 = ssub.s32 %s36, %s43
      %p368 = scmp.eq.s32.totalorder %s367, 0
      %s370 = sadd.s32 %s369, 1
      %s371 = scalar_select %p368, %s369, %s370
      %p374 = pneg %p368
      %p375 = scmp.eq.s32.totalorder %s36, 1
      %p376 = por %p374, %p375
      %p377 = scmp.ne.s32.totalorder %s369, %s372
      %p378 = scmp.eq.s32.totalorder %s36, 0
      %p379 = por %p377, %p378
      %p380 = scmp.ne.s32.totalorder %s369, %s372
      %p381 = scmp.eq.s32.totalorder %s41, 1
      %p382 = por %p380, %p381
      %p383 = scmp.ne.s32.totalorder %s372, %s373
      %p384 = scmp.eq.s32.totalorder %s41, 0
      %p385 = por %p383, %p384
      %p386 = scmp.ne.s32.totalorder %s372, %s373
      %p387 = scmp.eq.s32.totalorder %s42, 1
      %p388 = por %p386, %p387
      %p390 = scmp.ne.s32.totalorder %s373, %s389
      %p391 = scmp.eq.s32.totalorder %s42, 0
      %p392 = por %p390, %p391
      %s393 = ssub.s32 %s36, %s43
      %p394 = scmp.eq.s32.totalorder %s393, 0
      %s396 = sadd.s32 %s395, 1
      %s397 = scalar_select %p394, %s395, %s396
      %p400 = pneg %p394
      %p401 = scmp.eq.s32.totalorder %s36, 1
      %p402 = por %p400, %p401
      %p403 = scmp.ne.s32.totalorder %s395, %s398
      %p404 = scmp.eq.s32.totalorder %s36, 0
      %p405 = por %p403, %p404
      %p406 = scmp.ne.s32.totalorder %s395, %s398
      %p407 = scmp.eq.s32.totalorder %s41, 1
      %p408 = por %p406, %p407
      %p409 = scmp.ne.s32.totalorder %s398, %s399
      %p410 = scmp.eq.s32.totalorder %s41, 0
      %p411 = por %p409, %p410
      %p412 = scmp.ne.s32.totalorder %s398, %s399
      %p413 = scmp.eq.s32.totalorder %s42, 1
      %p414 = por %p412, %p413
      %p416 = scmp.ne.s32.totalorder %s399, %s415
      %p417 = scmp.eq.s32.totalorder %s42, 0
      %p418 = por %p416, %p417
      %s419 = ssub.s32 %s36, %s43
      %p420 = scmp.eq.s32.totalorder %s419, 0
      %s422 = sadd.s32 %s421, 1
      %s423 = scalar_select %p420, %s421, %s422
      %p426 = pneg %p420
      %p427 = scmp.eq.s32.totalorder %s36, 1
      %p428 = por %p426, %p427
      %p429 = scmp.ne.s32.totalorder %s421, %s424
      %p430 = scmp.eq.s32.totalorder %s36, 0
      %p431 = por %p429, %p430
      %p432 = scmp.ne.s32.totalorder %s421, %s424
      %p433 = scmp.eq.s32.totalorder %s41, 1
      %p434 = por %p432, %p433
      %p435 = scmp.ne.s32.totalorder %s424, %s425
      %p436 = scmp.eq.s32.totalorder %s41, 0
      %p437 = por %p435, %p436
      %p438 = scmp.ne.s32.totalorder %s424, %s425
      %p439 = scmp.eq.s32.totalorder %s42, 1
      %p440 = por %p438, %p439
      %p442 = scmp.ne.s32.totalorder %s425, %s441
      %p443 = scmp.eq.s32.totalorder %s42, 0
      %p444 = por %p442, %p443
      %s445 = ssub.s32 %s36, %s43
      %p446 = scmp.eq.s32.totalorder %s445, 0
      %s448 = sadd.s32 %s447, 1
      %s449 = scalar_select %p446, %s447, %s448
      %p452 = pneg %p446
      %p453 = scmp.eq.s32.totalorder %s36, 1
      %p454 = por %p452, %p453
      %p455 = scmp.ne.s32.totalorder %s447, %s450
      %p456 = scmp.eq.s32.totalorder %s36, 0
      %p457 = por %p455, %p456
      %p458 = scmp.ne.s32.totalorder %s447, %s450
      %p459 = scmp.eq.s32.totalorder %s41, 1
      %p460 = por %p458, %p459
      %p461 = scmp.ne.s32.totalorder %s450, %s451
      %p462 = scmp.eq.s32.totalorder %s41, 0
      %p463 = por %p461, %p462
      %p464 = scmp.ne.s32.totalorder %s450, %s451
      %p465 = scmp.eq.s32.totalorder %s42, 1
      %p466 = por %p464, %p465
      %p468 = scmp.ne.s32.totalorder %s451, %s467
      %p469 = scmp.eq.s32.totalorder %s42, 0
      %p470 = por %p468, %p469
      %s471 = ssub.s32 %s36, %s43
      %p472 = scmp.eq.s32.totalorder %s471, 0
      %s474 = sadd.s32 %s473, 1
      %s475 = scalar_select %p472, %s473, %s474
      %p478 = pneg %p472
      %p479 = scmp.eq.s32.totalorder %s36, 1
      %p480 = por %p478, %p479
      %p481 = scmp.ne.s32.totalorder %s473, %s476
      %p482 = scmp.eq.s32.totalorder %s36, 0
      %p483 = por %p481, %p482
      %p484 = scmp.ne.s32.totalorder %s473, %s476
      %p485 = scmp.eq.s32.totalorder %s41, 1
      %p486 = por %p484, %p485
      %p487 = scmp.ne.s32.totalorder %s476, %s477
      %p488 = scmp.eq.s32.totalorder %s41, 0
      %p489 = por %p487, %p488
      %p490 = scmp.ne.s32.totalorder %s476, %s477
      %p491 = scmp.eq.s32.totalorder %s42, 1
      %p492 = por %p490, %p491
      %p494 = scmp.ne.s32.totalorder %s477, %s493
      %p495 = scmp.eq.s32.totalorder %s42, 0
      %p496 = por %p494, %p495
      %s497 = ssub.s32 %s36, %s43
      %p498 = scmp.eq.s32.totalorder %s497, 0
      %s500 = sadd.s32 %s499, 1
      %s501 = scalar_select %p498, %s499, %s500
      %p504 = pneg %p498
      %p505 = scmp.eq.s32.totalorder %s36, 1
      %p506 = por %p504, %p505
      %p507 = scmp.ne.s32.totalorder %s499, %s502
      %p508 = scmp.eq.s32.totalorder %s36, 0
      %p509 = por %p507, %p508
      %p510 = scmp.ne.s32.totalorder %s499, %s502
      %p511 = scmp.eq.s32.totalorder %s41, 1
      %p512 = por %p510, %p511
      %p513 = scmp.ne.s32.totalorder %s502, %s503
      %p514 = scmp.eq.s32.totalorder %s41, 0
      %p515 = por %p513, %p514
      %p516 = scmp.ne.s32.totalorder %s502, %s503
      %p517 = scmp.eq.s32.totalorder %s42, 1
      %p518 = por %p516, %p517
      %p520 = scmp.ne.s32.totalorder %s503, %s519
      %p521 = scmp.eq.s32.totalorder %s42, 0
      %p522 = por %p520, %p521
      %s524 = sadd.s32 %s523, 1
      %p527 = scmp.eq.s32.totalorder %s36, 1
      %p528 = scmp.ne.s32.totalorder %s523, %s525
      %p529 = scmp.eq.s32.totalorder %s36, 0
      %p530 = por %p528, %p529
      %p531 = scmp.ne.s32.totalorder %s523, %s525
      %p532 = scmp.eq.s32.totalorder %s41, 1
      %p533 = por %p531, %p532
      %p534 = scmp.ne.s32.totalorder %s525, %s526
      %p535 = scmp.eq.s32.totalorder %s41, 0
      %p536 = por %p534, %p535
      %p537 = scmp.ne.s32.totalorder %s525, %s526
      %p538 = scmp.eq.s32.totalorder %s42, 1
      %p539 = por %p537, %p538
      %p541 = scmp.ne.s32.totalorder %s526, %s540
      %p542 = scmp.eq.s32.totalorder %s42, 0
      %p543 = por %p541, %p542
      %s545 = sadd.s32 %s544, 1
      %p548 = scmp.eq.s32.totalorder %s36, 1
      %p549 = scmp.ne.s32.totalorder %s544, %s546
      %p550 = scmp.eq.s32.totalorder %s36, 0
      %p551 = por %p549, %p550
      %p552 = scmp.ne.s32.totalorder %s544, %s546
      %p553 = scmp.eq.s32.totalorder %s41, 1
      %p554 = por %p552, %p553
      %p555 = scmp.ne.s32.totalorder %s546, %s547
      %p556 = scmp.eq.s32.totalorder %s41, 0
      %p557 = por %p555, %p556
      %p558 = scmp.ne.s32.totalorder %s546, %s547
      %p559 = scmp.eq.s32.totalorder %s42, 1
      %p560 = por %p558, %p559
      %p562 = scmp.ne.s32.totalorder %s547, %s561
      %p563 = scmp.eq.s32.totalorder %s42, 0
      %p564 = por %p562, %p563
      %s566 = sadd.s32 %s565, 1
      %p569 = scmp.eq.s32.totalorder %s36, 1
      %p570 = scmp.ne.s32.totalorder %s565, %s567
      %p571 = scmp.eq.s32.totalorder %s36, 0
      %p572 = por %p570, %p571
      %p573 = scmp.ne.s32.totalorder %s565, %s567
      %p574 = scmp.eq.s32.totalorder %s41, 1
      %p575 = por %p573, %p574
      %p576 = scmp.ne.s32.totalorder %s567, %s568
      %p577 = scmp.eq.s32.totalorder %s41, 0
      %p578 = por %p576, %p577
      %p579 = scmp.ne.s32.totalorder %s567, %s568
      %p580 = scmp.eq.s32.totalorder %s42, 1
      %p581 = por %p579, %p580
      %p583 = scmp.ne.s32.totalorder %s568, %s582
      %p584 = scmp.eq.s32.totalorder %s42, 0
      %p585 = por %p583, %p584
      %s587 = sadd.s32 %s586, 1
      %p590 = scmp.eq.s32.totalorder %s36, 1
      %p591 = scmp.ne.s32.totalorder %s586, %s588
      %p592 = scmp.eq.s32.totalorder %s36, 0
      %p593 = por %p591, %p592
      %p594 = scmp.ne.s32.totalorder %s586, %s588
      %p595 = scmp.eq.s32.totalorder %s41, 1
      %p596 = por %p594, %p595
      %p597 = scmp.ne.s32.totalorder %s588, %s589
      %p598 = scmp.eq.s32.totalorder %s41, 0
      %p599 = por %p597, %p598
      %p600 = scmp.ne.s32.totalorder %s588, %s589
      %p601 = scmp.eq.s32.totalorder %s42, 1
      %p602 = por %p600, %p601
      %p604 = scmp.ne.s32.totalorder %s589, %s603
      %p605 = scmp.eq.s32.totalorder %s42, 0
      %p606 = por %p604, %p605
      %s607 = ssub.s32 %s36, %s43
      %p608 = scmp.eq.s32.totalorder %s607, 0
      %s610 = sadd.s32 %s609, 1
      %s611 = scalar_select %p608, %s609, %s610
      %p614 = pneg %p608
      %p615 = scmp.eq.s32.totalorder %s36, 1
      %p616 = por %p614, %p615
      %p617 = scmp.ne.s32.totalorder %s609, %s612
      %p618 = scmp.eq.s32.totalorder %s36, 0
      %p619 = por %p617, %p618
      %p620 = scmp.ne.s32.totalorder %s609, %s612
      %p621 = scmp.eq.s32.totalorder %s41, 1
      %p622 = por %p620, %p621
      %p623 = scmp.ne.s32.totalorder %s612, %s613
      %p624 = scmp.eq.s32.totalorder %s41, 0
      %p625 = por %p623, %p624
      %p626 = scmp.ne.s32.totalorder %s612, %s613
      %p627 = scmp.eq.s32.totalorder %s42, 1
      %p628 = por %p626, %p627
      %p630 = scmp.ne.s32.totalorder %s613, %s629
      %p631 = scmp.eq.s32.totalorder %s42, 0
      %p632 = por %p630, %p631
      %p633 = scmp.le.s32.totalorder 1, %s36
      %p634 = scmp.lt.s32.totalorder %s36, 3
      %p635 = pnand %p633, %p634
      %p636 = pneg %p635
      // Predicated region
      $region9: #{tpu_custom_call.1} parent=5 // pred_check
        _
      $region10: #{tpu_custom_call.1} parent=5 // pred_check_branch
        %638 = sbr.rel (%p635) target = $region12
      $region11: #{tpu_custom_call.1} parent=5 // pred_region
        %s639 = ssub.s32 %s36, 1
        // Predicated region
        $region13: #{tpu_custom_call.1} parent=11 // pred_check
          %p640 = pneg %p57
        $region14: #{tpu_custom_call.1} parent=11 // pred_check_branch
          %642 = sbr.rel (%p640) target = $region16
        $region15: #{tpu_custom_call.1} parent=11 // pred_region
          _
        $region16: #{tpu_custom_call.1} parent=11 // pred_fallthru
          _
        // Predicated region
        $region17: #{tpu_custom_call.1} parent=11 // pred_check
          %p643 = pneg %p78
        $region18: #{tpu_custom_call.1} parent=11 // pred_check_branch
          %645 = sbr.rel (%p643) target = $region20
        $region19: #{tpu_custom_call.1} parent=11 // pred_region
          %s647 = ssub.s32 1024, 1024
          %648 = vsyncadd [#allocation4], %s647
          %s649 = sshll.u32 [#allocation3], 4
          %s650 = int_to_ptr.vmem [resolvable:$true] %s649
          %655 = dma.hbm_to_vmem [thread:$0]  %s1, 1024, %s650, [#allocation4], 128, 128, 8
        $region20: #{tpu_custom_call.1} parent=11 // pred_fallthru
          _
        // Predicated region
        $region21: #{tpu_custom_call.1} parent=11 // pred_check
          %p656 = pneg %p99
        $region22: #{tpu_custom_call.1} parent=11 // pred_check_branch
          %658 = sbr.rel (%p656) target = $region24
        $region23: #{tpu_custom_call.1} parent=11 // pred_region
          %s660 = ssub.s32 64, 64
          %661 = vsyncadd [#allocation7], %s660
          %s662 = sshll.u32 [#allocation6], 4
          %s663 = int_to_ptr.vmem [resolvable:$true] %s662
          %668 = dma.hbm_to_vmem [thread:$0]  %s2, 64, %s663, [#allocation7], 16, 16, 1
        $region24: #{tpu_custom_call.1} parent=11 // pred_fallthru
          _
        // Predicated region
        $region25: #{tpu_custom_call.1} parent=11 // pred_check
          %p669 = pneg %p536
        $region26: #{tpu_custom_call.1} parent=11 // pred_check_branch
          %671 = sbr.rel (%p669) target = $region28
        $region27: #{tpu_custom_call.1} parent=11 // pred_region
          _
        $region28: #{tpu_custom_call.1} parent=11 // pred_fallthru
          _
        // Predicated region
        $region29: #{tpu_custom_call.1} parent=11 // pred_check
          %p672 = pneg %p557
        $region30: #{tpu_custom_call.1} parent=11 // pred_check_branch
          %674 = sbr.rel (%p672) target = $region32
        $region31: #{tpu_custom_call.1} parent=11 // pred_region
          _
        $region32: #{tpu_custom_call.1} parent=11 // pred_fallthru
          _
        // Predicated region
        $region33: #{tpu_custom_call.1} parent=11 // pred_check
          %p675 = pneg %p578
        $region34: #{tpu_custom_call.1} parent=11 // pred_check_branch
          %677 = sbr.rel (%p675) target = $region36
        $region35: #{tpu_custom_call.1} parent=11 // pred_region
          %s679 = ssub.s32 256, 256
          %680 = vsyncadd [#allocation7], %s679
          %s681 = sshll.u32 [#allocation20], 4
          %s682 = int_to_ptr.vmem [resolvable:$true] %s681
          %687 = dma.hbm_to_vmem [thread:$0]  %s21, 256, %s682, [#allocation7], 64, 64, 4
        $region36: #{tpu_custom_call.1} parent=11 // pred_fallthru
          _
      $region12: #{tpu_custom_call.1} parent=5 // pred_fallthru
        _
      %p688 = scmp.lt.s32.totalorder %s36, 2
      // Predicated region
      $region37: #{tpu_custom_call.1} parent=5 // pred_check
        %p689 = pneg %p688
      $region38: #{tpu_custom_call.1} parent=5 // pred_check_branch
        %691 = sbr.rel (%p689) target = $region40
      $region39: #{tpu_custom_call.1} parent=5 // pred_region
        // Predicated region
        $region41: #{tpu_custom_call.1} parent=39 // pred_check
          %p692 = pneg %p119
        $region42: #{tpu_custom_call.1} parent=39 // pred_check_branch
          %694 = sbr.rel (%p692) target = $region44
        $region43: #{tpu_custom_call.1} parent=39 // pred_region
          %p695 = scmp.lt.s32.totalorder %s36, 1
          %s696 = scalar_select %p695, %s36, 1
          %s697 = smul.addr %s696, 4
          %s698 = smul.addr %s697, 4
          %s699 = scalar_lea.vmem %s3, %s698
        $region44: #{tpu_custom_call.1} parent=39 // pred_fallthru
          _
        // Predicated region
        $region45: #{tpu_custom_call.1} parent=39 // pred_check
          %p700 = pneg %p145
        $region46: #{tpu_custom_call.1} parent=39 // pred_check_branch
          %702 = sbr.rel (%p700) target = $region48
        $region47: #{tpu_custom_call.1} parent=39 // pred_region
          %s703 = sand.u32 %s36, 1
          %s704 = scalar_lea.sflag [#allocation4], %s703
          %s705 = sand.u32 %s135, 1
          %s706 = scalar_lea.vmem [#allocation8], %s705
          %s708 = ssub.s32 16, 16
          %709 = vsyncadd %s704, %s708
          %s710 = smul.addr %s36, 16
          %s711 = scalar_lea.hbm %s4, %s710
          %s713 = sshll.u32 %s706, 4
          %s714 = int_to_ptr.vmem [resolvable:$true] %s713
          %716 = dma.hbm_to_vmem [thread:$0]  %s711, 16, %s714, %s704
        $region48: #{tpu_custom_call.1} parent=39 // pred_fallthru
          _
        // Predicated region
        $region49: #{tpu_custom_call.1} parent=39 // pred_check
          %p717 = pneg %p171
        $region50: #{tpu_custom_call.1} parent=39 // pred_check_branch
          %719 = sbr.rel (%p717) target = $region52
        $region51: #{tpu_custom_call.1} parent=39 // pred_region
          %s720 = sand.u32 %s36, 1
          %s721 = scalar_lea.sflag [#allocation4], %s720
          %s722 = sand.u32 %s161, 1
          %s723 = smul.addr %s722, 16
          %s724 = scalar_lea.vmem [#allocation9], %s723
          %s726 = ssub.s32 256, 256
          %727 = vsyncadd %s721, %s726
          %s728 = smul.addr %s36, 4
          %s729 = smul.addr %s728, 64
          %s730 = scalar_lea.hbm %s5, %s729
          %s731 = sshll.u32 %s724, 4
          %s732 = int_to_ptr.vmem [resolvable:$true] %s731
          %737 = dma.hbm_to_vmem [thread:$0]  %s730, 256, %s732, %s721, 64, 64, 4
        $region52: #{tpu_custom_call.1} parent=39 // pred_fallthru
          _
        // Predicated region
        $region53: #{tpu_custom_call.1} parent=39 // pred_check
          %p738 = pneg %p197
        $region54: #{tpu_custom_call.1} parent=39 // pred_check_branch
          %740 = sbr.rel (%p738) target = $region56
        $region55: #{tpu_custom_call.1} parent=39 // pred_region
          %s741 = sand.u32 %s36, 1
          %s742 = scalar_lea.sflag [#allocation4], %s741
          %s743 = sand.u32 %s187, 1
          %s744 = scalar_lea.vmem [#allocation10], %s743
          %s746 = ssub.s32 16, 16
          %747 = vsyncadd %s742, %s746
          %s748 = smul.addr %s36, 16
          %s749 = scalar_lea.hbm %s6, %s748
          %s751 = sshll.u32 %s744, 4
          %s752 = int_to_ptr.vmem [resolvable:$true] %s751
          %754 = dma.hbm_to_vmem [thread:$0]  %s749, 16, %s752, %s742
        $region56: #{tpu_custom_call.1} parent=39 // pred_fallthru
          _
        // Predicated region
        $region57: #{tpu_custom_call.1} parent=39 // pred_check
          %p755 = pneg %p223
        $region58: #{tpu_custom_call.1} parent=39 // pred_check_branch
          %757 = sbr.rel (%p755) target = $region60
        $region59: #{tpu_custom_call.1} parent=39 // pred_region
          %s758 = sand.u32 %s36, 1
          %s759 = scalar_lea.sflag [#allocation4], %s758
          %s760 = sand.u32 %s213, 1
          %s761 = smul.addr %s760, 16
          %s762 = scalar_lea.vmem [#allocation11], %s761
          %s764 = ssub.s32 256, 256
          %765 = vsyncadd %s759, %s764
          %s766 = smul.addr %s36, 4
          %s767 = smul.addr %s766, 64
          %s768 = scalar_lea.hbm %s7, %s767
          %s769 = sshll.u32 %s762, 4
          %s770 = int_to_ptr.vmem [resolvable:$true] %s769
          %775 = dma.hbm_to_vmem [thread:$0]  %s768, 256, %s770, %s759, 64, 64, 4
        $region60: #{tpu_custom_call.1} parent=39 // pred_fallthru
          _
        // Predicated region
        $region61: #{tpu_custom_call.1} parent=39 // pred_check
          %p776 = pneg %p249
        $region62: #{tpu_custom_call.1} parent=39 // pred_check_branch
          %778 = sbr.rel (%p776) target = $region64
        $region63: #{tpu_custom_call.1} parent=39 // pred_region
          %s779 = sand.u32 %s36, 1
          %s780 = scalar_lea.sflag [#allocation4], %s779
          %s781 = sand.u32 %s239, 1
          %s782 = scalar_lea.vmem [#allocation12], %s781
          %s784 = ssub.s32 16, 16
          %785 = vsyncadd %s780, %s784
          %s786 = smul.addr %s36, 16
          %s787 = scalar_lea.hbm %s8, %s786
          %s789 = sshll.u32 %s782, 4
          %s790 = int_to_ptr.vmem [resolvable:$true] %s789
          %792 = dma.hbm_to_vmem [thread:$0]  %s787, 16, %s790, %s780
        $region64: #{tpu_custom_call.1} parent=39 // pred_fallthru
          _
        // Predicated region
        $region65: #{tpu_custom_call.1} parent=39 // pred_check
          %p793 = pneg %p275
        $region66: #{tpu_custom_call.1} parent=39 // pred_check_branch
          %795 = sbr.rel (%p793) target = $region68
        $region67: #{tpu_custom_call.1} parent=39 // pred_region
          %p796 = scmp.lt.s32.totalorder %s36, 1
          %s797 = scalar_select %p796, %s36, 1
          %s798 = smul.addr %s797, 4
          %s799 = smul.addr %s798, 4
          %s800 = scalar_lea.vmem %s9, %s799
        $region68: #{tpu_custom_call.1} parent=39 // pred_fallthru
          _
        // Predicated region
        $region69: #{tpu_custom_call.1} parent=39 // pred_check
          %p801 = pneg %p301
        $region70: #{tpu_custom_call.1} parent=39 // pred_check_branch
          %803 = sbr.rel (%p801) target = $region72
        $region71: #{tpu_custom_call.1} parent=39 // pred_region
          %s804 = sand.u32 %s36, 1
          %s805 = scalar_lea.sflag [#allocation4], %s804
          %s806 = sand.u32 %s291, 1
          %s807 = scalar_lea.vmem [#allocation13], %s806
          %s809 = ssub.s32 16, 16
          %810 = vsyncadd %s805, %s809
          %s811 = smul.addr %s36, 16
          %s812 = scalar_lea.hbm %s10, %s811
          %s814 = sshll.u32 %s807, 4
          %s815 = int_to_ptr.vmem [resolvable:$true] %s814
          %817 = dma.hbm_to_vmem [thread:$0]  %s812, 16, %s815, %s805
        $region72: #{tpu_custom_call.1} parent=39 // pred_fallthru
          _
        // Predicated region
        $region73: #{tpu_custom_call.1} parent=39 // pred_check
          %p818 = pneg %p327
        $region74: #{tpu_custom_call.1} parent=39 // pred_check_branch
          %820 = sbr.rel (%p818) target = $region76
        $region75: #{tpu_custom_call.1} parent=39 // pred_region
          %s821 = sand.u32 %s36, 1
          %s822 = scalar_lea.sflag [#allocation4], %s821
          %s823 = sand.u32 %s317, 1
          %s824 = scalar_lea.vmem [#allocation14], %s823
          %s826 = ssub.s32 16, 16
          %827 = vsyncadd %s822, %s826
          %s828 = smul.addr %s36, 16
          %s829 = scalar_lea.hbm %s11, %s828
          %s831 = sshll.u32 %s824, 4
          %s832 = int_to_ptr.vmem [resolvable:$true] %s831
          %834 = dma.hbm_to_vmem [thread:$0]  %s829, 16, %s832, %s822
        $region76: #{tpu_custom_call.1} parent=39 // pred_fallthru
          _
        // Predicated region
        $region77: #{tpu_custom_call.1} parent=39 // pred_check
          %p835 = pneg %p353
        $region78: #{tpu_custom_call.1} parent=39 // pred_check_branch
          %837 = sbr.rel (%p835) target = $region80
        $region79: #{tpu_custom_call.1} parent=39 // pred_region
          %s838 = sand.u32 %s36, 1
          %s839 = scalar_lea.sflag [#allocation4], %s838
          %s840 = sand.u32 %s343, 1
          %s841 = scalar_lea.vmem [#allocation15], %s840
          %s843 = ssub.s32 16, 16
          %844 = vsyncadd %s839, %s843
          %s845 = smul.addr %s36, 16
          %s846 = scalar_lea.hbm %s12, %s845
          %s848 = sshll.u32 %s841, 4
          %s849 = int_to_ptr.vmem [resolvable:$true] %s848
          %851 = dma.hbm_to_vmem [thread:$0]  %s846, 16, %s849, %s839
        $region80: #{tpu_custom_call.1} parent=39 // pred_fallthru
          _
        // Predicated region
        $region81: #{tpu_custom_call.1} parent=39 // pred_check
          %p852 = pneg %p379
        $region82: #{tpu_custom_call.1} parent=39 // pred_check_branch
          %854 = sbr.rel (%p852) target = $region84
        $region83: #{tpu_custom_call.1} parent=39 // pred_region
          %s855 = sand.u32 %s36, 1
          %s856 = scalar_lea.sflag [#allocation4], %s855
          %s857 = sand.u32 %s369, 1
          %s858 = scalar_lea.vmem [#allocation16], %s857
          %s860 = ssub.s32 16, 16
          %861 = vsyncadd %s856, %s860
          %s862 = smul.addr %s36, 16
          %s863 = scalar_lea.hbm %s13, %s862
          %s865 = sshll.u32 %s858, 4
          %s866 = int_to_ptr.vmem [resolvable:$true] %s865
          %868 = dma.hbm_to_vmem [thread:$0]  %s863, 16, %s866, %s856
        $region84: #{tpu_custom_call.1} parent=39 // pred_fallthru
          _
        // Predicated region
        $region85: #{tpu_custom_call.1} parent=39 // pred_check
          %p869 = pneg %p405
        $region86: #{tpu_custom_call.1} parent=39 // pred_check_branch
          %871 = sbr.rel (%p869) target = $region88
        $region87: #{tpu_custom_call.1} parent=39 // pred_region
          %s872 = sand.u32 %s36, 1
          %s873 = scalar_lea.sflag [#allocation4], %s872
          %s874 = sand.u32 %s395, 1
          %s875 = scalar_lea.vmem [#allocation17], %s874
          %s877 = ssub.s32 16, 16
          %878 = vsyncadd %s873, %s877
          %s879 = smul.addr %s36, 16
          %s880 = scalar_lea.hbm %s14, %s879
          %s882 = sshll.u32 %s875, 4
          %s883 = int_to_ptr.vmem [resolvable:$true] %s882
          %885 = dma.hbm_to_vmem [thread:$0]  %s880, 16, %s883, %s873
        $region88: #{tpu_custom_call.1} parent=39 // pred_fallthru
          _
        // Predicated region
        $region89: #{tpu_custom_call.1} parent=39 // pred_check
          %p886 = pneg %p431
        $region90: #{tpu_custom_call.1} parent=39 // pred_check_branch
          %888 = sbr.rel (%p886) target = $region92
        $region91: #{tpu_custom_call.1} parent=39 // pred_region
          %s889 = sand.u32 %s36, 1
          %s890 = scalar_lea.sflag [#allocation4], %s889
          %s891 = sand.u32 %s421, 1
          %s892 = smul.addr %s891, 16
          %s893 = scalar_lea.vmem [#allocation18], %s892
          %s895 = ssub.s32 256, 256
          %896 = vsyncadd %s890, %s895
          %s897 = smul.addr %s36, 4
          %s898 = smul.addr %s897, 64
          %s899 = scalar_lea.hbm %s15, %s898
          %s900 = sshll.u32 %s893, 4
          %s901 = int_to_ptr.vmem [resolvable:$true] %s900
          %906 = dma.hbm_to_vmem [thread:$0]  %s899, 256, %s901, %s890, 64, 64, 4
        $region92: #{tpu_custom_call.1} parent=39 // pred_fallthru
          _
        // Predicated region
        $region93: #{tpu_custom_call.1} parent=39 // pred_check
          %p907 = pneg %p457
        $region94: #{tpu_custom_call.1} parent=39 // pred_check_branch
          %909 = sbr.rel (%p907) target = $region96
        $region95: #{tpu_custom_call.1} parent=39 // pred_region
          %s910 = sand.u32 %s36, 1
          %s911 = scalar_lea.sflag [#allocation4], %s910
          %s912 = sand.u32 %s447, 1
          %s913 = scalar_lea.vmem [#allocation19], %s912
          %s915 = ssub.s32 16, 16
          %916 = vsyncadd %s911, %s915
          %s917 = smul.addr %s36, 16
          %s918 = scalar_lea.hbm %s16, %s917
          %s920 = sshll.u32 %s913, 4
          %s921 = int_to_ptr.vmem [resolvable:$true] %s920
          %923 = dma.hbm_to_vmem [thread:$0]  %s918, 16, %s921, %s911
        $region96: #{tpu_custom_call.1} parent=39 // pred_fallthru
          _
        // Predicated region
        $region97: #{tpu_custom_call.1} parent=39 // pred_check
          %p924 = pneg %p483
        $region98: #{tpu_custom_call.1} parent=39 // pred_check_branch
          %926 = sbr.rel (%p924) target = $region100
        $region99: #{tpu_custom_call.1} parent=39 // pred_region
          %p927 = scmp.lt.s32.totalorder %s36, 1
          %s928 = scalar_select %p927, %s36, 1
          %s929 = smul.addr %s928, 8
          %s930 = smul.addr %s929, 4
          %s931 = scalar_lea.vmem %s17, %s930
        $region100: #{tpu_custom_call.1} parent=39 // pred_fallthru
          _
        // Predicated region
        $region101: #{tpu_custom_call.1} parent=39 // pred_check
          %p932 = pneg %p509
        $region102: #{tpu_custom_call.1} parent=39 // pred_check_branch
          %934 = sbr.rel (%p932) target = $region104
        $region103: #{tpu_custom_call.1} parent=39 // pred_region
          %p935 = scmp.lt.s32.totalorder %s36, 1
          %s936 = scalar_select %p935, %s36, 1
          %s937 = scalar_lea.vmem %s18, %s936
        $region104: #{tpu_custom_call.1} parent=39 // pred_fallthru
          _
      $region40: #{tpu_custom_call.1} parent=5 // pred_fallthru
        _
      %p938 = scmp.le.s32.totalorder 1, %s36
      %p939 = scmp.lt.s32.totalorder %s36, 3
      %p940 = pnand %p938, %p939
      %p941 = pneg %p940
      // Predicated region
      $region105: #{tpu_custom_call.1} parent=5 // pred_check
        _
      $region106: #{tpu_custom_call.1} parent=5 // pred_check_branch
        %943 = sbr.rel (%p940) target = $region108
      $region107: #{tpu_custom_call.1} parent=5 // pred_region
        %s944 = ssub.s32 %s36, 1
        // Predicated region
        $region109: #{tpu_custom_call.1} parent=107 // pred_check
          %p945 = pneg %p78
        $region110: #{tpu_custom_call.1} parent=107 // pred_check_branch
          %947 = sbr.rel (%p945) target = $region112
        $region111: #{tpu_custom_call.1} parent=107 // pred_region
          %948 = dma.done [#allocation4], 1024
        $region112: #{tpu_custom_call.1} parent=107 // pred_fallthru
          _
        // Predicated region
        $region113: #{tpu_custom_call.1} parent=107 // pred_check
          %p949 = pneg %p99
        $region114: #{tpu_custom_call.1} parent=107 // pred_check_branch
          %951 = sbr.rel (%p949) target = $region116
        $region115: #{tpu_custom_call.1} parent=107 // pred_region
          %952 = dma.done [#allocation7], 64
        $region116: #{tpu_custom_call.1} parent=107 // pred_fallthru
          _
        %s953 = sand.u32 %s41, 1
        %s954 = scalar_lea.sflag [#allocation4], %s953
        %s955 = sand.u32 %s138, 1
        %s956 = scalar_lea.vmem [#allocation8], %s955
        // Predicated region
        $region117: #{tpu_custom_call.1} parent=107 // pred_check
          %p957 = pneg %p151
        $region118: #{tpu_custom_call.1} parent=107 // pred_check_branch
          %959 = sbr.rel (%p957) target = $region120
        $region119: #{tpu_custom_call.1} parent=107 // pred_region
          %960 = dma.done %s954, 16
        $region120: #{tpu_custom_call.1} parent=107 // pred_fallthru
          _
        %s961 = sand.u32 %s41, 1
        %s962 = scalar_lea.sflag [#allocation4], %s961
        %s963 = sand.u32 %s164, 1
        %s964 = smul.addr %s963, 16
        %s965 = scalar_lea.vmem [#allocation9], %s964
        // Predicated region
        $region121: #{tpu_custom_call.1} parent=107 // pred_check
          %p966 = pneg %p177
        $region122: #{tpu_custom_call.1} parent=107 // pred_check_branch
          %968 = sbr.rel (%p966) target = $region124
        $region123: #{tpu_custom_call.1} parent=107 // pred_region
          %969 = dma.done %s962, 256
        $region124: #{tpu_custom_call.1} parent=107 // pred_fallthru
          _
        %s970 = sand.u32 %s41, 1
        %s971 = scalar_lea.sflag [#allocation4], %s970
        %s972 = sand.u32 %s190, 1
        %s973 = scalar_lea.vmem [#allocation10], %s972
        // Predicated region
        $region125: #{tpu_custom_call.1} parent=107 // pred_check
          %p974 = pneg %p203
        $region126: #{tpu_custom_call.1} parent=107 // pred_check_branch
          %976 = sbr.rel (%p974) target = $region128
        $region127: #{tpu_custom_call.1} parent=107 // pred_region
          %977 = dma.done %s971, 16
        $region128: #{tpu_custom_call.1} parent=107 // pred_fallthru
          _
        %s978 = sand.u32 %s41, 1
        %s979 = scalar_lea.sflag [#allocation4], %s978
        %s980 = sand.u32 %s216, 1
        %s981 = smul.addr %s980, 16
        %s982 = scalar_lea.vmem [#allocation11], %s981
        // Predicated region
        $region129: #{tpu_custom_call.1} parent=107 // pred_check
          %p983 = pneg %p229
        $region130: #{tpu_custom_call.1} parent=107 // pred_check_branch
          %985 = sbr.rel (%p983) target = $region132
        $region131: #{tpu_custom_call.1} parent=107 // pred_region
          %986 = dma.done %s979, 256
        $region132: #{tpu_custom_call.1} parent=107 // pred_fallthru
          _
        %s987 = sand.u32 %s41, 1
        %s988 = scalar_lea.sflag [#allocation4], %s987
        %s989 = sand.u32 %s242, 1
        %s990 = scalar_lea.vmem [#allocation12], %s989
        // Predicated region
        $region133: #{tpu_custom_call.1} parent=107 // pred_check
          %p991 = pneg %p255
        $region134: #{tpu_custom_call.1} parent=107 // pred_check_branch
          %993 = sbr.rel (%p991) target = $region136
        $region135: #{tpu_custom_call.1} parent=107 // pred_region
          %994 = dma.done %s988, 16
        $region136: #{tpu_custom_call.1} parent=107 // pred_fallthru
          _
        %s995 = sand.u32 %s41, 1
        %s996 = scalar_lea.sflag [#allocation4], %s995
        %s997 = sand.u32 %s294, 1
        %s998 = scalar_lea.vmem [#allocation13], %s997
        // Predicated region
        $region137: #{tpu_custom_call.1} parent=107 // pred_check
          %p999 = pneg %p307
        $region138: #{tpu_custom_call.1} parent=107 // pred_check_branch
          %1001 = sbr.rel (%p999) target = $region140
        $region139: #{tpu_custom_call.1} parent=107 // pred_region
          %1002 = dma.done %s996, 16
        $region140: #{tpu_custom_call.1} parent=107 // pred_fallthru
          _
        %s1003 = sand.u32 %s41, 1
        %s1004 = scalar_lea.sflag [#allocation4], %s1003
        %s1005 = sand.u32 %s320, 1
        %s1006 = scalar_lea.vmem [#allocation14], %s1005
        // Predicated region
        $region141: #{tpu_custom_call.1} parent=107 // pred_check
          %p1007 = pneg %p333
        $region142: #{tpu_custom_call.1} parent=107 // pred_check_branch
          %1009 = sbr.rel (%p1007) target = $region144
        $region143: #{tpu_custom_call.1} parent=107 // pred_region
          %1010 = dma.done %s1004, 16
        $region144: #{tpu_custom_call.1} parent=107 // pred_fallthru
          _
        %s1011 = sand.u32 %s41, 1
        %s1012 = scalar_lea.sflag [#allocation4], %s1011
        %s1013 = sand.u32 %s346, 1
        %s1014 = scalar_lea.vmem [#allocation15], %s1013
        // Predicated region
        $region145: #{tpu_custom_call.1} parent=107 // pred_check
          %p1015 = pneg %p359
        $region146: #{tpu_custom_call.1} parent=107 // pred_check_branch
          %1017 = sbr.rel (%p1015) target = $region148
        $region147: #{tpu_custom_call.1} parent=107 // pred_region
          %1018 = dma.done %s1012, 16
        $region148: #{tpu_custom_call.1} parent=107 // pred_fallthru
          _
        %s1019 = sand.u32 %s41, 1
        %s1020 = scalar_lea.sflag [#allocation4], %s1019
        %s1021 = sand.u32 %s372, 1
        %s1022 = scalar_lea.vmem [#allocation16], %s1021
        // Predicated region
        $region149: #{tpu_custom_call.1} parent=107 // pred_check
          %p1023 = pneg %p385
        $region150: #{tpu_custom_call.1} parent=107 // pred_check_branch
          %1025 = sbr.rel (%p1023) target = $region152
        $region151: #{tpu_custom_call.1} parent=107 // pred_region
          %1026 = dma.done %s1020, 16
        $region152: #{tpu_custom_call.1} parent=107 // pred_fallthru
          _
        %s1027 = sand.u32 %s41, 1
        %s1028 = scalar_lea.sflag [#allocation4], %s1027
        %s1029 = sand.u32 %s398, 1
        %s1030 = scalar_lea.vmem [#allocation17], %s1029
        // Predicated region
        $region153: #{tpu_custom_call.1} parent=107 // pred_check
          %p1031 = pneg %p411
        $region154: #{tpu_custom_call.1} parent=107 // pred_check_branch
          %1033 = sbr.rel (%p1031) target = $region156
        $region155: #{tpu_custom_call.1} parent=107 // pred_region
          %1034 = dma.done %s1028, 16
        $region156: #{tpu_custom_call.1} parent=107 // pred_fallthru
          _
        %s1035 = sand.u32 %s41, 1
        %s1036 = scalar_lea.sflag [#allocation4], %s1035
        %s1037 = sand.u32 %s424, 1
        %s1038 = smul.addr %s1037, 16
        %s1039 = scalar_lea.vmem [#allocation18], %s1038
        // Predicated region
        $region157: #{tpu_custom_call.1} parent=107 // pred_check
          %p1040 = pneg %p437
        $region158: #{tpu_custom_call.1} parent=107 // pred_check_branch
          %1042 = sbr.rel (%p1040) target = $region160
        $region159: #{tpu_custom_call.1} parent=107 // pred_region
          %1043 = dma.done %s1036, 256
        $region160: #{tpu_custom_call.1} parent=107 // pred_fallthru
          _
        %s1044 = sand.u32 %s41, 1
        %s1045 = scalar_lea.sflag [#allocation4], %s1044
        %s1046 = sand.u32 %s450, 1
        %s1047 = scalar_lea.vmem [#allocation19], %s1046
        // Predicated region
        $region161: #{tpu_custom_call.1} parent=107 // pred_check
          %p1048 = pneg %p463
        $region162: #{tpu_custom_call.1} parent=107 // pred_check_branch
          %1050 = sbr.rel (%p1048) target = $region164
        $region163: #{tpu_custom_call.1} parent=107 // pred_region
          %1051 = dma.done %s1045, 16
        $region164: #{tpu_custom_call.1} parent=107 // pred_fallthru
          _
        // Predicated region
        $region165: #{tpu_custom_call.1} parent=107 // pred_check
          %p1052 = pneg %p578
        $region166: #{tpu_custom_call.1} parent=107 // pred_check_branch
          %1054 = sbr.rel (%p1052) target = $region168
        $region167: #{tpu_custom_call.1} parent=107 // pred_region
          %1055 = dma.done [#allocation7], 256
        $region168: #{tpu_custom_call.1} parent=107 // pred_fallthru
          _
        %p1056 = pneg %p57
        %p1057 = pneg %p54
        %p1058 = pneg %p78
        %p1059 = pneg %p75
        %p1060 = pneg %p99
        %p1061 = pneg %p96
        %p1062 = scmp.lt.s32.totalorder %s41, 1
        %s1063 = scalar_select %p1062, %s41, 1
        %s1064 = smul.addr %s1063, 4
        %s1065 = smul.addr %s1064, 4
        %s1066 = scalar_lea.vmem %s3, %s1065
        %p1067 = pneg %p125
        %p1068 = pneg %p122
        %s1069 = sand.u32 %s41, 1
        %s1070 = scalar_lea.sflag [#allocation4], %s1069
        %s1071 = sand.u32 %s138, 1
        %s1072 = scalar_lea.vmem [#allocation8], %s1071
        %p1073 = pneg %p151
        %p1074 = pneg %p148
        %s1075 = sand.u32 %s41, 1
        %s1076 = scalar_lea.sflag [#allocation4], %s1075
        %s1077 = sand.u32 %s164, 1
        %s1078 = smul.addr %s1077, 16
        %s1079 = scalar_lea.vmem [#allocation9], %s1078
        %p1080 = pneg %p177
        %p1081 = pneg %p174
        %s1082 = sand.u32 %s41, 1
        %s1083 = scalar_lea.sflag [#allocation4], %s1082
        %s1084 = sand.u32 %s190, 1
        %s1085 = scalar_lea.vmem [#allocation10], %s1084
        %p1086 = pneg %p203
        %p1087 = pneg %p200
        %s1088 = sand.u32 %s41, 1
        %s1089 = scalar_lea.sflag [#allocation4], %s1088
        %s1090 = sand.u32 %s216, 1
        %s1091 = smul.addr %s1090, 16
        %s1092 = scalar_lea.vmem [#allocation11], %s1091
        %p1093 = pneg %p229
        %p1094 = pneg %p226
        %s1095 = sand.u32 %s41, 1
        %s1096 = scalar_lea.sflag [#allocation4], %s1095
        %s1097 = sand.u32 %s242, 1
        %s1098 = scalar_lea.vmem [#allocation12], %s1097
        %p1099 = pneg %p255
        %p1100 = pneg %p252
        %p1101 = scmp.lt.s32.totalorder %s41, 1
        %s1102 = scalar_select %p1101, %s41, 1
        %s1103 = smul.addr %s1102, 4
        %s1104 = smul.addr %s1103, 4
        %s1105 = scalar_lea.vmem %s9, %s1104
        %p1106 = pneg %p281
        %p1107 = pneg %p278
        %s1108 = sand.u32 %s41, 1
        %s1109 = scalar_lea.sflag [#allocation4], %s1108
        %s1110 = sand.u32 %s294, 1
        %s1111 = scalar_lea.vmem [#allocation13], %s1110
        %p1112 = pneg %p307
        %p1113 = pneg %p304
        %s1114 = sand.u32 %s41, 1
        %s1115 = scalar_lea.sflag [#allocation4], %s1114
        %s1116 = sand.u32 %s320, 1
        %s1117 = scalar_lea.vmem [#allocation14], %s1116
        %p1118 = pneg %p333
        %p1119 = pneg %p330
        %s1120 = sand.u32 %s41, 1
        %s1121 = scalar_lea.sflag [#allocation4], %s1120
        %s1122 = sand.u32 %s346, 1
        %s1123 = scalar_lea.vmem [#allocation15], %s1122
        %p1124 = pneg %p359
        %p1125 = pneg %p356
        %s1126 = sand.u32 %s41, 1
        %s1127 = scalar_lea.sflag [#allocation4], %s1126
        %s1128 = sand.u32 %s372, 1
        %s1129 = scalar_lea.vmem [#allocation16], %s1128
        %p1130 = pneg %p385
        %p1131 = pneg %p382
        %s1132 = sand.u32 %s41, 1
        %s1133 = scalar_lea.sflag [#allocation4], %s1132
        %s1134 = sand.u32 %s398, 1
        %s1135 = scalar_lea.vmem [#allocation17], %s1134
        %p1136 = pneg %p411
        %p1137 = pneg %p408
        %s1138 = sand.u32 %s41, 1
        %s1139 = scalar_lea.sflag [#allocation4], %s1138
        %s1140 = sand.u32 %s424, 1
        %s1141 = smul.addr %s1140, 16
        %s1142 = scalar_lea.vmem [#allocation18], %s1141
        %p1143 = pneg %p437
        %p1144 = pneg %p434
        %s1145 = sand.u32 %s41, 1
        %s1146 = scalar_lea.sflag [#allocation4], %s1145
        %s1147 = sand.u32 %s450, 1
        %s1148 = scalar_lea.vmem [#allocation19], %s1147
        %p1149 = pneg %p463
        %p1150 = pneg %p460
        %p1151 = scmp.lt.s32.totalorder %s41, 1
        %s1152 = scalar_select %p1151, %s41, 1
        %s1153 = smul.addr %s1152, 8
        %s1154 = smul.addr %s1153, 4
        %s1155 = scalar_lea.vmem %s17, %s1154
        %p1156 = pneg %p489
        %p1157 = pneg %p486
        %p1158 = scmp.lt.s32.totalorder %s41, 1
        %s1159 = scalar_select %p1158, %s41, 1
        %s1160 = scalar_lea.vmem %s18, %s1159
        %p1161 = pneg %p515
        %p1162 = pneg %p512
        %p1163 = pneg %p536
        %p1164 = pneg %p533
        %p1165 = pneg %p557
        %p1166 = pneg %p554
        %p1167 = pneg %p578
        %p1168 = pneg %p575
        %p1169 = pneg %p599
        %p1170 = pneg %p596
        %p1171 = pneg %p625
        %p1172 = pneg %p622
        %s1173 = sand.u32 %s612, 1
        %s1174 = scalar_lea.sflag [#allocation23], %s1173
        %s1175 = sand.u32 %s612, 1
        %s1176 = smul.addr %s1175, 4
        %s1177 = scalar_lea.vmem [#allocation22], %s1176
        %p1178 = scmp.lt.s32.totalorder %s41, 1
        %s1179 = scalar_select %p1178, %s41, 1
        %s1180 = smul.addr %s1179, 4
        %s1181 = smul.addr %s1180, 4
        %s1182 = scalar_lea.vmem %s3, %s1181
        %p1183 = scmp.lt.s32.totalorder %s41, 1
        %s1184 = scalar_select %p1183, %s41, 1
        %s1185 = smul.addr %s1184, 4
        %s1186 = smul.addr %s1185, 4
        %s1187 = scalar_lea.vmem %s9, %s1186
        %p1188 = scmp.lt.s32.totalorder %s41, 1
        %s1189 = scalar_select %p1188, %s41, 1
        %s1190 = smul.addr %s1189, 8
        %s1191 = smul.addr %s1190, 4
        %s1192 = scalar_lea.vmem %s17, %s1191
        %p1193 = scmp.lt.s32.totalorder %s41, 1
        %s1194 = scalar_select %p1193, %s41, 1
        %s1195 = scalar_lea.vmem %s18, %s1194
        %p1197 = scmp.eq.s32.totalorder %s41, 0
        // Predicated region
        $region169: #{tpu_custom_call.1} parent=107 // pred_check
          %p1198 = pneg %p1197
        $region170: #{tpu_custom_call.1} parent=107 // pred_check_branch
          %1200 = sbr.rel (%p1198) target = $region172
        $region171: #{tpu_custom_call.1} parent=107 // pred_region
          %v1201 = vld [vmem:[%s0] sm:$0xff]
          %v1202 = vld [vmem:[%s0 + $0x8] sm:$0xff]
          %v1203 = vld [vmem:[%s0 + $0x10] sm:$0xff]
          %v1204 = vld [vmem:[%s0 + $0x18] sm:$0xff]
          %v1205 = vld [vmem:[%s0 + $0x20] sm:$0xff]
          %v1206 = vld [vmem:[%s0 + $0x28] sm:$0xff]
          %v1207 = vld [vmem:[%s0 + $0x30] sm:$0xff]
          %v1208 = vld [vmem:[%s0 + $0x38] sm:$0xff]
          %vm1209 = vcmask 261120
          %1210 = vst.msk [vmem:[#allocation2] sm:$0xff] %vm1209, %v1201
          %1211 = vst.msk [vmem:[#allocation2 + $0x8] sm:$0xff] %vm1209, %v1202
          %1212 = vst.msk [vmem:[#allocation2 + $0x10] sm:$0xff] %vm1209, %v1203
          %1213 = vst.msk [vmem:[#allocation2 + $0x18] sm:$0xff] %vm1209, %v1204
          %1214 = vst.msk [vmem:[#allocation2 + $0x20] sm:$0xff] %vm1209, %v1205
          %1215 = vst.msk [vmem:[#allocation2 + $0x28] sm:$0xff] %vm1209, %v1206
          %1216 = vst.msk [vmem:[#allocation2 + $0x30] sm:$0xff] %vm1209, %v1207
          %1217 = vst.msk [vmem:[#allocation2 + $0x38] sm:$0xff] %vm1209, %v1208
        $region172: #{tpu_custom_call.1} parent=107 // pred_fallthru
          _
        %v1218 = vld [vmem:[%s1182] sm:$0xf]
        %v1219 = vld [vmem:[%s1182 + $0x4] sm:$0xf]
        %v1220 = vld [vmem:[%s1182 + $0x8] sm:$0xf]
        %v1221 = vld [vmem:[%s1182 + $0xc] sm:$0xf]
        %v1222 = vld [vmem:[%s956] sm:$0x1]
        %v1223 = vld [vmem:[%s965] sm:$0xf]
        %v1224 = vld [vmem:[%s965 + $0x4] sm:$0xf]
        %v1225 = vld [vmem:[%s965 + $0x8] sm:$0xf]
        %v1226 = vld [vmem:[%s965 + $0xc] sm:$0xf]
        %v1227 = vld [vmem:[%s973] sm:$0x1]
        %v1228 = vld [vmem:[%s982] sm:$0xf]
        %v1229 = vld [vmem:[%s982 + $0x4] sm:$0xf]
        %v1230 = vld [vmem:[%s982 + $0x8] sm:$0xf]
        %v1231 = vld [vmem:[%s982 + $0xc] sm:$0xf]
        %v1232 = vld [vmem:[%s990] sm:$0x1]
        %v1233 = vld [vmem:[%s1187] sm:$0xf]
        %v1234 = vld [vmem:[%s1187 + $0x4] sm:$0xf]
        %v1235 = vld [vmem:[%s1187 + $0x8] sm:$0xf]
        %v1236 = vld [vmem:[%s1187 + $0xc] sm:$0xf]
        %v1237 = vld [vmem:[%s998] sm:$0x1]
        %v1238 = vld [vmem:[%s1006] sm:$0x1]
        %v1239 = vld [vmem:[%s1014] sm:$0x1]
        %v1240 = vld [vmem:[%s1022] sm:$0x1]
        %v1241 = vld [vmem:[%s1030] sm:$0x1]
        %v1242 = vld [vmem:[%s1039] sm:$0xf]
        %v1243 = vld [vmem:[%s1039 + $0x4] sm:$0xf]
        %v1244 = vld [vmem:[%s1039 + $0x8] sm:$0xf]
        %v1245 = vld [vmem:[%s1039 + $0xc] sm:$0xf]
        %v1246 = vld [vmem:[%s1047] sm:$0x1]
        %v1247 = vld [vmem:[%s1192] sm:$0xf]
        %v1248 = vld [vmem:[%s1192 + $0x4] sm:$0xf]
        %v1249 = vld [vmem:[%s1192 + $0x8] sm:$0xf]
        %v1250 = vld [vmem:[%s1192 + $0xc] sm:$0xf]
        %v1251 = vld [vmem:[%s1192 + $0x10] sm:$0xf]
        %v1252 = vld [vmem:[%s1192 + $0x14] sm:$0xf]
        %v1253 = vld [vmem:[%s1192 + $0x18] sm:$0xf]
        %v1254 = vld [vmem:[%s1192 + $0x1c] sm:$0xf]
        %v1255 = vld [vmem:[%s1195] sm:$0x1]
        %v1256 = vld [vmem:[#allocation2] sm:$0xff]
        %v1257 = vld [vmem:[#allocation2 + $0x8] sm:$0xff]
        %v1258 = vld [vmem:[#allocation2 + $0x10] sm:$0xff]
        %v1259 = vld [vmem:[#allocation2 + $0x18] sm:$0xff]
        %v1260 = vld [vmem:[#allocation2 + $0x20] sm:$0xff]
        %v1261 = vld [vmem:[#allocation2 + $0x28] sm:$0xff]
        %v1262 = vld [vmem:[#allocation2 + $0x30] sm:$0xff]
        %v1263 = vld [vmem:[#allocation2 + $0x38] sm:$0xff]
        %v1264 = vld [vmem:[#allocation3] sm:$0xff]
        %v1265 = vld [vmem:[#allocation3 + $0x8] sm:$0xff]
        %v1266 = vld [vmem:[#allocation3 + $0x10] sm:$0xff]
        %v1267 = vld [vmem:[#allocation3 + $0x18] sm:$0xff]
        %v1268 = vld [vmem:[#allocation3 + $0x20] sm:$0xff]
        %v1269 = vld [vmem:[#allocation3 + $0x28] sm:$0xff]
        %v1270 = vld [vmem:[#allocation3 + $0x30] sm:$0xff]
        %v1271 = vld [vmem:[#allocation3 + $0x38] sm:$0xff]
        %vm1272 = vcmask 261120
        %v1273 = vsel %vm1272, %v1256, 0.0
        %1274 = vadd.xlane.f32.xlu0 %v1273
        %v1275 = vpop.xlane.xlu0 %1274
        %v1276 = vsel %vm1272, %v1257, 0.0
        %1277 = vadd.xlane.f32.xlu0 %v1276
        %v1278 = vpop.xlane.xlu0 %1277
        %v1279 = vsel %vm1272, %v1258, 0.0
        %1280 = vadd.xlane.f32.xlu0 %v1279
        %v1281 = vpop.xlane.xlu0 %1280
        %v1282 = vsel %vm1272, %v1259, 0.0
        %1283 = vadd.xlane.f32.xlu0 %v1282
        %v1284 = vpop.xlane.xlu0 %1283
        %v1285 = vsel %vm1272, %v1260, 0.0
        %1286 = vadd.xlane.f32.xlu0 %v1285
        %v1287 = vpop.xlane.xlu0 %1286
        %v1288 = vsel %vm1272, %v1261, 0.0
        %1289 = vadd.xlane.f32.xlu0 %v1288
        %v1290 = vpop.xlane.xlu0 %1289
        %v1291 = vsel %vm1272, %v1262, 0.0
        %1292 = vadd.xlane.f32.xlu0 %v1291
        %v1293 = vpop.xlane.xlu0 %1292
        %v1294 = vsel %vm1272, %v1263, 0.0
        %1295 = vadd.xlane.f32.xlu0 %v1294
        %v1296 = vpop.xlane.xlu0 %1295
        %v1297 = vrcp.pop 32.0
        %v1298 = vmul.f32 %v1275, %v1297
        %v1299 = vmul.f32 %v1278, %v1297
        %v1300 = vmul.f32 %v1281, %v1297
        %v1301 = vmul.f32 %v1284, %v1297
        %v1302 = vmul.f32 %v1287, %v1297
        %v1303 = vmul.f32 %v1290, %v1297
        %v1304 = vmul.f32 %v1293, %v1297
        %v1305 = vmul.f32 %v1296, %v1297
        %v1306 = vsub.f32 %v1256, %v1298
        %v1307 = vsub.f32 %v1257, %v1299
        %v1308 = vsub.f32 %v1258, %v1300
        %v1309 = vsub.f32 %v1259, %v1301
        %v1310 = vsub.f32 %v1260, %v1302
        %v1311 = vsub.f32 %v1261, %v1303
        %v1312 = vsub.f32 %v1262, %v1304
        %v1313 = vsub.f32 %v1263, %v1305
        %v1314 = vmul.f32 %v1306, %v1306
        %v1315 = vmul.f32 %v1307, %v1307
        %v1316 = vmul.f32 %v1308, %v1308
        %v1317 = vmul.f32 %v1309, %v1309
        %v1318 = vmul.f32 %v1310, %v1310
        %v1319 = vmul.f32 %v1311, %v1311
        %v1320 = vmul.f32 %v1312, %v1312
        %v1321 = vmul.f32 %v1313, %v1313
        %v1322 = vsel %vm1272, %v1314, 0.0
        %1323 = vadd.xlane.f32.xlu0 %v1322
        %v1324 = vpop.xlane.xlu0 %1323
        %v1325 = vsel %vm1272, %v1315, 0.0
        %1326 = vadd.xlane.f32.xlu0 %v1325
        %v1327 = vpop.xlane.xlu0 %1326
        %v1328 = vsel %vm1272, %v1316, 0.0
        %1329 = vadd.xlane.f32.xlu0 %v1328
        %v1330 = vpop.xlane.xlu0 %1329
        %v1331 = vsel %vm1272, %v1317, 0.0
        %1332 = vadd.xlane.f32.xlu0 %v1331
        %v1333 = vpop.xlane.xlu0 %1332
        %v1334 = vsel %vm1272, %v1318, 0.0
        %1335 = vadd.xlane.f32.xlu0 %v1334
        %v1336 = vpop.xlane.xlu0 %1335
        %v1337 = vsel %vm1272, %v1319, 0.0
        %1338 = vadd.xlane.f32.xlu0 %v1337
        %v1339 = vpop.xlane.xlu0 %1338
        %v1340 = vsel %vm1272, %v1320, 0.0
        %1341 = vadd.xlane.f32.xlu0 %v1340
        %v1342 = vpop.xlane.xlu0 %1341
        %v1343 = vsel %vm1272, %v1321, 0.0
        %1344 = vadd.xlane.f32.xlu0 %v1343
        %v1345 = vpop.xlane.xlu0 %1344
        %v1346 = vmul.f32 %v1324, %v1297
        %v1347 = vmul.f32 %v1327, %v1297
        %v1348 = vmul.f32 %v1330, %v1297
        %v1349 = vmul.f32 %v1333, %v1297
        %v1350 = vmul.f32 %v1336, %v1297
        %v1351 = vmul.f32 %v1339, %v1297
        %v1352 = vmul.f32 %v1342, %v1297
        %v1353 = vmul.f32 %v1345, %v1297
        %v1354 = vadd.f32 %v1346, 1e-05
        %v1355 = vadd.f32 %v1347, 1e-05
        %v1356 = vadd.f32 %v1348, 1e-05
        %v1357 = vadd.f32 %v1349, 1e-05
        %v1358 = vadd.f32 %v1350, 1e-05
        %v1359 = vadd.f32 %v1351, 1e-05
        %v1360 = vadd.f32 %v1352, 1e-05
        %v1361 = vadd.f32 %v1353, 1e-05
        %v1362 = vrsqrt.pop %v1354
        %v1363 = vrsqrt.pop %v1355
        %v1364 = vrsqrt.pop %v1356
        %v1365 = vrsqrt.pop %v1357
        %v1366 = vrsqrt.pop %v1358
        %v1367 = vrsqrt.pop %v1359
        %v1368 = vrsqrt.pop %v1360
        %v1369 = vrsqrt.pop %v1361
        %v1370 = vmul.f32 %v1306, %v1362
        %v1371 = vmul.f32 %v1307, %v1363
        %v1372 = vmul.f32 %v1308, %v1364
        %v1373 = vmul.f32 %v1309, %v1365
        %v1374 = vmul.f32 %v1310, %v1366
        %v1375 = vmul.f32 %v1311, %v1367
        %v1376 = vmul.f32 %v1312, %v1368
        %v1377 = vmul.f32 %v1313, %v1369
        %v1379 = vlaneseq
        %v1380 = vshrl.u32 %v1379, 7
        %v1381 = vsub.s32 0, %v1380
        %v1382 = vrot.slane %v1238, %v1381
        %v1384 = vmul.f32 %v1370, %v1382
        %v1385 = vmul.f32 %v1371, %v1382
        %v1386 = vmul.f32 %v1372, %v1382
        %v1387 = vmul.f32 %v1373, %v1382
        %v1388 = vmul.f32 %v1374, %v1382
        %v1389 = vmul.f32 %v1375, %v1382
        %v1390 = vmul.f32 %v1376, %v1382
        %v1391 = vmul.f32 %v1377, %v1382
        %v1393 = vlaneseq
        %v1394 = vshrl.u32 %v1393, 7
        %v1395 = vsub.s32 0, %v1394
        %v1396 = vrot.slane %v1239, %v1395
        %v1398 = vadd.f32 %v1384, %v1396
        %v1399 = vadd.f32 %v1385, %v1396
        %v1400 = vadd.f32 %v1386, %v1396
        %v1401 = vadd.f32 %v1387, %v1396
        %v1402 = vadd.f32 %v1388, %v1396
        %v1403 = vadd.f32 %v1389, %v1396
        %v1404 = vadd.f32 %v1390, %v1396
        %v1405 = vadd.f32 %v1391, %v1396
        %v1406 = vpack.c.bf16 %v1399, %v1398
        %v1407 = vpack.c.bf16 %v1401, %v1400
        %v1408 = vpack.c.bf16 %v1403, %v1402
        %v1409 = vpack.c.bf16 %v1405, %v1404
        %v1411 = vlaneseq
        %v1412 = vshrl.u32 %v1411, 7
        %v1413 = vsub.s32 0, %v1412
        %v1414 = vrot.slane %v1222, %v1413
        %v1420 = vunpack.c.l.b16 %v1218
        %v1421 = vunpack.c.l.b16 %v1219
        %v1422 = vunpack.c.l.b16 %v1220
        %v1423 = vunpack.c.l.b16 %v1221
        %v1424 = vpack.c.b16 %v1421, %v1420
        %v1425 = vpack.c.b16 %v1423, %v1422
        %v1429 = vsel %vm1272, %v1406, 0
        %v1432 = vsel %vm1272, %v1407, 0
        %v1435 = vsel %vm1272, %v1408, 0
        %v1438 = vsel %vm1272, %v1409, 0
        %1440 = vmatprep.subr.bf16.mxu0 0
        %1441 = vmatpush1.bf16.msra.mxu0 %v1424
        %1442 = vmatprep.subr.bf16.mxu0 0
        %1443 = vmatpush1.bf16.msra.mxu0 %v1425
        %1444 = vmatprep.subr.bf16.mxu0 0
        %1445 = vmatpush1.bf16.msra.mxu0 0
        %1446 = vmatprep.subr.bf16.mxu0 0
        %1447 = vmatpush1.bf16.msra.mxu0 0
        %1448 = vmatprep.subr.bf16.mxu0 0
        %1449 = vmatpush1.bf16.msra.mxu0 0
        %1450 = vmatprep.subr.bf16.mxu0 0
        %1451 = vmatpush1.bf16.msra.mxu0 0
        %1452 = vmatprep.subr.bf16.mxu0 0
        %1453 = vmatpush1.bf16.msra.mxu0 0
        %1454 = vmatprep.subr.bf16.mxu0 0
        %1455 = vmatpush1.bf16.msra.mxu0 0
        %1456 = vmatprep.subr.bf16.mxu0 0
        %1457 = vmatpush1.bf16.msra.mxu0 0
        %1458 = vmatprep.subr.bf16.mxu0 0
        %1459 = vmatpush1.bf16.msra.mxu0 0
        %1460 = vmatprep.subr.bf16.mxu0 0
        %1461 = vmatpush1.bf16.msra.mxu0 0
        %1462 = vmatprep.subr.bf16.mxu0 0
        %1463 = vmatpush1.bf16.msra.mxu0 0
        %1464 = vmatprep.subr.bf16.mxu0 0
        %1465 = vmatpush1.bf16.msra.mxu0 0
        %1466 = vmatprep.subr.bf16.mxu0 0
        %1467 = vmatpush1.bf16.msra.mxu0 0
        %1468 = vmatprep.subr.bf16.mxu0 0
        %1469 = vmatpush1.bf16.msra.mxu0 0
        %1470 = vmatprep.subr.bf16.mxu0 0
        %1471 = vmatpush1.bf16.msra.mxu0 0
        %1472 = vmatprep.mubr.bf16.mxu0 0
        %1473 = vmatmul.mubr.bf16.gmra.mrb[0].mxu0 %v1429
        %v1474 = vpop.f32.mrb[0].mxu0
        %v1475 = vadd.f32 %v1414, %v1474
        %v1476 = vpop.f32.mrb[0].mxu0
        %v1477 = vpop.f32.mrb[0].mxu0
        %v1478 = vadd.f32 %v1414, %v1477
        %v1479 = vpop.f32.mrb[0].mxu0
        %1480 = vmatprep.mubr.bf16.mxu0 0
        %1481 = vmatmul.mubr.bf16.gmra.mrb[0].mxu0 %v1432
        %v1482 = vpop.f32.mrb[0].mxu0
        %v1483 = vadd.f32 %v1414, %v1482
        %v1484 = vpop.f32.mrb[0].mxu0
        %v1485 = vpop.f32.mrb[0].mxu0
        %v1486 = vadd.f32 %v1414, %v1485
        %v1487 = vpop.f32.mrb[0].mxu0
        %1488 = vmatprep.mubr.bf16.mxu0 0
        %1489 = vmatmul.mubr.bf16.gmra.mrb[0].mxu0 %v1435
        %v1490 = vpop.f32.mrb[0].mxu0
        %v1491 = vadd.f32 %v1414, %v1490
        %v1492 = vpop.f32.mrb[0].mxu0
        %v1493 = vpop.f32.mrb[0].mxu0
        %v1494 = vadd.f32 %v1414, %v1493
        %v1495 = vpop.f32.mrb[0].mxu0
        %1496 = vmatprep.mubr.bf16.mxu0 0
        %1497 = vmatmul.mubr.bf16.gmra.mrb[0].mxu0 %v1438
        %v1498 = vpop.f32.mrb[0].mxu0
        %v1499 = vadd.f32 %v1414, %v1498
        %v1500 = vpop.f32.mrb[0].mxu0
        %v1501 = vpop.f32.mrb[0].mxu0
        %v1502 = vadd.f32 %v1414, %v1501
        %v1503 = vpop.f32.mrb[0].mxu0
        %1504 = vdwg.mxu0
        %v1505 = vmul.f32 %v1475, 0.35355338
        %v1506 = vmul.f32 %v1478, 0.35355338
        %v1507 = vmul.f32 %v1483, 0.35355338
        %v1508 = vmul.f32 %v1486, 0.35355338
        %v1509 = vmul.f32 %v1491, 0.35355338
        %v1510 = vmul.f32 %v1494, 0.35355338
        %v1511 = vmul.f32 %v1499, 0.35355338
        %v1512 = vmul.f32 %v1502, 0.35355338
        %v1514 = vlaneseq
        %v1515 = vshrl.u32 %v1514, 7
        %v1516 = vsub.s32 0, %v1515
        %v1517 = vrot.slane %v1227, %v1516
        %v1523 = vunpack.c.l.b16 %v1223
        %v1524 = vunpack.c.l.b16 %v1224
        %v1525 = vunpack.c.l.b16 %v1225
        %v1526 = vunpack.c.l.b16 %v1226
        %v1527 = vpack.c.b16 %v1524, %v1523
        %v1528 = vpack.c.b16 %v1526, %v1525
        %1531 = vmatprep.subr.bf16.mxu0 0
        %1532 = vmatpush1.bf16.msra.mxu0 %v1527
        %1533 = vmatprep.subr.bf16.mxu0 0
        %1534 = vmatpush1.bf16.msra.mxu0 %v1528
        %1535 = vmatprep.subr.bf16.mxu0 0
        %1536 = vmatpush1.bf16.msra.mxu0 0
        %1537 = vmatprep.subr.bf16.mxu0 0
        %1538 = vmatpush1.bf16.msra.mxu0 0
        %1539 = vmatprep.subr.bf16.mxu0 0
        %1540 = vmatpush1.bf16.msra.mxu0 0
        %1541 = vmatprep.subr.bf16.mxu0 0
        %1542 = vmatpush1.bf16.msra.mxu0 0
        %1543 = vmatprep.subr.bf16.mxu0 0
        %1544 = vmatpush1.bf16.msra.mxu0 0
        %1545 = vmatprep.subr.bf16.mxu0 0
        %1546 = vmatpush1.bf16.msra.mxu0 0
        %1547 = vmatprep.subr.bf16.mxu0 0
        %1548 = vmatpush1.bf16.msra.mxu0 0
        %1549 = vmatprep.subr.bf16.mxu0 0
        %1550 = vmatpush1.bf16.msra.mxu0 0
        %1551 = vmatprep.subr.bf16.mxu0 0
        %1552 = vmatpush1.bf16.msra.mxu0 0
        %1553 = vmatprep.subr.bf16.mxu0 0
        %1554 = vmatpush1.bf16.msra.mxu0 0
        %1555 = vmatprep.subr.bf16.mxu0 0
        %1556 = vmatpush1.bf16.msra.mxu0 0
        %1557 = vmatprep.subr.bf16.mxu0 0
        %1558 = vmatpush1.bf16.msra.mxu0 0
        %1559 = vmatprep.subr.bf16.mxu0 0
        %1560 = vmatpush1.bf16.msra.mxu0 0
        %1561 = vmatprep.subr.bf16.mxu0 0
        %1562 = vmatpush1.bf16.msra.mxu0 0
        %1563 = vmatprep.mubr.bf16.mxu0 0
        %1564 = vmatmul.mubr.bf16.gmra.mrb[0].mxu0 %v1429
        %v1565 = vpop.f32.mrb[0].mxu0
        %v1566 = vadd.f32 %v1517, %v1565
        %v1567 = vpop.f32.mrb[0].mxu0
        %v1568 = vpop.f32.mrb[0].mxu0
        %v1569 = vadd.f32 %v1517, %v1568
        %v1570 = vpop.f32.mrb[0].mxu0
        %1571 = vmatprep.mubr.bf16.mxu0 0
        %1572 = vmatmul.mubr.bf16.gmra.mrb[0].mxu0 %v1432
        %v1573 = vpop.f32.mrb[0].mxu0
        %v1574 = vadd.f32 %v1517, %v1573
        %v1575 = vpop.f32.mrb[0].mxu0
        %v1576 = vpop.f32.mrb[0].mxu0
        %v1577 = vadd.f32 %v1517, %v1576
        %v1578 = vpop.f32.mrb[0].mxu0
        %1579 = vmatprep.mubr.bf16.mxu0 0
        %1580 = vmatmul.mubr.bf16.gmra.mrb[0].mxu0 %v1435
        %v1581 = vpop.f32.mrb[0].mxu0
        %v1582 = vadd.f32 %v1517, %v1581
        %v1583 = vpop.f32.mrb[0].mxu0
        %v1584 = vpop.f32.mrb[0].mxu0
        %v1585 = vadd.f32 %v1517, %v1584
        %v1586 = vpop.f32.mrb[0].mxu0
        %1587 = vmatprep.mubr.bf16.mxu0 0
        %1588 = vmatmul.mubr.bf16.gmra.mrb[0].mxu0 %v1438
        %v1589 = vpop.f32.mrb[0].mxu0
        %v1590 = vadd.f32 %v1517, %v1589
        %v1591 = vpop.f32.mrb[0].mxu0
        %v1592 = vpop.f32.mrb[0].mxu0
        %v1593 = vadd.f32 %v1517, %v1592
        %v1594 = vpop.f32.mrb[0].mxu0
        %1595 = vdwg.mxu0
        %v1597 = vlaneseq
        %v1598 = vshrl.u32 %v1597, 7
        %v1599 = vsub.s32 0, %v1598
        %v1600 = vrot.slane %v1232, %v1599
        %v1606 = vunpack.c.l.b16 %v1228
        %v1607 = vunpack.c.l.b16 %v1229
        %v1608 = vunpack.c.l.b16 %v1230
        %v1609 = vunpack.c.l.b16 %v1231
        %v1610 = vpack.c.b16 %v1607, %v1606
        %v1611 = vpack.c.b16 %v1609, %v1608
        %1614 = vmatprep.subr.bf16.mxu0 0
        %1615 = vmatpush1.bf16.msra.mxu0 %v1610
        %1616 = vmatprep.subr.bf16.mxu0 0
        %1617 = vmatpush1.bf16.msra.mxu0 %v1611
        %1618 = vmatprep.subr.bf16.mxu0 0
        %1619 = vmatpush1.bf16.msra.mxu0 0
        %1620 = vmatprep.subr.bf16.mxu0 0
        %1621 = vmatpush1.bf16.msra.mxu0 0
        %1622 = vmatprep.subr.bf16.mxu0 0
        %1623 = vmatpush1.bf16.msra.mxu0 0
        %1624 = vmatprep.subr.bf16.mxu0 0
        %1625 = vmatpush1.bf16.msra.mxu0 0
        %1626 = vmatprep.subr.bf16.mxu0 0
        %1627 = vmatpush1.bf16.msra.mxu0 0
        %1628 = vmatprep.subr.bf16.mxu0 0
        %1629 = vmatpush1.bf16.msra.mxu0 0
        %1630 = vmatprep.subr.bf16.mxu0 0
        %1631 = vmatpush1.bf16.msra.mxu0 0
        %1632 = vmatprep.subr.bf16.mxu0 0
        %1633 = vmatpush1.bf16.msra.mxu0 0
        %1634 = vmatprep.subr.bf16.mxu0 0
        %1635 = vmatpush1.bf16.msra.mxu0 0
        %1636 = vmatprep.subr.bf16.mxu0 0
        %1637 = vmatpush1.bf16.msra.mxu0 0
        %1638 = vmatprep.subr.bf16.mxu0 0
        %1639 = vmatpush1.bf16.msra.mxu0 0
        %1640 = vmatprep.subr.bf16.mxu0 0
        %1641 = vmatpush1.bf16.msra.mxu0 0
        %1642 = vmatprep.subr.bf16.mxu0 0
        %1643 = vmatpush1.bf16.msra.mxu0 0
        %1644 = vmatprep.subr.bf16.mxu0 0
        %1645 = vmatpush1.bf16.msra.mxu0 0
        %1646 = vmatprep.mubr.bf16.mxu0 0
        %1647 = vmatmul.mubr.bf16.gmra.mrb[0].mxu0 %v1429
        %v1648 = vpop.f32.mrb[0].mxu0
        %v1649 = vadd.f32 %v1600, %v1648
        %v1650 = vpop.f32.mrb[0].mxu0
        %v1651 = vpop.f32.mrb[0].mxu0
        %v1652 = vadd.f32 %v1600, %v1651
        %v1653 = vpop.f32.mrb[0].mxu0
        %1654 = vmatprep.mubr.bf16.mxu0 0
        %1655 = vmatmul.mubr.bf16.gmra.mrb[0].mxu0 %v1432
        %v1656 = vpop.f32.mrb[0].mxu0
        %v1657 = vadd.f32 %v1600, %v1656
        %v1658 = vpop.f32.mrb[0].mxu0
        %v1659 = vpop.f32.mrb[0].mxu0
        %v1660 = vadd.f32 %v1600, %v1659
        %v1661 = vpop.f32.mrb[0].mxu0
        %1662 = vmatprep.mubr.bf16.mxu0 0
        %1663 = vmatmul.mubr.bf16.gmra.mrb[0].mxu0 %v1435
        %v1664 = vpop.f32.mrb[0].mxu0
        %v1665 = vadd.f32 %v1600, %v1664
        %v1666 = vpop.f32.mrb[0].mxu0
        %v1667 = vpop.f32.mrb[0].mxu0
        %v1668 = vadd.f32 %v1600, %v1667
        %v1669 = vpop.f32.mrb[0].mxu0
        %1670 = vmatprep.mubr.bf16.mxu0 0
        %1671 = vmatmul.mubr.bf16.gmra.mrb[0].mxu0 %v1438
        %v1672 = vpop.f32.mrb[0].mxu0
        %v1673 = vadd.f32 %v1600, %v1672
        %v1674 = vpop.f32.mrb[0].mxu0
        %v1675 = vpop.f32.mrb[0].mxu0
        %v1676 = vadd.f32 %v1600, %v1675
        %v1677 = vpop.f32.mrb[0].mxu0
        %1678 = vdwg.mxu0
        %v1679 = vpack.c.bf16 %v1506, %v1505
        %v1680 = vpack.c.bf16 %v1508, %v1507
        %v1681 = vpack.c.bf16 %v1510, %v1509
        %v1682 = vpack.c.bf16 %v1512, %v1511
        %v1683 = vpack.c.bf16 %v1569, %v1566
        %v1684 = vpack.c.bf16 %v1577, %v1574
        %v1685 = vpack.c.bf16 %v1585, %v1582
        %v1686 = vpack.c.bf16 %v1593, %v1590
        %vm1687 = vcmask 64512
        %v1689 = vsel %vm1687, %v1679, 0
        %v1692 = vsel %vm1687, %v1683, 0
        %1694 = vmatprep.subr.bf16.mxu0 0
        %1695 = vmatpush1.bf16.xpose.msra.mxu0 %v1692
        %1696 = vmatprep.subr.bf16.mxu0 0
        %1697 = vmatpush1.bf16.xpose.msra.mxu0 0
        %1698 = vmatprep.subr.bf16.mxu0 0
        %1699 = vmatpush1.bf16.xpose.msra.mxu0 0
        %1700 = vmatprep.subr.bf16.mxu0 0
        %1701 = vmatpush1.bf16.xpose.msra.mxu0 0
        %1702 = vmatprep.subr.bf16.mxu0 0
        %1703 = vmatpush1.bf16.xpose.msra.mxu0 0
        %1704 = vmatprep.subr.bf16.mxu0 0
        %1705 = vmatpush1.bf16.xpose.msra.mxu0 0
        %1706 = vmatprep.subr.bf16.mxu0 0
        %1707 = vmatpush1.bf16.xpose.msra.mxu0 0
        %1708 = vmatprep.subr.bf16.mxu0 0
        %1709 = vmatpush1.bf16.xpose.msra.mxu0 0
        %1710 = vmatprep.subr.bf16.mxu0 0
        %1711 = vmatpush1.bf16.xpose.msra.mxu0 0
        %1712 = vmatprep.subr.bf16.mxu0 0
        %1713 = vmatpush1.bf16.xpose.msra.mxu0 0
        %1714 = vmatprep.subr.bf16.mxu0 0
        %1715 = vmatpush1.bf16.xpose.msra.mxu0 0
        %1716 = vmatprep.subr.bf16.mxu0 0
        %1717 = vmatpush1.bf16.xpose.msra.mxu0 0
        %1718 = vmatprep.subr.bf16.mxu0 0
        %1719 = vmatpush1.bf16.xpose.msra.mxu0 0
        %1720 = vmatprep.subr.bf16.mxu0 0
        %1721 = vmatpush1.bf16.xpose.msra.mxu0 0
        %1722 = vmatprep.subr.bf16.mxu0 0
        %1723 = vmatpush1.bf16.xpose.msra.mxu0 0
        %1724 = vmatprep.subr.bf16.mxu0 0
        %1725 = vmatpush1.bf16.xpose.msra.mxu0 0
        %1726 = vmatprep.mubr.bf16.mxu0 0
        %1727 = vmatmul.mubr.bf16.gmra.mrb[0].mxu0 %v1689
        %v1728 = vpop.f32.mrb[0].mxu0
        %v1729 = vadd.f32 %v1264, %v1728
        %v1730 = vpop.f32.mrb[0].mxu0
        %v1731 = vpop.f32.mrb[0].mxu0
        %v1732 = vadd.f32 %v1265, %v1731
        %v1733 = vpop.f32.mrb[0].mxu0
        %1734 = vdwg.mxu0
        %v1736 = vsel %vm1687, %v1680, 0
        %v1739 = vsel %vm1687, %v1684, 0
        %1741 = vmatprep.subr.bf16.mxu0 0
        %1742 = vmatpush1.bf16.xpose.msra.mxu0 %v1739
        %1743 = vmatprep.subr.bf16.mxu0 0
        %1744 = vmatpush1.bf16.xpose.msra.mxu0 0
        %1745 = vmatprep.subr.bf16.mxu0 0
        %1746 = vmatpush1.bf16.xpose.msra.mxu0 0
        %1747 = vmatprep.subr.bf16.mxu0 0
        %1748 = vmatpush1.bf16.xpose.msra.mxu0 0
        %1749 = vmatprep.subr.bf16.mxu0 0
        %1750 = vmatpush1.bf16.xpose.msra.mxu0 0
        %1751 = vmatprep.subr.bf16.mxu0 0
        %1752 = vmatpush1.bf16.xpose.msra.mxu0 0
        %1753 = vmatprep.subr.bf16.mxu0 0
        %1754 = vmatpush1.bf16.xpose.msra.mxu0 0
        %1755 = vmatprep.subr.bf16.mxu0 0
        %1756 = vmatpush1.bf16.xpose.msra.mxu0 0
        %1757 = vmatprep.subr.bf16.mxu0 0
        %1758 = vmatpush1.bf16.xpose.msra.mxu0 0
        %1759 = vmatprep.subr.bf16.mxu0 0
        %1760 = vmatpush1.bf16.xpose.msra.mxu0 0
        %1761 = vmatprep.subr.bf16.mxu0 0
        %1762 = vmatpush1.bf16.xpose.msra.mxu0 0
        %1763 = vmatprep.subr.bf16.mxu0 0
        %1764 = vmatpush1.bf16.xpose.msra.mxu0 0
        %1765 = vmatprep.subr.bf16.mxu0 0
        %1766 = vmatpush1.bf16.xpose.msra.mxu0 0
        %1767 = vmatprep.subr.bf16.mxu0 0
        %1768 = vmatpush1.bf16.xpose.msra.mxu0 0
        %1769 = vmatprep.subr.bf16.mxu0 0
        %1770 = vmatpush1.bf16.xpose.msra.mxu0 0
        %1771 = vmatprep.subr.bf16.mxu0 0
        %1772 = vmatpush1.bf16.xpose.msra.mxu0 0
        %1773 = vmatprep.mubr.bf16.mxu0 0
        %1774 = vmatmul.mubr.bf16.gmra.mrb[0].mxu0 %v1736
        %v1775 = vpop.f32.mrb[0].mxu0
        %v1776 = vadd.f32 %v1266, %v1775
        %v1777 = vpop.f32.mrb[0].mxu0
        %v1778 = vpop.f32.mrb[0].mxu0
        %v1779 = vadd.f32 %v1267, %v1778
        %v1780 = vpop.f32.mrb[0].mxu0
        %1781 = vdwg.mxu0
        %v1783 = vsel %vm1687, %v1681, 0
        %v1786 = vsel %vm1687, %v1685, 0
        %1788 = vmatprep.subr.bf16.mxu0 0
        %1789 = vmatpush1.bf16.xpose.msra.mxu0 %v1786
        %1790 = vmatprep.subr.bf16.mxu0 0
        %1791 = vmatpush1.bf16.xpose.msra.mxu0 0
        %1792 = vmatprep.subr.bf16.mxu0 0
        %1793 = vmatpush1.bf16.xpose.msra.mxu0 0
        %1794 = vmatprep.subr.bf16.mxu0 0
        %1795 = vmatpush1.bf16.xpose.msra.mxu0 0
        %1796 = vmatprep.subr.bf16.mxu0 0
        %1797 = vmatpush1.bf16.xpose.msra.mxu0 0
        %1798 = vmatprep.subr.bf16.mxu0 0
        %1799 = vmatpush1.bf16.xpose.msra.mxu0 0
        %1800 = vmatprep.subr.bf16.mxu0 0
        %1801 = vmatpush1.bf16.xpose.msra.mxu0 0
        %1802 = vmatprep.subr.bf16.mxu0 0
        %1803 = vmatpush1.bf16.xpose.msra.mxu0 0
        %1804 = vmatprep.subr.bf16.mxu0 0
        %1805 = vmatpush1.bf16.xpose.msra.mxu0 0
        %1806 = vmatprep.subr.bf16.mxu0 0
        %1807 = vmatpush1.bf16.xpose.msra.mxu0 0
        %1808 = vmatprep.subr.bf16.mxu0 0
        %1809 = vmatpush1.bf16.xpose.msra.mxu0 0
        %1810 = vmatprep.subr.bf16.mxu0 0
        %1811 = vmatpush1.bf16.xpose.msra.mxu0 0
        %1812 = vmatprep.subr.bf16.mxu0 0
        %1813 = vmatpush1.bf16.xpose.msra.mxu0 0
        %1814 = vmatprep.subr.bf16.mxu0 0
        %1815 = vmatpush1.bf16.xpose.msra.mxu0 0
        %1816 = vmatprep.subr.bf16.mxu0 0
        %1817 = vmatpush1.bf16.xpose.msra.mxu0 0
        %1818 = vmatprep.subr.bf16.mxu0 0
        %1819 = vmatpush1.bf16.xpose.msra.mxu0 0
        %1820 = vmatprep.mubr.bf16.mxu0 0
        %1821 = vmatmul.mubr.bf16.gmra.mrb[0].mxu0 %v1783
        %v1822 = vpop.f32.mrb[0].mxu0
        %v1823 = vadd.f32 %v1268, %v1822
        %v1824 = vpop.f32.mrb[0].mxu0
        %v1825 = vpop.f32.mrb[0].mxu0
        %v1826 = vadd.f32 %v1269, %v1825
        %v1827 = vpop.f32.mrb[0].mxu0
        %1828 = vdwg.mxu0
        %v1830 = vsel %vm1687, %v1682, 0
        %v1833 = vsel %vm1687, %v1686, 0
        %1835 = vmatprep.subr.bf16.mxu0 0
        %1836 = vmatpush1.bf16.xpose.msra.mxu0 %v1833
        %1837 = vmatprep.subr.bf16.mxu0 0
        %1838 = vmatpush1.bf16.xpose.msra.mxu0 0
        %1839 = vmatprep.subr.bf16.mxu0 0
        %1840 = vmatpush1.bf16.xpose.msra.mxu0 0
        %1841 = vmatprep.subr.bf16.mxu0 0
        %1842 = vmatpush1.bf16.xpose.msra.mxu0 0
        %1843 = vmatprep.subr.bf16.mxu0 0
        %1844 = vmatpush1.bf16.xpose.msra.mxu0 0
        %1845 = vmatprep.subr.bf16.mxu0 0
        %1846 = vmatpush1.bf16.xpose.msra.mxu0 0
        %1847 = vmatprep.subr.bf16.mxu0 0
        %1848 = vmatpush1.bf16.xpose.msra.mxu0 0
        %1849 = vmatprep.subr.bf16.mxu0 0
        %1850 = vmatpush1.bf16.xpose.msra.mxu0 0
        %1851 = vmatprep.subr.bf16.mxu0 0
        %1852 = vmatpush1.bf16.xpose.msra.mxu0 0
        %1853 = vmatprep.subr.bf16.mxu0 0
        %1854 = vmatpush1.bf16.xpose.msra.mxu0 0
        %1855 = vmatprep.subr.bf16.mxu0 0
        %1856 = vmatpush1.bf16.xpose.msra.mxu0 0
        %1857 = vmatprep.subr.bf16.mxu0 0
        %1858 = vmatpush1.bf16.xpose.msra.mxu0 0
        %1859 = vmatprep.subr.bf16.mxu0 0
        %1860 = vmatpush1.bf16.xpose.msra.mxu0 0
        %1861 = vmatprep.subr.bf16.mxu0 0
        %1862 = vmatpush1.bf16.xpose.msra.mxu0 0
        %1863 = vmatprep.subr.bf16.mxu0 0
        %1864 = vmatpush1.bf16.xpose.msra.mxu0 0
        %1865 = vmatprep.subr.bf16.mxu0 0
        %1866 = vmatpush1.bf16.xpose.msra.mxu0 0
        %1867 = vmatprep.mubr.bf16.mxu0 0
        %1868 = vmatmul.mubr.bf16.gmra.mrb[0].mxu0 %v1830
        %v1869 = vpop.f32.mrb[0].mxu0
        %v1870 = vadd.f32 %v1270, %v1869
        %v1871 = vpop.f32.mrb[0].mxu0
        %v1872 = vpop.f32.mrb[0].mxu0
        %v1873 = vadd.f32 %v1271, %v1872
        %v1874 = vpop.f32.mrb[0].mxu0
        %1875 = vdwg.mxu0
        %vm1876 = vcmask 130048
        %v1877 = vsel %vm1876, %v1729, -inf
        %1878 = vmax.xlane.f32.xlu0 %v1877
        %v1879 = vpop.xlane.xlu0 %1878
        %v1880 = vsel %vm1876, %v1732, -inf
        %1881 = vmax.xlane.f32.xlu0 %v1880
        %v1882 = vpop.xlane.xlu0 %1881
        %v1883 = vsel %vm1876, %v1776, -inf
        %1884 = vmax.xlane.f32.xlu0 %v1883
        %v1885 = vpop.xlane.xlu0 %1884
        %v1886 = vsel %vm1876, %v1779, -inf
        %1887 = vmax.xlane.f32.xlu0 %v1886
        %v1888 = vpop.xlane.xlu0 %1887
        %v1889 = vsel %vm1876, %v1823, -inf
        %1890 = vmax.xlane.f32.xlu0 %v1889
        %v1891 = vpop.xlane.xlu0 %1890
        %v1892 = vsel %vm1876, %v1826, -inf
        %1893 = vmax.xlane.f32.xlu0 %v1892
        %v1894 = vpop.xlane.xlu0 %1893
        %v1895 = vsel %vm1876, %v1870, -inf
        %1896 = vmax.xlane.f32.xlu0 %v1895
        %v1897 = vpop.xlane.xlu0 %1896
        %v1898 = vsel %vm1876, %v1873, -inf
        %1899 = vmax.xlane.f32.xlu0 %v1898
        %v1900 = vpop.xlane.xlu0 %1899
        %v1901 = vsub.f32 %v1729, %v1879
        %v1902 = vsub.f32 %v1732, %v1882
        %v1903 = vsub.f32 %v1776, %v1885
        %v1904 = vsub.f32 %v1779, %v1888
        %v1905 = vsub.f32 %v1823, %v1891
        %v1906 = vsub.f32 %v1826, %v1894
        %v1907 = vsub.f32 %v1870, %v1897
        %v1908 = vsub.f32 %v1873, %v1900
        %v1909 = vmul.f32 %v1901, 1.442695
        %v1910 = vpow.pop %v1909
        %v1911 = vmul.f32 %v1902, 1.442695
        %v1912 = vpow.pop %v1911
        %v1913 = vmul.f32 %v1903, 1.442695
        %v1914 = vpow.pop %v1913
        %v1915 = vmul.f32 %v1904, 1.442695
        %v1916 = vpow.pop %v1915
        %v1917 = vmul.f32 %v1905, 1.442695
        %v1918 = vpow.pop %v1917
        %v1919 = vmul.f32 %v1906, 1.442695
        %v1920 = vpow.pop %v1919
        %v1921 = vmul.f32 %v1907, 1.442695
        %v1922 = vpow.pop %v1921
        %v1923 = vmul.f32 %v1908, 1.442695
        %v1924 = vpow.pop %v1923
        %v1925 = vsel %vm1876, %v1910, 0.0
        %1926 = vadd.xlane.f32.xlu0 %v1925
        %v1927 = vpop.xlane.xlu0 %1926
        %v1928 = vsel %vm1876, %v1912, 0.0
        %1929 = vadd.xlane.f32.xlu0 %v1928
        %v1930 = vpop.xlane.xlu0 %1929
        %v1931 = vsel %vm1876, %v1914, 0.0
        %1932 = vadd.xlane.f32.xlu0 %v1931
        %v1933 = vpop.xlane.xlu0 %1932
        %v1934 = vsel %vm1876, %v1916, 0.0
        %1935 = vadd.xlane.f32.xlu0 %v1934
        %v1936 = vpop.xlane.xlu0 %1935
        %v1937 = vsel %vm1876, %v1918, 0.0
        %1938 = vadd.xlane.f32.xlu0 %v1937
        %v1939 = vpop.xlane.xlu0 %1938
        %v1940 = vsel %vm1876, %v1920, 0.0
        %1941 = vadd.xlane.f32.xlu0 %v1940
        %v1942 = vpop.xlane.xlu0 %1941
        %v1943 = vsel %vm1876, %v1922, 0.0
        %1944 = vadd.xlane.f32.xlu0 %v1943
        %v1945 = vpop.xlane.xlu0 %1944
        %v1946 = vsel %vm1876, %v1924, 0.0
        %1947 = vadd.xlane.f32.xlu0 %v1946
        %v1948 = vpop.xlane.xlu0 %1947
        %v1949 = vrcp.pop %v1927
        %v1950 = vrcp.pop %v1930
        %v1951 = vrcp.pop %v1933
        %v1952 = vrcp.pop %v1936
        %v1953 = vrcp.pop %v1939
        %v1954 = vrcp.pop %v1942
        %v1955 = vrcp.pop %v1945
        %v1956 = vrcp.pop %v1948
        %v1957 = vmul.f32 %v1910, %v1949
        %v1958 = vmul.f32 %v1912, %v1950
        %v1959 = vmul.f32 %v1914, %v1951
        %v1960 = vmul.f32 %v1916, %v1952
        %v1961 = vmul.f32 %v1918, %v1953
        %v1962 = vmul.f32 %v1920, %v1954
        %v1963 = vmul.f32 %v1922, %v1955
        %v1964 = vmul.f32 %v1924, %v1956
        %v1965 = vpack.c.bf16 %v1958, %v1957
        %v1966 = vpack.c.bf16 %v1960, %v1959
        %v1967 = vpack.c.bf16 %v1962, %v1961
        %v1968 = vpack.c.bf16 %v1964, %v1963
        %v1969 = vpack.c.bf16 %v1652, %v1649
        %v1970 = vpack.c.bf16 %v1660, %v1657
        %v1971 = vpack.c.bf16 %v1668, %v1665
        %v1972 = vpack.c.bf16 %v1676, %v1673
        %v1974 = vsel %vm1876, %v1965, 0
        %1976 = vmatprep.subr.bf16.mxu0 0
        %1977 = vmatpush1.bf16.msra.mxu0 %v1969
        %1978 = vmatprep.subr.bf16.mxu0 0
        %1979 = vmatpush1.bf16.msra.mxu0 0
        %1980 = vmatprep.subr.bf16.mxu0 0
        %1981 = vmatpush1.bf16.msra.mxu0 0
        %1982 = vmatprep.subr.bf16.mxu0 0
        %1983 = vmatpush1.bf16.msra.mxu0 0
        %1984 = vmatprep.subr.bf16.mxu0 0
        %1985 = vmatpush1.bf16.msra.mxu0 0
        %1986 = vmatprep.subr.bf16.mxu0 0
        %1987 = vmatpush1.bf16.msra.mxu0 0
        %1988 = vmatprep.subr.bf16.mxu0 0
        %1989 = vmatpush1.bf16.msra.mxu0 0
        %1990 = vmatprep.subr.bf16.mxu0 0
        %1991 = vmatpush1.bf16.msra.mxu0 0
        %1992 = vmatprep.subr.bf16.mxu0 0
        %1993 = vmatpush1.bf16.msra.mxu0 0
        %1994 = vmatprep.subr.bf16.mxu0 0
        %1995 = vmatpush1.bf16.msra.mxu0 0
        %1996 = vmatprep.subr.bf16.mxu0 0
        %1997 = vmatpush1.bf16.msra.mxu0 0
        %1998 = vmatprep.subr.bf16.mxu0 0
        %1999 = vmatpush1.bf16.msra.mxu0 0
        %2000 = vmatprep.subr.bf16.mxu0 0
        %2001 = vmatpush1.bf16.msra.mxu0 0
        %2002 = vmatprep.subr.bf16.mxu0 0
        %2003 = vmatpush1.bf16.msra.mxu0 0
        %2004 = vmatprep.subr.bf16.mxu0 0
        %2005 = vmatpush1.bf16.msra.mxu0 0
        %2006 = vmatprep.subr.bf16.mxu0 0
        %2007 = vmatpush1.bf16.msra.mxu0 0
        %2008 = vmatprep.mubr.bf16.mxu0 0
        %2009 = vmatmul.mubr.bf16.gmra.mrb[0].mxu0 %v1974
        %v2010 = vpop.f32.mrb[0].mxu0
        %v2011 = vadd.f32 0.0, %v2010
        %v2012 = vpop.f32.mrb[0].mxu0
        %v2013 = vpop.f32.mrb[0].mxu0
        %v2014 = vadd.f32 0.0, %v2013
        %v2015 = vpop.f32.mrb[0].mxu0
        %2016 = vdwg.mxu0
        %v2018 = vsel %vm1876, %v1966, 0
        %2020 = vmatprep.subr.bf16.mxu0 0
        %2021 = vmatpush1.bf16.msra.mxu0 %v1970
        %2022 = vmatprep.subr.bf16.mxu0 0
        %2023 = vmatpush1.bf16.msra.mxu0 0
        %2024 = vmatprep.subr.bf16.mxu0 0
        %2025 = vmatpush1.bf16.msra.mxu0 0
        %2026 = vmatprep.subr.bf16.mxu0 0
        %2027 = vmatpush1.bf16.msra.mxu0 0
        %2028 = vmatprep.subr.bf16.mxu0 0
        %2029 = vmatpush1.bf16.msra.mxu0 0
        %2030 = vmatprep.subr.bf16.mxu0 0
        %2031 = vmatpush1.bf16.msra.mxu0 0
        %2032 = vmatprep.subr.bf16.mxu0 0
        %2033 = vmatpush1.bf16.msra.mxu0 0
        %2034 = vmatprep.subr.bf16.mxu0 0
        %2035 = vmatpush1.bf16.msra.mxu0 0
        %2036 = vmatprep.subr.bf16.mxu0 0
        %2037 = vmatpush1.bf16.msra.mxu0 0
        %2038 = vmatprep.subr.bf16.mxu0 0
        %2039 = vmatpush1.bf16.msra.mxu0 0
        %2040 = vmatprep.subr.bf16.mxu0 0
        %2041 = vmatpush1.bf16.msra.mxu0 0
        %2042 = vmatprep.subr.bf16.mxu0 0
        %2043 = vmatpush1.bf16.msra.mxu0 0
        %2044 = vmatprep.subr.bf16.mxu0 0
        %2045 = vmatpush1.bf16.msra.mxu0 0
        %2046 = vmatprep.subr.bf16.mxu0 0
        %2047 = vmatpush1.bf16.msra.mxu0 0
        %2048 = vmatprep.subr.bf16.mxu0 0
        %2049 = vmatpush1.bf16.msra.mxu0 0
        %2050 = vmatprep.subr.bf16.mxu0 0
        %2051 = vmatpush1.bf16.msra.mxu0 0
        %2052 = vmatprep.mubr.bf16.mxu0 0
        %2053 = vmatmul.mubr.bf16.gmra.mrb[0].mxu0 %v2018
        %v2054 = vpop.f32.mrb[0].mxu0
        %v2055 = vadd.f32 0.0, %v2054
        %v2056 = vpop.f32.mrb[0].mxu0
        %v2057 = vpop.f32.mrb[0].mxu0
        %v2058 = vadd.f32 0.0, %v2057
        %v2059 = vpop.f32.mrb[0].mxu0
        %2060 = vdwg.mxu0
        %v2062 = vsel %vm1876, %v1967, 0
        %2064 = vmatprep.subr.bf16.mxu0 0
        %2065 = vmatpush1.bf16.msra.mxu0 %v1971
        %2066 = vmatprep.subr.bf16.mxu0 0
        %2067 = vmatpush1.bf16.msra.mxu0 0
        %2068 = vmatprep.subr.bf16.mxu0 0
        %2069 = vmatpush1.bf16.msra.mxu0 0
        %2070 = vmatprep.subr.bf16.mxu0 0
        %2071 = vmatpush1.bf16.msra.mxu0 0
        %2072 = vmatprep.subr.bf16.mxu0 0
        %2073 = vmatpush1.bf16.msra.mxu0 0
        %2074 = vmatprep.subr.bf16.mxu0 0
        %2075 = vmatpush1.bf16.msra.mxu0 0
        %2076 = vmatprep.subr.bf16.mxu0 0
        %2077 = vmatpush1.bf16.msra.mxu0 0
        %2078 = vmatprep.subr.bf16.mxu0 0
        %2079 = vmatpush1.bf16.msra.mxu0 0
        %2080 = vmatprep.subr.bf16.mxu0 0
        %2081 = vmatpush1.bf16.msra.mxu0 0
        %2082 = vmatprep.subr.bf16.mxu0 0
        %2083 = vmatpush1.bf16.msra.mxu0 0
        %2084 = vmatprep.subr.bf16.mxu0 0
        %2085 = vmatpush1.bf16.msra.mxu0 0
        %2086 = vmatprep.subr.bf16.mxu0 0
        %2087 = vmatpush1.bf16.msra.mxu0 0
        %2088 = vmatprep.subr.bf16.mxu0 0
        %2089 = vmatpush1.bf16.msra.mxu0 0
        %2090 = vmatprep.subr.bf16.mxu0 0
        %2091 = vmatpush1.bf16.msra.mxu0 0
        %2092 = vmatprep.subr.bf16.mxu0 0
        %2093 = vmatpush1.bf16.msra.mxu0 0
        %2094 = vmatprep.subr.bf16.mxu0 0
        %2095 = vmatpush1.bf16.msra.mxu0 0
        %2096 = vmatprep.mubr.bf16.mxu0 0
        %2097 = vmatmul.mubr.bf16.gmra.mrb[0].mxu0 %v2062
        %v2098 = vpop.f32.mrb[0].mxu0
        %v2099 = vadd.f32 0.0, %v2098
        %v2100 = vpop.f32.mrb[0].mxu0
        %v2101 = vpop.f32.mrb[0].mxu0
        %v2102 = vadd.f32 0.0, %v2101
        %v2103 = vpop.f32.mrb[0].mxu0
        %2104 = vdwg.mxu0
        %v2106 = vsel %vm1876, %v1968, 0
        %2108 = vmatprep.subr.bf16.mxu0 0
        %2109 = vmatpush1.bf16.msra.mxu0 %v1972
        %2110 = vmatprep.subr.bf16.mxu0 0
        %2111 = vmatpush1.bf16.msra.mxu0 0
        %2112 = vmatprep.subr.bf16.mxu0 0
        %2113 = vmatpush1.bf16.msra.mxu0 0
        %2114 = vmatprep.subr.bf16.mxu0 0
        %2115 = vmatpush1.bf16.msra.mxu0 0
        %2116 = vmatprep.subr.bf16.mxu0 0
        %2117 = vmatpush1.bf16.msra.mxu0 0
        %2118 = vmatprep.subr.bf16.mxu0 0
        %2119 = vmatpush1.bf16.msra.mxu0 0
        %2120 = vmatprep.subr.bf16.mxu0 0
        %2121 = vmatpush1.bf16.msra.mxu0 0
        %2122 = vmatprep.subr.bf16.mxu0 0
        %2123 = vmatpush1.bf16.msra.mxu0 0
        %2124 = vmatprep.subr.bf16.mxu0 0
        %2125 = vmatpush1.bf16.msra.mxu0 0
        %2126 = vmatprep.subr.bf16.mxu0 0
        %2127 = vmatpush1.bf16.msra.mxu0 0
        %2128 = vmatprep.subr.bf16.mxu0 0
        %2129 = vmatpush1.bf16.msra.mxu0 0
        %2130 = vmatprep.subr.bf16.mxu0 0
        %2131 = vmatpush1.bf16.msra.mxu0 0
        %2132 = vmatprep.subr.bf16.mxu0 0
        %2133 = vmatpush1.bf16.msra.mxu0 0
        %2134 = vmatprep.subr.bf16.mxu0 0
        %2135 = vmatpush1.bf16.msra.mxu0 0
        %2136 = vmatprep.subr.bf16.mxu0 0
        %2137 = vmatpush1.bf16.msra.mxu0 0
        %2138 = vmatprep.subr.bf16.mxu0 0
        %2139 = vmatpush1.bf16.msra.mxu0 0
        %2140 = vmatprep.mubr.bf16.mxu0 0
        %2141 = vmatmul.mubr.bf16.gmra.mrb[0].mxu0 %v2106
        %v2142 = vpop.f32.mrb[0].mxu0
        %v2143 = vadd.f32 0.0, %v2142
        %v2144 = vpop.f32.mrb[0].mxu0
        %v2145 = vpop.f32.mrb[0].mxu0
        %v2146 = vadd.f32 0.0, %v2145
        %v2147 = vpop.f32.mrb[0].mxu0
        %2148 = vdwg.mxu0
        %2150 = vrot.lane.b32.xlu0 %v1679, 120
        %v2151 = vpop.permute.xlu0 %2150
        %2153 = vrot.lane.b32.xlu0 %v1683, 120
        %v2154 = vpop.permute.xlu0 %2153
        %v2156 = vsel %vm1687, %v2151, 0
        %v2159 = vsel %vm1687, %v2154, 0
        %2161 = vmatprep.subr.bf16.mxu0 0
        %2162 = vmatpush1.bf16.xpose.msra.mxu0 %v2159
        %2163 = vmatprep.subr.bf16.mxu0 0
        %2164 = vmatpush1.bf16.xpose.msra.mxu0 0
        %2165 = vmatprep.subr.bf16.mxu0 0
        %2166 = vmatpush1.bf16.xpose.msra.mxu0 0
        %2167 = vmatprep.subr.bf16.mxu0 0
        %2168 = vmatpush1.bf16.xpose.msra.mxu0 0
        %2169 = vmatprep.subr.bf16.mxu0 0
        %2170 = vmatpush1.bf16.xpose.msra.mxu0 0
        %2171 = vmatprep.subr.bf16.mxu0 0
        %2172 = vmatpush1.bf16.xpose.msra.mxu0 0
        %2173 = vmatprep.subr.bf16.mxu0 0
        %2174 = vmatpush1.bf16.xpose.msra.mxu0 0
        %2175 = vmatprep.subr.bf16.mxu0 0
        %2176 = vmatpush1.bf16.xpose.msra.mxu0 0
        %2177 = vmatprep.subr.bf16.mxu0 0
        %2178 = vmatpush1.bf16.xpose.msra.mxu0 0
        %2179 = vmatprep.subr.bf16.mxu0 0
        %2180 = vmatpush1.bf16.xpose.msra.mxu0 0
        %2181 = vmatprep.subr.bf16.mxu0 0
        %2182 = vmatpush1.bf16.xpose.msra.mxu0 0
        %2183 = vmatprep.subr.bf16.mxu0 0
        %2184 = vmatpush1.bf16.xpose.msra.mxu0 0
        %2185 = vmatprep.subr.bf16.mxu0 0
        %2186 = vmatpush1.bf16.xpose.msra.mxu0 0
        %2187 = vmatprep.subr.bf16.mxu0 0
        %2188 = vmatpush1.bf16.xpose.msra.mxu0 0
        %2189 = vmatprep.subr.bf16.mxu0 0
        %2190 = vmatpush1.bf16.xpose.msra.mxu0 0
        %2191 = vmatprep.subr.bf16.mxu0 0
        %2192 = vmatpush1.bf16.xpose.msra.mxu0 0
        %2193 = vmatprep.mubr.bf16.mxu0 0
        %2194 = vmatmul.mubr.bf16.gmra.mrb[0].mxu0 %v2156
        %v2195 = vpop.f32.mrb[0].mxu0
        %v2196 = vadd.f32 %v1264, %v2195
        %v2197 = vpop.f32.mrb[0].mxu0
        %v2198 = vpop.f32.mrb[0].mxu0
        %v2199 = vadd.f32 %v1265, %v2198
        %v2200 = vpop.f32.mrb[0].mxu0
        %2201 = vdwg.mxu0
        %2203 = vrot.lane.b32.xlu0 %v1680, 120
        %v2204 = vpop.permute.xlu0 %2203
        %2206 = vrot.lane.b32.xlu0 %v1684, 120
        %v2207 = vpop.permute.xlu0 %2206
        %v2209 = vsel %vm1687, %v2204, 0
        %v2212 = vsel %vm1687, %v2207, 0
        %2214 = vmatprep.subr.bf16.mxu0 0
        %2215 = vmatpush1.bf16.xpose.msra.mxu0 %v2212
        %2216 = vmatprep.subr.bf16.mxu0 0
        %2217 = vmatpush1.bf16.xpose.msra.mxu0 0
        %2218 = vmatprep.subr.bf16.mxu0 0
        %2219 = vmatpush1.bf16.xpose.msra.mxu0 0
        %2220 = vmatprep.subr.bf16.mxu0 0
        %2221 = vmatpush1.bf16.xpose.msra.mxu0 0
        %2222 = vmatprep.subr.bf16.mxu0 0
        %2223 = vmatpush1.bf16.xpose.msra.mxu0 0
        %2224 = vmatprep.subr.bf16.mxu0 0
        %2225 = vmatpush1.bf16.xpose.msra.mxu0 0
        %2226 = vmatprep.subr.bf16.mxu0 0
        %2227 = vmatpush1.bf16.xpose.msra.mxu0 0
        %2228 = vmatprep.subr.bf16.mxu0 0
        %2229 = vmatpush1.bf16.xpose.msra.mxu0 0
        %2230 = vmatprep.subr.bf16.mxu0 0
        %2231 = vmatpush1.bf16.xpose.msra.mxu0 0
        %2232 = vmatprep.subr.bf16.mxu0 0
        %2233 = vmatpush1.bf16.xpose.msra.mxu0 0
        %2234 = vmatprep.subr.bf16.mxu0 0
        %2235 = vmatpush1.bf16.xpose.msra.mxu0 0
        %2236 = vmatprep.subr.bf16.mxu0 0
        %2237 = vmatpush1.bf16.xpose.msra.mxu0 0
        %2238 = vmatprep.subr.bf16.mxu0 0
        %2239 = vmatpush1.bf16.xpose.msra.mxu0 0
        %2240 = vmatprep.subr.bf16.mxu0 0
        %2241 = vmatpush1.bf16.xpose.msra.mxu0 0
        %2242 = vmatprep.subr.bf16.mxu0 0
        %2243 = vmatpush1.bf16.xpose.msra.mxu0 0
        %2244 = vmatprep.subr.bf16.mxu0 0
        %2245 = vmatpush1.bf16.xpose.msra.mxu0 0
        %2246 = vmatprep.mubr.bf16.mxu0 0
        %2247 = vmatmul.mubr.bf16.gmra.mrb[0].mxu0 %v2209
        %v2248 = vpop.f32.mrb[0].mxu0
        %v2249 = vadd.f32 %v1266, %v2248
        %v2250 = vpop.f32.mrb[0].mxu0
        %v2251 = vpop.f32.mrb[0].mxu0
        %v2252 = vadd.f32 %v1267, %v2251
        %v2253 = vpop.f32.mrb[0].mxu0
        %2254 = vdwg.mxu0
        %2256 = vrot.lane.b32.xlu0 %v1681, 120
        %v2257 = vpop.permute.xlu0 %2256
        %2259 = vrot.lane.b32.xlu0 %v1685, 120
        %v2260 = vpop.permute.xlu0 %2259
        %v2262 = vsel %vm1687, %v2257, 0
        %v2265 = vsel %vm1687, %v2260, 0
        %2267 = vmatprep.subr.bf16.mxu0 0
        %2268 = vmatpush1.bf16.xpose.msra.mxu0 %v2265
        %2269 = vmatprep.subr.bf16.mxu0 0
        %2270 = vmatpush1.bf16.xpose.msra.mxu0 0
        %2271 = vmatprep.subr.bf16.mxu0 0
        %2272 = vmatpush1.bf16.xpose.msra.mxu0 0
        %2273 = vmatprep.subr.bf16.mxu0 0
        %2274 = vmatpush1.bf16.xpose.msra.mxu0 0
        %2275 = vmatprep.subr.bf16.mxu0 0
        %2276 = vmatpush1.bf16.xpose.msra.mxu0 0
        %2277 = vmatprep.subr.bf16.mxu0 0
        %2278 = vmatpush1.bf16.xpose.msra.mxu0 0
        %2279 = vmatprep.subr.bf16.mxu0 0
        %2280 = vmatpush1.bf16.xpose.msra.mxu0 0
        %2281 = vmatprep.subr.bf16.mxu0 0
        %2282 = vmatpush1.bf16.xpose.msra.mxu0 0
        %2283 = vmatprep.subr.bf16.mxu0 0
        %2284 = vmatpush1.bf16.xpose.msra.mxu0 0
        %2285 = vmatprep.subr.bf16.mxu0 0
        %2286 = vmatpush1.bf16.xpose.msra.mxu0 0
        %2287 = vmatprep.subr.bf16.mxu0 0
        %2288 = vmatpush1.bf16.xpose.msra.mxu0 0
        %2289 = vmatprep.subr.bf16.mxu0 0
        %2290 = vmatpush1.bf16.xpose.msra.mxu0 0
        %2291 = vmatprep.subr.bf16.mxu0 0
        %2292 = vmatpush1.bf16.xpose.msra.mxu0 0
        %2293 = vmatprep.subr.bf16.mxu0 0
        %2294 = vmatpush1.bf16.xpose.msra.mxu0 0
        %2295 = vmatprep.subr.bf16.mxu0 0
        %2296 = vmatpush1.bf16.xpose.msra.mxu0 0
        %2297 = vmatprep.subr.bf16.mxu0 0
        %2298 = vmatpush1.bf16.xpose.msra.mxu0 0
        %2299 = vmatprep.mubr.bf16.mxu0 0
        %2300 = vmatmul.mubr.bf16.gmra.mrb[0].mxu0 %v2262
        %v2301 = vpop.f32.mrb[0].mxu0
        %v2302 = vadd.f32 %v1268, %v2301
        %v2303 = vpop.f32.mrb[0].mxu0
        %v2304 = vpop.f32.mrb[0].mxu0
        %v2305 = vadd.f32 %v1269, %v2304
        %v2306 = vpop.f32.mrb[0].mxu0
        %2307 = vdwg.mxu0
        %2309 = vrot.lane.b32.xlu0 %v1682, 120
        %v2310 = vpop.permute.xlu0 %2309
        %2312 = vrot.lane.b32.xlu0 %v1686, 120
        %v2313 = vpop.permute.xlu0 %2312
        %v2315 = vsel %vm1687, %v2310, 0
        %v2318 = vsel %vm1687, %v2313, 0
        %2320 = vmatprep.subr.bf16.mxu0 0
        %2321 = vmatpush1.bf16.xpose.msra.mxu0 %v2318
        %2322 = vmatprep.subr.bf16.mxu0 0
        %2323 = vmatpush1.bf16.xpose.msra.mxu0 0
        %2324 = vmatprep.subr.bf16.mxu0 0
        %2325 = vmatpush1.bf16.xpose.msra.mxu0 0
        %2326 = vmatprep.subr.bf16.mxu0 0
        %2327 = vmatpush1.bf16.xpose.msra.mxu0 0
        %2328 = vmatprep.subr.bf16.mxu0 0
        %2329 = vmatpush1.bf16.xpose.msra.mxu0 0
        %2330 = vmatprep.subr.bf16.mxu0 0
        %2331 = vmatpush1.bf16.xpose.msra.mxu0 0
        %2332 = vmatprep.subr.bf16.mxu0 0
        %2333 = vmatpush1.bf16.xpose.msra.mxu0 0
        %2334 = vmatprep.subr.bf16.mxu0 0
        %2335 = vmatpush1.bf16.xpose.msra.mxu0 0
        %2336 = vmatprep.subr.bf16.mxu0 0
        %2337 = vmatpush1.bf16.xpose.msra.mxu0 0
        %2338 = vmatprep.subr.bf16.mxu0 0
        %2339 = vmatpush1.bf16.xpose.msra.mxu0 0
        %2340 = vmatprep.subr.bf16.mxu0 0
        %2341 = vmatpush1.bf16.xpose.msra.mxu0 0
        %2342 = vmatprep.subr.bf16.mxu0 0
        %2343 = vmatpush1.bf16.xpose.msra.mxu0 0
        %2344 = vmatprep.subr.bf16.mxu0 0
        %2345 = vmatpush1.bf16.xpose.msra.mxu0 0
        %2346 = vmatprep.subr.bf16.mxu0 0
        %2347 = vmatpush1.bf16.xpose.msra.mxu0 0
        %2348 = vmatprep.subr.bf16.mxu0 0
        %2349 = vmatpush1.bf16.xpose.msra.mxu0 0
        %2350 = vmatprep.subr.bf16.mxu0 0
        %2351 = vmatpush1.bf16.xpose.msra.mxu0 0
        %2352 = vmatprep.mubr.bf16.mxu0 0
        %2353 = vmatmul.mubr.bf16.gmra.mrb[0].mxu0 %v2315
        %v2354 = vpop.f32.mrb[0].mxu0
        %v2355 = vadd.f32 %v1270, %v2354
        %v2356 = vpop.f32.mrb[0].mxu0
        %v2357 = vpop.f32.mrb[0].mxu0
        %v2358 = vadd.f32 %v1271, %v2357
        %v2359 = vpop.f32.mrb[0].mxu0
        %2360 = vdwg.mxu0
        %v2361 = vsel %vm1876, %v2196, -inf
        %2362 = vmax.xlane.f32.xlu0 %v2361
        %v2363 = vpop.xlane.xlu0 %2362
        %v2364 = vsel %vm1876, %v2199, -inf
        %2365 = vmax.xlane.f32.xlu0 %v2364
        %v2366 = vpop.xlane.xlu0 %2365
        %v2367 = vsel %vm1876, %v2249, -inf
        %2368 = vmax.xlane.f32.xlu0 %v2367
        %v2369 = vpop.xlane.xlu0 %2368
        %v2370 = vsel %vm1876, %v2252, -inf
        %2371 = vmax.xlane.f32.xlu0 %v2370
        %v2372 = vpop.xlane.xlu0 %2371
        %v2373 = vsel %vm1876, %v2302, -inf
        %2374 = vmax.xlane.f32.xlu0 %v2373
        %v2375 = vpop.xlane.xlu0 %2374
        %v2376 = vsel %vm1876, %v2305, -inf
        %2377 = vmax.xlane.f32.xlu0 %v2376
        %v2378 = vpop.xlane.xlu0 %2377
        %v2379 = vsel %vm1876, %v2355, -inf
        %2380 = vmax.xlane.f32.xlu0 %v2379
        %v2381 = vpop.xlane.xlu0 %2380
        %v2382 = vsel %vm1876, %v2358, -inf
        %2383 = vmax.xlane.f32.xlu0 %v2382
        %v2384 = vpop.xlane.xlu0 %2383
        %v2385 = vsub.f32 %v2196, %v2363
        %v2386 = vsub.f32 %v2199, %v2366
        %v2387 = vsub.f32 %v2249, %v2369
        %v2388 = vsub.f32 %v2252, %v2372
        %v2389 = vsub.f32 %v2302, %v2375
        %v2390 = vsub.f32 %v2305, %v2378
        %v2391 = vsub.f32 %v2355, %v2381
        %v2392 = vsub.f32 %v2358, %v2384
        %v2393 = vmul.f32 %v2385, 1.442695
        %v2394 = vpow.pop %v2393
        %v2395 = vmul.f32 %v2386, 1.442695
        %v2396 = vpow.pop %v2395
        %v2397 = vmul.f32 %v2387, 1.442695
        %v2398 = vpow.pop %v2397
        %v2399 = vmul.f32 %v2388, 1.442695
        %v2400 = vpow.pop %v2399
        %v2401 = vmul.f32 %v2389, 1.442695
        %v2402 = vpow.pop %v2401
        %v2403 = vmul.f32 %v2390, 1.442695
        %v2404 = vpow.pop %v2403
        %v2405 = vmul.f32 %v2391, 1.442695
        %v2406 = vpow.pop %v2405
        %v2407 = vmul.f32 %v2392, 1.442695
        %v2408 = vpow.pop %v2407
        %v2409 = vsel %vm1876, %v2394, 0.0
        %2410 = vadd.xlane.f32.xlu0 %v2409
        %v2411 = vpop.xlane.xlu0 %2410
        %v2412 = vsel %vm1876, %v2396, 0.0
        %2413 = vadd.xlane.f32.xlu0 %v2412
        %v2414 = vpop.xlane.xlu0 %2413
        %v2415 = vsel %vm1876, %v2398, 0.0
        %2416 = vadd.xlane.f32.xlu0 %v2415
        %v2417 = vpop.xlane.xlu0 %2416
        %v2418 = vsel %vm1876, %v2400, 0.0
        %2419 = vadd.xlane.f32.xlu0 %v2418
        %v2420 = vpop.xlane.xlu0 %2419
        %v2421 = vsel %vm1876, %v2402, 0.0
        %2422 = vadd.xlane.f32.xlu0 %v2421
        %v2423 = vpop.xlane.xlu0 %2422
        %v2424 = vsel %vm1876, %v2404, 0.0
        %2425 = vadd.xlane.f32.xlu0 %v2424
        %v2426 = vpop.xlane.xlu0 %2425
        %v2427 = vsel %vm1876, %v2406, 0.0
        %2428 = vadd.xlane.f32.xlu0 %v2427
        %v2429 = vpop.xlane.xlu0 %2428
        %v2430 = vsel %vm1876, %v2408, 0.0
        %2431 = vadd.xlane.f32.xlu0 %v2430
        %v2432 = vpop.xlane.xlu0 %2431
        %v2433 = vrcp.pop %v2411
        %v2434 = vrcp.pop %v2414
        %v2435 = vrcp.pop %v2417
        %v2436 = vrcp.pop %v2420
        %v2437 = vrcp.pop %v2423
        %v2438 = vrcp.pop %v2426
        %v2439 = vrcp.pop %v2429
        %v2440 = vrcp.pop %v2432
        %v2441 = vmul.f32 %v2394, %v2433
        %v2442 = vmul.f32 %v2396, %v2434
        %v2443 = vmul.f32 %v2398, %v2435
        %v2444 = vmul.f32 %v2400, %v2436
        %v2445 = vmul.f32 %v2402, %v2437
        %v2446 = vmul.f32 %v2404, %v2438
        %v2447 = vmul.f32 %v2406, %v2439
        %v2448 = vmul.f32 %v2408, %v2440
        %v2449 = vpack.c.bf16 %v2442, %v2441
        %v2450 = vpack.c.bf16 %v2444, %v2443
        %v2451 = vpack.c.bf16 %v2446, %v2445
        %v2452 = vpack.c.bf16 %v2448, %v2447
        %2454 = vrot.lane.b32.xlu0 %v1969, 120
        %v2455 = vpop.permute.xlu0 %2454
        %v2458 = vsel %vm1876, %v2449, 0
        %2460 = vmatprep.subr.bf16.mxu0 0
        %2461 = vmatpush1.bf16.msra.mxu0 %v2455
        %2462 = vmatprep.subr.bf16.mxu0 0
        %2463 = vmatpush1.bf16.msra.mxu0 0
        %2464 = vmatprep.subr.bf16.mxu0 0
        %2465 = vmatpush1.bf16.msra.mxu0 0
        %2466 = vmatprep.subr.bf16.mxu0 0
        %2467 = vmatpush1.bf16.msra.mxu0 0
        %2468 = vmatprep.subr.bf16.mxu0 0
        %2469 = vmatpush1.bf16.msra.mxu0 0
        %2470 = vmatprep.subr.bf16.mxu0 0
        %2471 = vmatpush1.bf16.msra.mxu0 0
        %2472 = vmatprep.subr.bf16.mxu0 0
        %2473 = vmatpush1.bf16.msra.mxu0 0
        %2474 = vmatprep.subr.bf16.mxu0 0
        %2475 = vmatpush1.bf16.msra.mxu0 0
        %2476 = vmatprep.subr.bf16.mxu0 0
        %2477 = vmatpush1.bf16.msra.mxu0 0
        %2478 = vmatprep.subr.bf16.mxu0 0
        %2479 = vmatpush1.bf16.msra.mxu0 0
        %2480 = vmatprep.subr.bf16.mxu0 0
        %2481 = vmatpush1.bf16.msra.mxu0 0
        %2482 = vmatprep.subr.bf16.mxu0 0
        %2483 = vmatpush1.bf16.msra.mxu0 0
        %2484 = vmatprep.subr.bf16.mxu0 0
        %2485 = vmatpush1.bf16.msra.mxu0 0
        %2486 = vmatprep.subr.bf16.mxu0 0
        %2487 = vmatpush1.bf16.msra.mxu0 0
        %2488 = vmatprep.subr.bf16.mxu0 0
        %2489 = vmatpush1.bf16.msra.mxu0 0
        %2490 = vmatprep.subr.bf16.mxu0 0
        %2491 = vmatpush1.bf16.msra.mxu0 0
        %2492 = vmatprep.mubr.bf16.mxu0 0
        %2493 = vmatmul.mubr.bf16.gmra.mrb[0].mxu0 %v2458
        %v2494 = vpop.f32.mrb[0].mxu0
        %v2495 = vadd.f32 0.0, %v2494
        %v2496 = vpop.f32.mrb[0].mxu0
        %v2497 = vpop.f32.mrb[0].mxu0
        %v2498 = vadd.f32 0.0, %v2497
        %v2499 = vpop.f32.mrb[0].mxu0
        %2500 = vdwg.mxu0
        %2502 = vrot.lane.b32.xlu0 %v1970, 120
        %v2503 = vpop.permute.xlu0 %2502
        %v2506 = vsel %vm1876, %v2450, 0
        %2508 = vmatprep.subr.bf16.mxu0 0
        %2509 = vmatpush1.bf16.msra.mxu0 %v2503
        %2510 = vmatprep.subr.bf16.mxu0 0
        %2511 = vmatpush1.bf16.msra.mxu0 0
        %2512 = vmatprep.subr.bf16.mxu0 0
        %2513 = vmatpush1.bf16.msra.mxu0 0
        %2514 = vmatprep.subr.bf16.mxu0 0
        %2515 = vmatpush1.bf16.msra.mxu0 0
        %2516 = vmatprep.subr.bf16.mxu0 0
        %2517 = vmatpush1.bf16.msra.mxu0 0
        %2518 = vmatprep.subr.bf16.mxu0 0
        %2519 = vmatpush1.bf16.msra.mxu0 0
        %2520 = vmatprep.subr.bf16.mxu0 0
        %2521 = vmatpush1.bf16.msra.mxu0 0
        %2522 = vmatprep.subr.bf16.mxu0 0
        %2523 = vmatpush1.bf16.msra.mxu0 0
        %2524 = vmatprep.subr.bf16.mxu0 0
        %2525 = vmatpush1.bf16.msra.mxu0 0
        %2526 = vmatprep.subr.bf16.mxu0 0
        %2527 = vmatpush1.bf16.msra.mxu0 0
        %2528 = vmatprep.subr.bf16.mxu0 0
        %2529 = vmatpush1.bf16.msra.mxu0 0
        %2530 = vmatprep.subr.bf16.mxu0 0
        %2531 = vmatpush1.bf16.msra.mxu0 0
        %2532 = vmatprep.subr.bf16.mxu0 0
        %2533 = vmatpush1.bf16.msra.mxu0 0
        %2534 = vmatprep.subr.bf16.mxu0 0
        %2535 = vmatpush1.bf16.msra.mxu0 0
        %2536 = vmatprep.subr.bf16.mxu0 0
        %2537 = vmatpush1.bf16.msra.mxu0 0
        %2538 = vmatprep.subr.bf16.mxu0 0
        %2539 = vmatpush1.bf16.msra.mxu0 0
        %2540 = vmatprep.mubr.bf16.mxu0 0
        %2541 = vmatmul.mubr.bf16.gmra.mrb[0].mxu0 %v2506
        %v2542 = vpop.f32.mrb[0].mxu0
        %v2543 = vadd.f32 0.0, %v2542
        %v2544 = vpop.f32.mrb[0].mxu0
        %v2545 = vpop.f32.mrb[0].mxu0
        %v2546 = vadd.f32 0.0, %v2545
        %v2547 = vpop.f32.mrb[0].mxu0
        %2548 = vdwg.mxu0
        %2550 = vrot.lane.b32.xlu0 %v1971, 120
        %v2551 = vpop.permute.xlu0 %2550
        %v2554 = vsel %vm1876, %v2451, 0
        %2556 = vmatprep.subr.bf16.mxu0 0
        %2557 = vmatpush1.bf16.msra.mxu0 %v2551
        %2558 = vmatprep.subr.bf16.mxu0 0
        %2559 = vmatpush1.bf16.msra.mxu0 0
        %2560 = vmatprep.subr.bf16.mxu0 0
        %2561 = vmatpush1.bf16.msra.mxu0 0
        %2562 = vmatprep.subr.bf16.mxu0 0
        %2563 = vmatpush1.bf16.msra.mxu0 0
        %2564 = vmatprep.subr.bf16.mxu0 0
        %2565 = vmatpush1.bf16.msra.mxu0 0
        %2566 = vmatprep.subr.bf16.mxu0 0
        %2567 = vmatpush1.bf16.msra.mxu0 0
        %2568 = vmatprep.subr.bf16.mxu0 0
        %2569 = vmatpush1.bf16.msra.mxu0 0
        %2570 = vmatprep.subr.bf16.mxu0 0
        %2571 = vmatpush1.bf16.msra.mxu0 0
        %2572 = vmatprep.subr.bf16.mxu0 0
        %2573 = vmatpush1.bf16.msra.mxu0 0
        %2574 = vmatprep.subr.bf16.mxu0 0
        %2575 = vmatpush1.bf16.msra.mxu0 0
        %2576 = vmatprep.subr.bf16.mxu0 0
        %2577 = vmatpush1.bf16.msra.mxu0 0
        %2578 = vmatprep.subr.bf16.mxu0 0
        %2579 = vmatpush1.bf16.msra.mxu0 0
        %2580 = vmatprep.subr.bf16.mxu0 0
        %2581 = vmatpush1.bf16.msra.mxu0 0
        %2582 = vmatprep.subr.bf16.mxu0 0
        %2583 = vmatpush1.bf16.msra.mxu0 0
        %2584 = vmatprep.subr.bf16.mxu0 0
        %2585 = vmatpush1.bf16.msra.mxu0 0
        %2586 = vmatprep.subr.bf16.mxu0 0
        %2587 = vmatpush1.bf16.msra.mxu0 0
        %2588 = vmatprep.mubr.bf16.mxu0 0
        %2589 = vmatmul.mubr.bf16.gmra.mrb[0].mxu0 %v2554
        %v2590 = vpop.f32.mrb[0].mxu0
        %v2591 = vadd.f32 0.0, %v2590
        %v2592 = vpop.f32.mrb[0].mxu0
        %v2593 = vpop.f32.mrb[0].mxu0
        %v2594 = vadd.f32 0.0, %v2593
        %v2595 = vpop.f32.mrb[0].mxu0
        %2596 = vdwg.mxu0
        %2598 = vrot.lane.b32.xlu0 %v1972, 120
        %v2599 = vpop.permute.xlu0 %2598
        %v2602 = vsel %vm1876, %v2452, 0
        %2604 = vmatprep.subr.bf16.mxu0 0
        %2605 = vmatpush1.bf16.msra.mxu0 %v2599
        %2606 = vmatprep.subr.bf16.mxu0 0
        %2607 = vmatpush1.bf16.msra.mxu0 0
        %2608 = vmatprep.subr.bf16.mxu0 0
        %2609 = vmatpush1.bf16.msra.mxu0 0
        %2610 = vmatprep.subr.bf16.mxu0 0
        %2611 = vmatpush1.bf16.msra.mxu0 0
        %2612 = vmatprep.subr.bf16.mxu0 0
        %2613 = vmatpush1.bf16.msra.mxu0 0
        %2614 = vmatprep.subr.bf16.mxu0 0
        %2615 = vmatpush1.bf16.msra.mxu0 0
        %2616 = vmatprep.subr.bf16.mxu0 0
        %2617 = vmatpush1.bf16.msra.mxu0 0
        %2618 = vmatprep.subr.bf16.mxu0 0
        %2619 = vmatpush1.bf16.msra.mxu0 0
        %2620 = vmatprep.subr.bf16.mxu0 0
        %2621 = vmatpush1.bf16.msra.mxu0 0
        %2622 = vmatprep.subr.bf16.mxu0 0
        %2623 = vmatpush1.bf16.msra.mxu0 0
        %2624 = vmatprep.subr.bf16.mxu0 0
        %2625 = vmatpush1.bf16.msra.mxu0 0
        %2626 = vmatprep.subr.bf16.mxu0 0
        %2627 = vmatpush1.bf16.msra.mxu0 0
        %2628 = vmatprep.subr.bf16.mxu0 0
        %2629 = vmatpush1.bf16.msra.mxu0 0
        %2630 = vmatprep.subr.bf16.mxu0 0
        %2631 = vmatpush1.bf16.msra.mxu0 0
        %2632 = vmatprep.subr.bf16.mxu0 0
        %2633 = vmatpush1.bf16.msra.mxu0 0
        %2634 = vmatprep.subr.bf16.mxu0 0
        %2635 = vmatpush1.bf16.msra.mxu0 0
        %2636 = vmatprep.mubr.bf16.mxu0 0
        %2637 = vmatmul.mubr.bf16.gmra.mrb[0].mxu0 %v2602
        %v2638 = vpop.f32.mrb[0].mxu0
        %v2639 = vadd.f32 0.0, %v2638
        %v2640 = vpop.f32.mrb[0].mxu0
        %v2641 = vpop.f32.mrb[0].mxu0
        %v2642 = vadd.f32 0.0, %v2641
        %v2643 = vpop.f32.mrb[0].mxu0
        %2644 = vdwg.mxu0
        %2645 = vrot.lane.b32.xlu0 %v1679, 112
        %v2646 = vpop.permute.xlu0 %2645
        %2647 = vrot.lane.b32.xlu0 %v1683, 112
        %v2648 = vpop.permute.xlu0 %2647
        %v2650 = vsel %vm1687, %v2646, 0
        %v2653 = vsel %vm1687, %v2648, 0
        %2655 = vmatprep.subr.bf16.mxu0 0
        %2656 = vmatpush1.bf16.xpose.msra.mxu0 %v2653
        %2657 = vmatprep.subr.bf16.mxu0 0
        %2658 = vmatpush1.bf16.xpose.msra.mxu0 0
        %2659 = vmatprep.subr.bf16.mxu0 0
        %2660 = vmatpush1.bf16.xpose.msra.mxu0 0
        %2661 = vmatprep.subr.bf16.mxu0 0
        %2662 = vmatpush1.bf16.xpose.msra.mxu0 0
        %2663 = vmatprep.subr.bf16.mxu0 0
        %2664 = vmatpush1.bf16.xpose.msra.mxu0 0
        %2665 = vmatprep.subr.bf16.mxu0 0
        %2666 = vmatpush1.bf16.xpose.msra.mxu0 0
        %2667 = vmatprep.subr.bf16.mxu0 0
        %2668 = vmatpush1.bf16.xpose.msra.mxu0 0
        %2669 = vmatprep.subr.bf16.mxu0 0
        %2670 = vmatpush1.bf16.xpose.msra.mxu0 0
        %2671 = vmatprep.subr.bf16.mxu0 0
        %2672 = vmatpush1.bf16.xpose.msra.mxu0 0
        %2673 = vmatprep.subr.bf16.mxu0 0
        %2674 = vmatpush1.bf16.xpose.msra.mxu0 0
        %2675 = vmatprep.subr.bf16.mxu0 0
        %2676 = vmatpush1.bf16.xpose.msra.mxu0 0
        %2677 = vmatprep.subr.bf16.mxu0 0
        %2678 = vmatpush1.bf16.xpose.msra.mxu0 0
        %2679 = vmatprep.subr.bf16.mxu0 0
        %2680 = vmatpush1.bf16.xpose.msra.mxu0 0
        %2681 = vmatprep.subr.bf16.mxu0 0
        %2682 = vmatpush1.bf16.xpose.msra.mxu0 0
        %2683 = vmatprep.subr.bf16.mxu0 0
        %2684 = vmatpush1.bf16.xpose.msra.mxu0 0
        %2685 = vmatprep.subr.bf16.mxu0 0
        %2686 = vmatpush1.bf16.xpose.msra.mxu0 0
        %2687 = vmatprep.mubr.bf16.mxu0 0
        %2688 = vmatmul.mubr.bf16.gmra.mrb[0].mxu0 %v2650
        %v2689 = vpop.f32.mrb[0].mxu0
        %v2690 = vadd.f32 %v1264, %v2689
        %v2691 = vpop.f32.mrb[0].mxu0
        %v2692 = vpop.f32.mrb[0].mxu0
        %v2693 = vadd.f32 %v1265, %v2692
        %v2694 = vpop.f32.mrb[0].mxu0
        %2695 = vdwg.mxu0
        %2696 = vrot.lane.b32.xlu0 %v1680, 112
        %v2697 = vpop.permute.xlu0 %2696
        %2698 = vrot.lane.b32.xlu0 %v1684, 112
        %v2699 = vpop.permute.xlu0 %2698
        %v2701 = vsel %vm1687, %v2697, 0
        %v2704 = vsel %vm1687, %v2699, 0
        %2706 = vmatprep.subr.bf16.mxu0 0
        %2707 = vmatpush1.bf16.xpose.msra.mxu0 %v2704
        %2708 = vmatprep.subr.bf16.mxu0 0
        %2709 = vmatpush1.bf16.xpose.msra.mxu0 0
        %2710 = vmatprep.subr.bf16.mxu0 0
        %2711 = vmatpush1.bf16.xpose.msra.mxu0 0
        %2712 = vmatprep.subr.bf16.mxu0 0
        %2713 = vmatpush1.bf16.xpose.msra.mxu0 0
        %2714 = vmatprep.subr.bf16.mxu0 0
        %2715 = vmatpush1.bf16.xpose.msra.mxu0 0
        %2716 = vmatprep.subr.bf16.mxu0 0
        %2717 = vmatpush1.bf16.xpose.msra.mxu0 0
        %2718 = vmatprep.subr.bf16.mxu0 0
        %2719 = vmatpush1.bf16.xpose.msra.mxu0 0
        %2720 = vmatprep.subr.bf16.mxu0 0
        %2721 = vmatpush1.bf16.xpose.msra.mxu0 0
        %2722 = vmatprep.subr.bf16.mxu0 0
        %2723 = vmatpush1.bf16.xpose.msra.mxu0 0
        %2724 = vmatprep.subr.bf16.mxu0 0
        %2725 = vmatpush1.bf16.xpose.msra.mxu0 0
        %2726 = vmatprep.subr.bf16.mxu0 0
        %2727 = vmatpush1.bf16.xpose.msra.mxu0 0
        %2728 = vmatprep.subr.bf16.mxu0 0
        %2729 = vmatpush1.bf16.xpose.msra.mxu0 0
        %2730 = vmatprep.subr.bf16.mxu0 0
        %2731 = vmatpush1.bf16.xpose.msra.mxu0 0
        %2732 = vmatprep.subr.bf16.mxu0 0
        %2733 = vmatpush1.bf16.xpose.msra.mxu0 0
        %2734 = vmatprep.subr.bf16.mxu0 0
        %2735 = vmatpush1.bf16.xpose.msra.mxu0 0
        %2736 = vmatprep.subr.bf16.mxu0 0
        %2737 = vmatpush1.bf16.xpose.msra.mxu0 0
        %2738 = vmatprep.mubr.bf16.mxu0 0
        %2739 = vmatmul.mubr.bf16.gmra.mrb[0].mxu0 %v2701
        %v2740 = vpop.f32.mrb[0].mxu0
        %v2741 = vadd.f32 %v1266, %v2740
        %v2742 = vpop.f32.mrb[0].mxu0
        %v2743 = vpop.f32.mrb[0].mxu0
        %v2744 = vadd.f32 %v1267, %v2743
        %v2745 = vpop.f32.mrb[0].mxu0
        %2746 = vdwg.mxu0
        %2747 = vrot.lane.b32.xlu0 %v1681, 112
        %v2748 = vpop.permute.xlu0 %2747
        %2749 = vrot.lane.b32.xlu0 %v1685, 112
        %v2750 = vpop.permute.xlu0 %2749
        %v2752 = vsel %vm1687, %v2748, 0
        %v2755 = vsel %vm1687, %v2750, 0
        %2757 = vmatprep.subr.bf16.mxu0 0
        %2758 = vmatpush1.bf16.xpose.msra.mxu0 %v2755
        %2759 = vmatprep.subr.bf16.mxu0 0
        %2760 = vmatpush1.bf16.xpose.msra.mxu0 0
        %2761 = vmatprep.subr.bf16.mxu0 0
        %2762 = vmatpush1.bf16.xpose.msra.mxu0 0
        %2763 = vmatprep.subr.bf16.mxu0 0
        %2764 = vmatpush1.bf16.xpose.msra.mxu0 0
        %2765 = vmatprep.subr.bf16.mxu0 0
        %2766 = vmatpush1.bf16.xpose.msra.mxu0 0
        %2767 = vmatprep.subr.bf16.mxu0 0
        %2768 = vmatpush1.bf16.xpose.msra.mxu0 0
        %2769 = vmatprep.subr.bf16.mxu0 0
        %2770 = vmatpush1.bf16.xpose.msra.mxu0 0
        %2771 = vmatprep.subr.bf16.mxu0 0
        %2772 = vmatpush1.bf16.xpose.msra.mxu0 0
        %2773 = vmatprep.subr.bf16.mxu0 0
        %2774 = vmatpush1.bf16.xpose.msra.mxu0 0
        %2775 = vmatprep.subr.bf16.mxu0 0
        %2776 = vmatpush1.bf16.xpose.msra.mxu0 0
        %2777 = vmatprep.subr.bf16.mxu0 0
        %2778 = vmatpush1.bf16.xpose.msra.mxu0 0
        %2779 = vmatprep.subr.bf16.mxu0 0
        %2780 = vmatpush1.bf16.xpose.msra.mxu0 0
        %2781 = vmatprep.subr.bf16.mxu0 0
        %2782 = vmatpush1.bf16.xpose.msra.mxu0 0
        %2783 = vmatprep.subr.bf16.mxu0 0
        %2784 = vmatpush1.bf16.xpose.msra.mxu0 0
        %2785 = vmatprep.subr.bf16.mxu0 0
        %2786 = vmatpush1.bf16.xpose.msra.mxu0 0
        %2787 = vmatprep.subr.bf16.mxu0 0
        %2788 = vmatpush1.bf16.xpose.msra.mxu0 0
        %2789 = vmatprep.mubr.bf16.mxu0 0
        %2790 = vmatmul.mubr.bf16.gmra.mrb[0].mxu0 %v2752
        %v2791 = vpop.f32.mrb[0].mxu0
        %v2792 = vadd.f32 %v1268, %v2791
        %v2793 = vpop.f32.mrb[0].mxu0
        %v2794 = vpop.f32.mrb[0].mxu0
        %v2795 = vadd.f32 %v1269, %v2794
        %v2796 = vpop.f32.mrb[0].mxu0
        %2797 = vdwg.mxu0
        %2798 = vrot.lane.b32.xlu0 %v1682, 112
        %v2799 = vpop.permute.xlu0 %2798
        %2800 = vrot.lane.b32.xlu0 %v1686, 112
        %v2801 = vpop.permute.xlu0 %2800
        %v2803 = vsel %vm1687, %v2799, 0
        %v2806 = vsel %vm1687, %v2801, 0
        %2808 = vmatprep.subr.bf16.mxu0 0
        %2809 = vmatpush1.bf16.xpose.msra.mxu0 %v2806
        %2810 = vmatprep.subr.bf16.mxu0 0
        %2811 = vmatpush1.bf16.xpose.msra.mxu0 0
        %2812 = vmatprep.subr.bf16.mxu0 0
        %2813 = vmatpush1.bf16.xpose.msra.mxu0 0
        %2814 = vmatprep.subr.bf16.mxu0 0
        %2815 = vmatpush1.bf16.xpose.msra.mxu0 0
        %2816 = vmatprep.subr.bf16.mxu0 0
        %2817 = vmatpush1.bf16.xpose.msra.mxu0 0
        %2818 = vmatprep.subr.bf16.mxu0 0
        %2819 = vmatpush1.bf16.xpose.msra.mxu0 0
        %2820 = vmatprep.subr.bf16.mxu0 0
        %2821 = vmatpush1.bf16.xpose.msra.mxu0 0
        %2822 = vmatprep.subr.bf16.mxu0 0
        %2823 = vmatpush1.bf16.xpose.msra.mxu0 0
        %2824 = vmatprep.subr.bf16.mxu0 0
        %2825 = vmatpush1.bf16.xpose.msra.mxu0 0
        %2826 = vmatprep.subr.bf16.mxu0 0
        %2827 = vmatpush1.bf16.xpose.msra.mxu0 0
        %2828 = vmatprep.subr.bf16.mxu0 0
        %2829 = vmatpush1.bf16.xpose.msra.mxu0 0
        %2830 = vmatprep.subr.bf16.mxu0 0
        %2831 = vmatpush1.bf16.xpose.msra.mxu0 0
        %2832 = vmatprep.subr.bf16.mxu0 0
        %2833 = vmatpush1.bf16.xpose.msra.mxu0 0
        %2834 = vmatprep.subr.bf16.mxu0 0
        %2835 = vmatpush1.bf16.xpose.msra.mxu0 0
        %2836 = vmatprep.subr.bf16.mxu0 0
        %2837 = vmatpush1.bf16.xpose.msra.mxu0 0
        %2838 = vmatprep.subr.bf16.mxu0 0
        %2839 = vmatpush1.bf16.xpose.msra.mxu0 0
        %2840 = vmatprep.mubr.bf16.mxu0 0
        %2841 = vmatmul.mubr.bf16.gmra.mrb[0].mxu0 %v2803
        %v2842 = vpop.f32.mrb[0].mxu0
        %v2843 = vadd.f32 %v1270, %v2842
        %v2844 = vpop.f32.mrb[0].mxu0
        %v2845 = vpop.f32.mrb[0].mxu0
        %v2846 = vadd.f32 %v1271, %v2845
        %v2847 = vpop.f32.mrb[0].mxu0
        %2848 = vdwg.mxu0
        %v2849 = vsel %vm1876, %v2690, -inf
        %2850 = vmax.xlane.f32.xlu0 %v2849
        %v2851 = vpop.xlane.xlu0 %2850
        %v2852 = vsel %vm1876, %v2693, -inf
        %2853 = vmax.xlane.f32.xlu0 %v2852
        %v2854 = vpop.xlane.xlu0 %2853
        %v2855 = vsel %vm1876, %v2741, -inf
        %2856 = vmax.xlane.f32.xlu0 %v2855
        %v2857 = vpop.xlane.xlu0 %2856
        %v2858 = vsel %vm1876, %v2744, -inf
        %2859 = vmax.xlane.f32.xlu0 %v2858
        %v2860 = vpop.xlane.xlu0 %2859
        %v2861 = vsel %vm1876, %v2792, -inf
        %2862 = vmax.xlane.f32.xlu0 %v2861
        %v2863 = vpop.xlane.xlu0 %2862
        %v2864 = vsel %vm1876, %v2795, -inf
        %2865 = vmax.xlane.f32.xlu0 %v2864
        %v2866 = vpop.xlane.xlu0 %2865
        %v2867 = vsel %vm1876, %v2843, -inf
        %2868 = vmax.xlane.f32.xlu0 %v2867
        %v2869 = vpop.xlane.xlu0 %2868
        %v2870 = vsel %vm1876, %v2846, -inf
        %2871 = vmax.xlane.f32.xlu0 %v2870
        %v2872 = vpop.xlane.xlu0 %2871
        %v2873 = vsub.f32 %v2690, %v2851
        %v2874 = vsub.f32 %v2693, %v2854
        %v2875 = vsub.f32 %v2741, %v2857
        %v2876 = vsub.f32 %v2744, %v2860
        %v2877 = vsub.f32 %v2792, %v2863
        %v2878 = vsub.f32 %v2795, %v2866
        %v2879 = vsub.f32 %v2843, %v2869
        %v2880 = vsub.f32 %v2846, %v2872
        %v2881 = vmul.f32 %v2873, 1.442695
        %v2882 = vpow.pop %v2881
        %v2883 = vmul.f32 %v2874, 1.442695
        %v2884 = vpow.pop %v2883
        %v2885 = vmul.f32 %v2875, 1.442695
        %v2886 = vpow.pop %v2885
        %v2887 = vmul.f32 %v2876, 1.442695
        %v2888 = vpow.pop %v2887
        %v2889 = vmul.f32 %v2877, 1.442695
        %v2890 = vpow.pop %v2889
        %v2891 = vmul.f32 %v2878, 1.442695
        %v2892 = vpow.pop %v2891
        %v2893 = vmul.f32 %v2879, 1.442695
        %v2894 = vpow.pop %v2893
        %v2895 = vmul.f32 %v2880, 1.442695
        %v2896 = vpow.pop %v2895
        %v2897 = vsel %vm1876, %v2882, 0.0
        %2898 = vadd.xlane.f32.xlu0 %v2897
        %v2899 = vpop.xlane.xlu0 %2898
        %v2900 = vsel %vm1876, %v2884, 0.0
        %2901 = vadd.xlane.f32.xlu0 %v2900
        %v2902 = vpop.xlane.xlu0 %2901
        %v2903 = vsel %vm1876, %v2886, 0.0
        %2904 = vadd.xlane.f32.xlu0 %v2903
        %v2905 = vpop.xlane.xlu0 %2904
        %v2906 = vsel %vm1876, %v2888, 0.0
        %2907 = vadd.xlane.f32.xlu0 %v2906
        %v2908 = vpop.xlane.xlu0 %2907
        %v2909 = vsel %vm1876, %v2890, 0.0
        %2910 = vadd.xlane.f32.xlu0 %v2909
        %v2911 = vpop.xlane.xlu0 %2910
        %v2912 = vsel %vm1876, %v2892, 0.0
        %2913 = vadd.xlane.f32.xlu0 %v2912
        %v2914 = vpop.xlane.xlu0 %2913
        %v2915 = vsel %vm1876, %v2894, 0.0
        %2916 = vadd.xlane.f32.xlu0 %v2915
        %v2917 = vpop.xlane.xlu0 %2916
        %v2918 = vsel %vm1876, %v2896, 0.0
        %2919 = vadd.xlane.f32.xlu0 %v2918
        %v2920 = vpop.xlane.xlu0 %2919
        %v2921 = vrcp.pop %v2899
        %v2922 = vrcp.pop %v2902
        %v2923 = vrcp.pop %v2905
        %v2924 = vrcp.pop %v2908
        %v2925 = vrcp.pop %v2911
        %v2926 = vrcp.pop %v2914
        %v2927 = vrcp.pop %v2917
        %v2928 = vrcp.pop %v2920
        %v2929 = vmul.f32 %v2882, %v2921
        %v2930 = vmul.f32 %v2884, %v2922
        %v2931 = vmul.f32 %v2886, %v2923
        %v2932 = vmul.f32 %v2888, %v2924
        %v2933 = vmul.f32 %v2890, %v2925
        %v2934 = vmul.f32 %v2892, %v2926
        %v2935 = vmul.f32 %v2894, %v2927
        %v2936 = vmul.f32 %v2896, %v2928
        %v2937 = vpack.c.bf16 %v2930, %v2929
        %v2938 = vpack.c.bf16 %v2932, %v2931
        %v2939 = vpack.c.bf16 %v2934, %v2933
        %v2940 = vpack.c.bf16 %v2936, %v2935
        %2941 = vrot.lane.b32.xlu0 %v1969, 112
        %v2942 = vpop.permute.xlu0 %2941
        %v2945 = vsel %vm1876, %v2937, 0
        %2947 = vmatprep.subr.bf16.mxu0 0
        %2948 = vmatpush1.bf16.msra.mxu0 %v2942
        %2949 = vmatprep.subr.bf16.mxu0 0
        %2950 = vmatpush1.bf16.msra.mxu0 0
        %2951 = vmatprep.subr.bf16.mxu0 0
        %2952 = vmatpush1.bf16.msra.mxu0 0
        %2953 = vmatprep.subr.bf16.mxu0 0
        %2954 = vmatpush1.bf16.msra.mxu0 0
        %2955 = vmatprep.subr.bf16.mxu0 0
        %2956 = vmatpush1.bf16.msra.mxu0 0
        %2957 = vmatprep.subr.bf16.mxu0 0
        %2958 = vmatpush1.bf16.msra.mxu0 0
        %2959 = vmatprep.subr.bf16.mxu0 0
        %2960 = vmatpush1.bf16.msra.mxu0 0
        %2961 = vmatprep.subr.bf16.mxu0 0
        %2962 = vmatpush1.bf16.msra.mxu0 0
        %2963 = vmatprep.subr.bf16.mxu0 0
        %2964 = vmatpush1.bf16.msra.mxu0 0
        %2965 = vmatprep.subr.bf16.mxu0 0
        %2966 = vmatpush1.bf16.msra.mxu0 0
        %2967 = vmatprep.subr.bf16.mxu0 0
        %2968 = vmatpush1.bf16.msra.mxu0 0
        %2969 = vmatprep.subr.bf16.mxu0 0
        %2970 = vmatpush1.bf16.msra.mxu0 0
        %2971 = vmatprep.subr.bf16.mxu0 0
        %2972 = vmatpush1.bf16.msra.mxu0 0
        %2973 = vmatprep.subr.bf16.mxu0 0
        %2974 = vmatpush1.bf16.msra.mxu0 0
        %2975 = vmatprep.subr.bf16.mxu0 0
        %2976 = vmatpush1.bf16.msra.mxu0 0
        %2977 = vmatprep.subr.bf16.mxu0 0
        %2978 = vmatpush1.bf16.msra.mxu0 0
        %2979 = vmatprep.mubr.bf16.mxu0 0
        %2980 = vmatmul.mubr.bf16.gmra.mrb[0].mxu0 %v2945
        %v2981 = vpop.f32.mrb[0].mxu0
        %v2982 = vadd.f32 0.0, %v2981
        %v2983 = vpop.f32.mrb[0].mxu0
        %v2984 = vpop.f32.mrb[0].mxu0
        %v2985 = vadd.f32 0.0, %v2984
        %v2986 = vpop.f32.mrb[0].mxu0
        %2987 = vdwg.mxu0
        %2988 = vrot.lane.b32.xlu0 %v1970, 112
        %v2989 = vpop.permute.xlu0 %2988
        %v2992 = vsel %vm1876, %v2938, 0
        %2994 = vmatprep.subr.bf16.mxu0 0
        %2995 = vmatpush1.bf16.msra.mxu0 %v2989
        %2996 = vmatprep.subr.bf16.mxu0 0
        %2997 = vmatpush1.bf16.msra.mxu0 0
        %2998 = vmatprep.subr.bf16.mxu0 0
        %2999 = vmatpush1.bf16.msra.mxu0 0
        %3000 = vmatprep.subr.bf16.mxu0 0
        %3001 = vmatpush1.bf16.msra.mxu0 0
        %3002 = vmatprep.subr.bf16.mxu0 0
        %3003 = vmatpush1.bf16.msra.mxu0 0
        %3004 = vmatprep.subr.bf16.mxu0 0
        %3005 = vmatpush1.bf16.msra.mxu0 0
        %3006 = vmatprep.subr.bf16.mxu0 0
        %3007 = vmatpush1.bf16.msra.mxu0 0
        %3008 = vmatprep.subr.bf16.mxu0 0
        %3009 = vmatpush1.bf16.msra.mxu0 0
        %3010 = vmatprep.subr.bf16.mxu0 0
        %3011 = vmatpush1.bf16.msra.mxu0 0
        %3012 = vmatprep.subr.bf16.mxu0 0
        %3013 = vmatpush1.bf16.msra.mxu0 0
        %3014 = vmatprep.subr.bf16.mxu0 0
        %3015 = vmatpush1.bf16.msra.mxu0 0
        %3016 = vmatprep.subr.bf16.mxu0 0
        %3017 = vmatpush1.bf16.msra.mxu0 0
        %3018 = vmatprep.subr.bf16.mxu0 0
        %3019 = vmatpush1.bf16.msra.mxu0 0
        %3020 = vmatprep.subr.bf16.mxu0 0
        %3021 = vmatpush1.bf16.msra.mxu0 0
        %3022 = vmatprep.subr.bf16.mxu0 0
        %3023 = vmatpush1.bf16.msra.mxu0 0
        %3024 = vmatprep.subr.bf16.mxu0 0
        %3025 = vmatpush1.bf16.msra.mxu0 0
        %3026 = vmatprep.mubr.bf16.mxu0 0
        %3027 = vmatmul.mubr.bf16.gmra.mrb[0].mxu0 %v2992
        %v3028 = vpop.f32.mrb[0].mxu0
        %v3029 = vadd.f32 0.0, %v3028
        %v3030 = vpop.f32.mrb[0].mxu0
        %v3031 = vpop.f32.mrb[0].mxu0
        %v3032 = vadd.f32 0.0, %v3031
        %v3033 = vpop.f32.mrb[0].mxu0
        %3034 = vdwg.mxu0
        %3035 = vrot.lane.b32.xlu0 %v1971, 112
        %v3036 = vpop.permute.xlu0 %3035
        %v3039 = vsel %vm1876, %v2939, 0
        %3041 = vmatprep.subr.bf16.mxu0 0
        %3042 = vmatpush1.bf16.msra.mxu0 %v3036
        %3043 = vmatprep.subr.bf16.mxu0 0
        %3044 = vmatpush1.bf16.msra.mxu0 0
        %3045 = vmatprep.subr.bf16.mxu0 0
        %3046 = vmatpush1.bf16.msra.mxu0 0
        %3047 = vmatprep.subr.bf16.mxu0 0
        %3048 = vmatpush1.bf16.msra.mxu0 0
        %3049 = vmatprep.subr.bf16.mxu0 0
        %3050 = vmatpush1.bf16.msra.mxu0 0
        %3051 = vmatprep.subr.bf16.mxu0 0
        %3052 = vmatpush1.bf16.msra.mxu0 0
        %3053 = vmatprep.subr.bf16.mxu0 0
        %3054 = vmatpush1.bf16.msra.mxu0 0
        %3055 = vmatprep.subr.bf16.mxu0 0
        %3056 = vmatpush1.bf16.msra.mxu0 0
        %3057 = vmatprep.subr.bf16.mxu0 0
        %3058 = vmatpush1.bf16.msra.mxu0 0
        %3059 = vmatprep.subr.bf16.mxu0 0
        %3060 = vmatpush1.bf16.msra.mxu0 0
        %3061 = vmatprep.subr.bf16.mxu0 0
        %3062 = vmatpush1.bf16.msra.mxu0 0
        %3063 = vmatprep.subr.bf16.mxu0 0
        %3064 = vmatpush1.bf16.msra.mxu0 0
        %3065 = vmatprep.subr.bf16.mxu0 0
        %3066 = vmatpush1.bf16.msra.mxu0 0
        %3067 = vmatprep.subr.bf16.mxu0 0
        %3068 = vmatpush1.bf16.msra.mxu0 0
        %3069 = vmatprep.subr.bf16.mxu0 0
        %3070 = vmatpush1.bf16.msra.mxu0 0
        %3071 = vmatprep.subr.bf16.mxu0 0
        %3072 = vmatpush1.bf16.msra.mxu0 0
        %3073 = vmatprep.mubr.bf16.mxu0 0
        %3074 = vmatmul.mubr.bf16.gmra.mrb[0].mxu0 %v3039
        %v3075 = vpop.f32.mrb[0].mxu0
        %v3076 = vadd.f32 0.0, %v3075
        %v3077 = vpop.f32.mrb[0].mxu0
        %v3078 = vpop.f32.mrb[0].mxu0
        %v3079 = vadd.f32 0.0, %v3078
        %v3080 = vpop.f32.mrb[0].mxu0
        %3081 = vdwg.mxu0
        %3082 = vrot.lane.b32.xlu0 %v1972, 112
        %v3083 = vpop.permute.xlu0 %3082
        %v3086 = vsel %vm1876, %v2940, 0
        %3088 = vmatprep.subr.bf16.mxu0 0
        %3089 = vmatpush1.bf16.msra.mxu0 %v3083
        %3090 = vmatprep.subr.bf16.mxu0 0
        %3091 = vmatpush1.bf16.msra.mxu0 0
        %3092 = vmatprep.subr.bf16.mxu0 0
        %3093 = vmatpush1.bf16.msra.mxu0 0
        %3094 = vmatprep.subr.bf16.mxu0 0
        %3095 = vmatpush1.bf16.msra.mxu0 0
        %3096 = vmatprep.subr.bf16.mxu0 0
        %3097 = vmatpush1.bf16.msra.mxu0 0
        %3098 = vmatprep.subr.bf16.mxu0 0
        %3099 = vmatpush1.bf16.msra.mxu0 0
        %3100 = vmatprep.subr.bf16.mxu0 0
        %3101 = vmatpush1.bf16.msra.mxu0 0
        %3102 = vmatprep.subr.bf16.mxu0 0
        %3103 = vmatpush1.bf16.msra.mxu0 0
        %3104 = vmatprep.subr.bf16.mxu0 0
        %3105 = vmatpush1.bf16.msra.mxu0 0
        %3106 = vmatprep.subr.bf16.mxu0 0
        %3107 = vmatpush1.bf16.msra.mxu0 0
        %3108 = vmatprep.subr.bf16.mxu0 0
        %3109 = vmatpush1.bf16.msra.mxu0 0
        %3110 = vmatprep.subr.bf16.mxu0 0
        %3111 = vmatpush1.bf16.msra.mxu0 0
        %3112 = vmatprep.subr.bf16.mxu0 0
        %3113 = vmatpush1.bf16.msra.mxu0 0
        %3114 = vmatprep.subr.bf16.mxu0 0
        %3115 = vmatpush1.bf16.msra.mxu0 0
        %3116 = vmatprep.subr.bf16.mxu0 0
        %3117 = vmatpush1.bf16.msra.mxu0 0
        %3118 = vmatprep.subr.bf16.mxu0 0
        %3119 = vmatpush1.bf16.msra.mxu0 0
        %3120 = vmatprep.mubr.bf16.mxu0 0
        %3121 = vmatmul.mubr.bf16.gmra.mrb[0].mxu0 %v3086
        %v3122 = vpop.f32.mrb[0].mxu0
        %v3123 = vadd.f32 0.0, %v3122
        %v3124 = vpop.f32.mrb[0].mxu0
        %v3125 = vpop.f32.mrb[0].mxu0
        %v3126 = vadd.f32 0.0, %v3125
        %v3127 = vpop.f32.mrb[0].mxu0
        %3128 = vdwg.mxu0
        %3129 = vrot.lane.b32.xlu0 %v1679, 104
        %v3130 = vpop.permute.xlu0 %3129
        %3131 = vrot.lane.b32.xlu0 %v1683, 104
        %v3132 = vpop.permute.xlu0 %3131
        %v3134 = vsel %vm1687, %v3130, 0
        %v3137 = vsel %vm1687, %v3132, 0
        %3139 = vmatprep.subr.bf16.mxu0 0
        %3140 = vmatpush1.bf16.xpose.msra.mxu0 %v3137
        %3141 = vmatprep.subr.bf16.mxu0 0
        %3142 = vmatpush1.bf16.xpose.msra.mxu0 0
        %3143 = vmatprep.subr.bf16.mxu0 0
        %3144 = vmatpush1.bf16.xpose.msra.mxu0 0
        %3145 = vmatprep.subr.bf16.mxu0 0
        %3146 = vmatpush1.bf16.xpose.msra.mxu0 0
        %3147 = vmatprep.subr.bf16.mxu0 0
        %3148 = vmatpush1.bf16.xpose.msra.mxu0 0
        %3149 = vmatprep.subr.bf16.mxu0 0
        %3150 = vmatpush1.bf16.xpose.msra.mxu0 0
        %3151 = vmatprep.subr.bf16.mxu0 0
        %3152 = vmatpush1.bf16.xpose.msra.mxu0 0
        %3153 = vmatprep.subr.bf16.mxu0 0
        %3154 = vmatpush1.bf16.xpose.msra.mxu0 0
        %3155 = vmatprep.subr.bf16.mxu0 0
        %3156 = vmatpush1.bf16.xpose.msra.mxu0 0
        %3157 = vmatprep.subr.bf16.mxu0 0
        %3158 = vmatpush1.bf16.xpose.msra.mxu0 0
        %3159 = vmatprep.subr.bf16.mxu0 0
        %3160 = vmatpush1.bf16.xpose.msra.mxu0 0
        %3161 = vmatprep.subr.bf16.mxu0 0
        %3162 = vmatpush1.bf16.xpose.msra.mxu0 0
        %3163 = vmatprep.subr.bf16.mxu0 0
        %3164 = vmatpush1.bf16.xpose.msra.mxu0 0
        %3165 = vmatprep.subr.bf16.mxu0 0
        %3166 = vmatpush1.bf16.xpose.msra.mxu0 0
        %3167 = vmatprep.subr.bf16.mxu0 0
        %3168 = vmatpush1.bf16.xpose.msra.mxu0 0
        %3169 = vmatprep.subr.bf16.mxu0 0
        %3170 = vmatpush1.bf16.xpose.msra.mxu0 0
        %3171 = vmatprep.mubr.bf16.mxu0 0
        %3172 = vmatmul.mubr.bf16.gmra.mrb[0].mxu0 %v3134
        %v3173 = vpop.f32.mrb[0].mxu0
        %v3174 = vadd.f32 %v1264, %v3173
        %v3175 = vpop.f32.mrb[0].mxu0
        %v3176 = vpop.f32.mrb[0].mxu0
        %v3177 = vadd.f32 %v1265, %v3176
        %v3178 = vpop.f32.mrb[0].mxu0
        %3179 = vdwg.mxu0
        %3180 = vrot.lane.b32.xlu0 %v1680, 104
        %v3181 = vpop.permute.xlu0 %3180
        %3182 = vrot.lane.b32.xlu0 %v1684, 104
        %v3183 = vpop.permute.xlu0 %3182
        %v3185 = vsel %vm1687, %v3181, 0
        %v3188 = vsel %vm1687, %v3183, 0
        %3190 = vmatprep.subr.bf16.mxu0 0
        %3191 = vmatpush1.bf16.xpose.msra.mxu0 %v3188
        %3192 = vmatprep.subr.bf16.mxu0 0
        %3193 = vmatpush1.bf16.xpose.msra.mxu0 0
        %3194 = vmatprep.subr.bf16.mxu0 0
        %3195 = vmatpush1.bf16.xpose.msra.mxu0 0
        %3196 = vmatprep.subr.bf16.mxu0 0
        %3197 = vmatpush1.bf16.xpose.msra.mxu0 0
        %3198 = vmatprep.subr.bf16.mxu0 0
        %3199 = vmatpush1.bf16.xpose.msra.mxu0 0
        %3200 = vmatprep.subr.bf16.mxu0 0
        %3201 = vmatpush1.bf16.xpose.msra.mxu0 0
        %3202 = vmatprep.subr.bf16.mxu0 0
        %3203 = vmatpush1.bf16.xpose.msra.mxu0 0
        %3204 = vmatprep.subr.bf16.mxu0 0
        %3205 = vmatpush1.bf16.xpose.msra.mxu0 0
        %3206 = vmatprep.subr.bf16.mxu0 0
        %3207 = vmatpush1.bf16.xpose.msra.mxu0 0
        %3208 = vmatprep.subr.bf16.mxu0 0
        %3209 = vmatpush1.bf16.xpose.msra.mxu0 0
        %3210 = vmatprep.subr.bf16.mxu0 0
        %3211 = vmatpush1.bf16.xpose.msra.mxu0 0
        %3212 = vmatprep.subr.bf16.mxu0 0
        %3213 = vmatpush1.bf16.xpose.msra.mxu0 0
        %3214 = vmatprep.subr.bf16.mxu0 0
        %3215 = vmatpush1.bf16.xpose.msra.mxu0 0
        %3216 = vmatprep.subr.bf16.mxu0 0
        %3217 = vmatpush1.bf16.xpose.msra.mxu0 0
        %3218 = vmatprep.subr.bf16.mxu0 0
        %3219 = vmatpush1.bf16.xpose.msra.mxu0 0
        %3220 = vmatprep.subr.bf16.mxu0 0
        %3221 = vmatpush1.bf16.xpose.msra.mxu0 0
        %3222 = vmatprep.mubr.bf16.mxu0 0
        %3223 = vmatmul.mubr.bf16.gmra.mrb[0].mxu0 %v3185
        %v3224 = vpop.f32.mrb[0].mxu0
        %v3225 = vadd.f32 %v1266, %v3224
        %v3226 = vpop.f32.mrb[0].mxu0
        %v3227 = vpop.f32.mrb[0].mxu0
        %v3228 = vadd.f32 %v1267, %v3227
        %v3229 = vpop.f32.mrb[0].mxu0
        %3230 = vdwg.mxu0
        %3231 = vrot.lane.b32.xlu0 %v1681, 104
        %v3232 = vpop.permute.xlu0 %3231
        %3233 = vrot.lane.b32.xlu0 %v1685, 104
        %v3234 = vpop.permute.xlu0 %3233
        %v3236 = vsel %vm1687, %v3232, 0
        %v3239 = vsel %vm1687, %v3234, 0
        %3241 = vmatprep.subr.bf16.mxu0 0
        %3242 = vmatpush1.bf16.xpose.msra.mxu0 %v3239
        %3243 = vmatprep.subr.bf16.mxu0 0
        %3244 = vmatpush1.bf16.xpose.msra.mxu0 0
        %3245 = vmatprep.subr.bf16.mxu0 0
        %3246 = vmatpush1.bf16.xpose.msra.mxu0 0
        %3247 = vmatprep.subr.bf16.mxu0 0
        %3248 = vmatpush1.bf16.xpose.msra.mxu0 0
        %3249 = vmatprep.subr.bf16.mxu0 0
        %3250 = vmatpush1.bf16.xpose.msra.mxu0 0
        %3251 = vmatprep.subr.bf16.mxu0 0
        %3252 = vmatpush1.bf16.xpose.msra.mxu0 0
        %3253 = vmatprep.subr.bf16.mxu0 0
        %3254 = vmatpush1.bf16.xpose.msra.mxu0 0
        %3255 = vmatprep.subr.bf16.mxu0 0
        %3256 = vmatpush1.bf16.xpose.msra.mxu0 0
        %3257 = vmatprep.subr.bf16.mxu0 0
        %3258 = vmatpush1.bf16.xpose.msra.mxu0 0
        %3259 = vmatprep.subr.bf16.mxu0 0
        %3260 = vmatpush1.bf16.xpose.msra.mxu0 0
        %3261 = vmatprep.subr.bf16.mxu0 0
        %3262 = vmatpush1.bf16.xpose.msra.mxu0 0
        %3263 = vmatprep.subr.bf16.mxu0 0
        %3264 = vmatpush1.bf16.xpose.msra.mxu0 0
        %3265 = vmatprep.subr.bf16.mxu0 0
        %3266 = vmatpush1.bf16.xpose.msra.mxu0 0
        %3267 = vmatprep.subr.bf16.mxu0 0
        %3268 = vmatpush1.bf16.xpose.msra.mxu0 0
        %3269 = vmatprep.subr.bf16.mxu0 0
        %3270 = vmatpush1.bf16.xpose.msra.mxu0 0
        %3271 = vmatprep.subr.bf16.mxu0 0
        %3272 = vmatpush1.bf16.xpose.msra.mxu0 0
        %3273 = vmatprep.mubr.bf16.mxu0 0
        %3274 = vmatmul.mubr.bf16.gmra.mrb[0].mxu0 %v3236
        %v3275 = vpop.f32.mrb[0].mxu0
        %v3276 = vadd.f32 %v1268, %v3275
        %v3277 = vpop.f32.mrb[0].mxu0
        %v3278 = vpop.f32.mrb[0].mxu0
        %v3279 = vadd.f32 %v1269, %v3278
        %v3280 = vpop.f32.mrb[0].mxu0
        %3281 = vdwg.mxu0
        %3282 = vrot.lane.b32.xlu0 %v1682, 104
        %v3283 = vpop.permute.xlu0 %3282
        %3284 = vrot.lane.b32.xlu0 %v1686, 104
        %v3285 = vpop.permute.xlu0 %3284
        %v3287 = vsel %vm1687, %v3283, 0
        %v3290 = vsel %vm1687, %v3285, 0
        %3292 = vmatprep.subr.bf16.mxu0 0
        %3293 = vmatpush1.bf16.xpose.msra.mxu0 %v3290
        %3294 = vmatprep.subr.bf16.mxu0 0
        %3295 = vmatpush1.bf16.xpose.msra.mxu0 0
        %3296 = vmatprep.subr.bf16.mxu0 0
        %3297 = vmatpush1.bf16.xpose.msra.mxu0 0
        %3298 = vmatprep.subr.bf16.mxu0 0
        %3299 = vmatpush1.bf16.xpose.msra.mxu0 0
        %3300 = vmatprep.subr.bf16.mxu0 0
        %3301 = vmatpush1.bf16.xpose.msra.mxu0 0
        %3302 = vmatprep.subr.bf16.mxu0 0
        %3303 = vmatpush1.bf16.xpose.msra.mxu0 0
        %3304 = vmatprep.subr.bf16.mxu0 0
        %3305 = vmatpush1.bf16.xpose.msra.mxu0 0
        %3306 = vmatprep.subr.bf16.mxu0 0
        %3307 = vmatpush1.bf16.xpose.msra.mxu0 0
        %3308 = vmatprep.subr.bf16.mxu0 0
        %3309 = vmatpush1.bf16.xpose.msra.mxu0 0
        %3310 = vmatprep.subr.bf16.mxu0 0
        %3311 = vmatpush1.bf16.xpose.msra.mxu0 0
        %3312 = vmatprep.subr.bf16.mxu0 0
        %3313 = vmatpush1.bf16.xpose.msra.mxu0 0
        %3314 = vmatprep.subr.bf16.mxu0 0
        %3315 = vmatpush1.bf16.xpose.msra.mxu0 0
        %3316 = vmatprep.subr.bf16.mxu0 0
        %3317 = vmatpush1.bf16.xpose.msra.mxu0 0
        %3318 = vmatprep.subr.bf16.mxu0 0
        %3319 = vmatpush1.bf16.xpose.msra.mxu0 0
        %3320 = vmatprep.subr.bf16.mxu0 0
        %3321 = vmatpush1.bf16.xpose.msra.mxu0 0
        %3322 = vmatprep.subr.bf16.mxu0 0
        %3323 = vmatpush1.bf16.xpose.msra.mxu0 0
        %3324 = vmatprep.mubr.bf16.mxu0 0
        %3325 = vmatmul.mubr.bf16.gmra.mrb[0].mxu0 %v3287
        %v3326 = vpop.f32.mrb[0].mxu0
        %v3327 = vadd.f32 %v1270, %v3326
        %v3328 = vpop.f32.mrb[0].mxu0
        %v3329 = vpop.f32.mrb[0].mxu0
        %v3330 = vadd.f32 %v1271, %v3329
        %v3331 = vpop.f32.mrb[0].mxu0
        %3332 = vdwg.mxu0
        %v3333 = vsel %vm1876, %v3174, -inf
        %3334 = vmax.xlane.f32.xlu0 %v3333
        %v3335 = vpop.xlane.xlu0 %3334
        %v3336 = vsel %vm1876, %v3177, -inf
        %3337 = vmax.xlane.f32.xlu0 %v3336
        %v3338 = vpop.xlane.xlu0 %3337
        %v3339 = vsel %vm1876, %v3225, -inf
        %3340 = vmax.xlane.f32.xlu0 %v3339
        %v3341 = vpop.xlane.xlu0 %3340
        %v3342 = vsel %vm1876, %v3228, -inf
        %3343 = vmax.xlane.f32.xlu0 %v3342
        %v3344 = vpop.xlane.xlu0 %3343
        %v3345 = vsel %vm1876, %v3276, -inf
        %3346 = vmax.xlane.f32.xlu0 %v3345
        %v3347 = vpop.xlane.xlu0 %3346
        %v3348 = vsel %vm1876, %v3279, -inf
        %3349 = vmax.xlane.f32.xlu0 %v3348
        %v3350 = vpop.xlane.xlu0 %3349
        %v3351 = vsel %vm1876, %v3327, -inf
        %3352 = vmax.xlane.f32.xlu0 %v3351
        %v3353 = vpop.xlane.xlu0 %3352
        %v3354 = vsel %vm1876, %v3330, -inf
        %3355 = vmax.xlane.f32.xlu0 %v3354
        %v3356 = vpop.xlane.xlu0 %3355
        %v3357 = vsub.f32 %v3174, %v3335
        %v3358 = vsub.f32 %v3177, %v3338
        %v3359 = vsub.f32 %v3225, %v3341
        %v3360 = vsub.f32 %v3228, %v3344
        %v3361 = vsub.f32 %v3276, %v3347
        %v3362 = vsub.f32 %v3279, %v3350
        %v3363 = vsub.f32 %v3327, %v3353
        %v3364 = vsub.f32 %v3330, %v3356
        %v3365 = vmul.f32 %v3357, 1.442695
        %v3366 = vpow.pop %v3365
        %v3367 = vmul.f32 %v3358, 1.442695
        %v3368 = vpow.pop %v3367
        %v3369 = vmul.f32 %v3359, 1.442695
        %v3370 = vpow.pop %v3369
        %v3371 = vmul.f32 %v3360, 1.442695
        %v3372 = vpow.pop %v3371
        %v3373 = vmul.f32 %v3361, 1.442695
        %v3374 = vpow.pop %v3373
        %v3375 = vmul.f32 %v3362, 1.442695
        %v3376 = vpow.pop %v3375
        %v3377 = vmul.f32 %v3363, 1.442695
        %v3378 = vpow.pop %v3377
        %v3379 = vmul.f32 %v3364, 1.442695
        %v3380 = vpow.pop %v3379
        %v3381 = vsel %vm1876, %v3366, 0.0
        %3382 = vadd.xlane.f32.xlu0 %v3381
        %v3383 = vpop.xlane.xlu0 %3382
        %v3384 = vsel %vm1876, %v3368, 0.0
        %3385 = vadd.xlane.f32.xlu0 %v3384
        %v3386 = vpop.xlane.xlu0 %3385
        %v3387 = vsel %vm1876, %v3370, 0.0
        %3388 = vadd.xlane.f32.xlu0 %v3387
        %v3389 = vpop.xlane.xlu0 %3388
        %v3390 = vsel %vm1876, %v3372, 0.0
        %3391 = vadd.xlane.f32.xlu0 %v3390
        %v3392 = vpop.xlane.xlu0 %3391
        %v3393 = vsel %vm1876, %v3374, 0.0
        %3394 = vadd.xlane.f32.xlu0 %v3393
        %v3395 = vpop.xlane.xlu0 %3394
        %v3396 = vsel %vm1876, %v3376, 0.0
        %3397 = vadd.xlane.f32.xlu0 %v3396
        %v3398 = vpop.xlane.xlu0 %3397
        %v3399 = vsel %vm1876, %v3378, 0.0
        %3400 = vadd.xlane.f32.xlu0 %v3399
        %v3401 = vpop.xlane.xlu0 %3400
        %v3402 = vsel %vm1876, %v3380, 0.0
        %3403 = vadd.xlane.f32.xlu0 %v3402
        %v3404 = vpop.xlane.xlu0 %3403
        %v3405 = vrcp.pop %v3383
        %v3406 = vrcp.pop %v3386
        %v3407 = vrcp.pop %v3389
        %v3408 = vrcp.pop %v3392
        %v3409 = vrcp.pop %v3395
        %v3410 = vrcp.pop %v3398
        %v3411 = vrcp.pop %v3401
        %v3412 = vrcp.pop %v3404
        %v3413 = vmul.f32 %v3366, %v3405
        %v3414 = vmul.f32 %v3368, %v3406
        %v3415 = vmul.f32 %v3370, %v3407
        %v3416 = vmul.f32 %v3372, %v3408
        %v3417 = vmul.f32 %v3374, %v3409
        %v3418 = vmul.f32 %v3376, %v3410
        %v3419 = vmul.f32 %v3378, %v3411
        %v3420 = vmul.f32 %v3380, %v3412
        %v3421 = vpack.c.bf16 %v3414, %v3413
        %v3422 = vpack.c.bf16 %v3416, %v3415
        %v3423 = vpack.c.bf16 %v3418, %v3417
        %v3424 = vpack.c.bf16 %v3420, %v3419
        %3425 = vrot.lane.b32.xlu0 %v1969, 104
        %v3426 = vpop.permute.xlu0 %3425
        %v3429 = vsel %vm1876, %v3421, 0
        %3431 = vmatprep.subr.bf16.mxu0 0
        %3432 = vmatpush1.bf16.msra.mxu0 %v3426
        %3433 = vmatprep.subr.bf16.mxu0 0
        %3434 = vmatpush1.bf16.msra.mxu0 0
        %3435 = vmatprep.subr.bf16.mxu0 0
        %3436 = vmatpush1.bf16.msra.mxu0 0
        %3437 = vmatprep.subr.bf16.mxu0 0
        %3438 = vmatpush1.bf16.msra.mxu0 0
        %3439 = vmatprep.subr.bf16.mxu0 0
        %3440 = vmatpush1.bf16.msra.mxu0 0
        %3441 = vmatprep.subr.bf16.mxu0 0
        %3442 = vmatpush1.bf16.msra.mxu0 0
        %3443 = vmatprep.subr.bf16.mxu0 0
        %3444 = vmatpush1.bf16.msra.mxu0 0
        %3445 = vmatprep.subr.bf16.mxu0 0
        %3446 = vmatpush1.bf16.msra.mxu0 0
        %3447 = vmatprep.subr.bf16.mxu0 0
        %3448 = vmatpush1.bf16.msra.mxu0 0
        %3449 = vmatprep.subr.bf16.mxu0 0
        %3450 = vmatpush1.bf16.msra.mxu0 0
        %3451 = vmatprep.subr.bf16.mxu0 0
        %3452 = vmatpush1.bf16.msra.mxu0 0
        %3453 = vmatprep.subr.bf16.mxu0 0
        %3454 = vmatpush1.bf16.msra.mxu0 0
        %3455 = vmatprep.subr.bf16.mxu0 0
        %3456 = vmatpush1.bf16.msra.mxu0 0
        %3457 = vmatprep.subr.bf16.mxu0 0
        %3458 = vmatpush1.bf16.msra.mxu0 0
        %3459 = vmatprep.subr.bf16.mxu0 0
        %3460 = vmatpush1.bf16.msra.mxu0 0
        %3461 = vmatprep.subr.bf16.mxu0 0
        %3462 = vmatpush1.bf16.msra.mxu0 0
        %3463 = vmatprep.mubr.bf16.mxu0 0
        %3464 = vmatmul.mubr.bf16.gmra.mrb[0].mxu0 %v3429
        %v3465 = vpop.f32.mrb[0].mxu0
        %v3466 = vadd.f32 0.0, %v3465
        %v3467 = vpop.f32.mrb[0].mxu0
        %v3468 = vpop.f32.mrb[0].mxu0
        %v3469 = vadd.f32 0.0, %v3468
        %v3470 = vpop.f32.mrb[0].mxu0
        %3471 = vdwg.mxu0
        %3472 = vrot.lane.b32.xlu0 %v1970, 104
        %v3473 = vpop.permute.xlu0 %3472
        %v3476 = vsel %vm1876, %v3422, 0
        %3478 = vmatprep.subr.bf16.mxu0 0
        %3479 = vmatpush1.bf16.msra.mxu0 %v3473
        %3480 = vmatprep.subr.bf16.mxu0 0
        %3481 = vmatpush1.bf16.msra.mxu0 0
        %3482 = vmatprep.subr.bf16.mxu0 0
        %3483 = vmatpush1.bf16.msra.mxu0 0
        %3484 = vmatprep.subr.bf16.mxu0 0
        %3485 = vmatpush1.bf16.msra.mxu0 0
        %3486 = vmatprep.subr.bf16.mxu0 0
        %3487 = vmatpush1.bf16.msra.mxu0 0
        %3488 = vmatprep.subr.bf16.mxu0 0
        %3489 = vmatpush1.bf16.msra.mxu0 0
        %3490 = vmatprep.subr.bf16.mxu0 0
        %3491 = vmatpush1.bf16.msra.mxu0 0
        %3492 = vmatprep.subr.bf16.mxu0 0
        %3493 = vmatpush1.bf16.msra.mxu0 0
        %3494 = vmatprep.subr.bf16.mxu0 0
        %3495 = vmatpush1.bf16.msra.mxu0 0
        %3496 = vmatprep.subr.bf16.mxu0 0
        %3497 = vmatpush1.bf16.msra.mxu0 0
        %3498 = vmatprep.subr.bf16.mxu0 0
        %3499 = vmatpush1.bf16.msra.mxu0 0
        %3500 = vmatprep.subr.bf16.mxu0 0
        %3501 = vmatpush1.bf16.msra.mxu0 0
        %3502 = vmatprep.subr.bf16.mxu0 0
        %3503 = vmatpush1.bf16.msra.mxu0 0
        %3504 = vmatprep.subr.bf16.mxu0 0
        %3505 = vmatpush1.bf16.msra.mxu0 0
        %3506 = vmatprep.subr.bf16.mxu0 0
        %3507 = vmatpush1.bf16.msra.mxu0 0
        %3508 = vmatprep.subr.bf16.mxu0 0
        %3509 = vmatpush1.bf16.msra.mxu0 0
        %3510 = vmatprep.mubr.bf16.mxu0 0
        %3511 = vmatmul.mubr.bf16.gmra.mrb[0].mxu0 %v3476
        %v3512 = vpop.f32.mrb[0].mxu0
        %v3513 = vadd.f32 0.0, %v3512
        %v3514 = vpop.f32.mrb[0].mxu0
        %v3515 = vpop.f32.mrb[0].mxu0
        %v3516 = vadd.f32 0.0, %v3515
        %v3517 = vpop.f32.mrb[0].mxu0
        %3518 = vdwg.mxu0
        %3519 = vrot.lane.b32.xlu0 %v1971, 104
        %v3520 = vpop.permute.xlu0 %3519
        %v3523 = vsel %vm1876, %v3423, 0
        %3525 = vmatprep.subr.bf16.mxu0 0
        %3526 = vmatpush1.bf16.msra.mxu0 %v3520
        %3527 = vmatprep.subr.bf16.mxu0 0
        %3528 = vmatpush1.bf16.msra.mxu0 0
        %3529 = vmatprep.subr.bf16.mxu0 0
        %3530 = vmatpush1.bf16.msra.mxu0 0
        %3531 = vmatprep.subr.bf16.mxu0 0
        %3532 = vmatpush1.bf16.msra.mxu0 0
        %3533 = vmatprep.subr.bf16.mxu0 0
        %3534 = vmatpush1.bf16.msra.mxu0 0
        %3535 = vmatprep.subr.bf16.mxu0 0
        %3536 = vmatpush1.bf16.msra.mxu0 0
        %3537 = vmatprep.subr.bf16.mxu0 0
        %3538 = vmatpush1.bf16.msra.mxu0 0
        %3539 = vmatprep.subr.bf16.mxu0 0
        %3540 = vmatpush1.bf16.msra.mxu0 0
        %3541 = vmatprep.subr.bf16.mxu0 0
        %3542 = vmatpush1.bf16.msra.mxu0 0
        %3543 = vmatprep.subr.bf16.mxu0 0
        %3544 = vmatpush1.bf16.msra.mxu0 0
        %3545 = vmatprep.subr.bf16.mxu0 0
        %3546 = vmatpush1.bf16.msra.mxu0 0
        %3547 = vmatprep.subr.bf16.mxu0 0
        %3548 = vmatpush1.bf16.msra.mxu0 0
        %3549 = vmatprep.subr.bf16.mxu0 0
        %3550 = vmatpush1.bf16.msra.mxu0 0
        %3551 = vmatprep.subr.bf16.mxu0 0
        %3552 = vmatpush1.bf16.msra.mxu0 0
        %3553 = vmatprep.subr.bf16.mxu0 0
        %3554 = vmatpush1.bf16.msra.mxu0 0
        %3555 = vmatprep.subr.bf16.mxu0 0
        %3556 = vmatpush1.bf16.msra.mxu0 0
        %3557 = vmatprep.mubr.bf16.mxu0 0
        %3558 = vmatmul.mubr.bf16.gmra.mrb[0].mxu0 %v3523
        %v3559 = vpop.f32.mrb[0].mxu0
        %v3560 = vadd.f32 0.0, %v3559
        %v3561 = vpop.f32.mrb[0].mxu0
        %v3562 = vpop.f32.mrb[0].mxu0
        %v3563 = vadd.f32 0.0, %v3562
        %v3564 = vpop.f32.mrb[0].mxu0
        %3565 = vdwg.mxu0
        %3566 = vrot.lane.b32.xlu0 %v1972, 104
        %v3567 = vpop.permute.xlu0 %3566
        %v3570 = vsel %vm1876, %v3424, 0
        %3572 = vmatprep.subr.bf16.mxu0 0
        %3573 = vmatpush1.bf16.msra.mxu0 %v3567
        %3574 = vmatprep.subr.bf16.mxu0 0
        %3575 = vmatpush1.bf16.msra.mxu0 0
        %3576 = vmatprep.subr.bf16.mxu0 0
        %3577 = vmatpush1.bf16.msra.mxu0 0
        %3578 = vmatprep.subr.bf16.mxu0 0
        %3579 = vmatpush1.bf16.msra.mxu0 0
        %3580 = vmatprep.subr.bf16.mxu0 0
        %3581 = vmatpush1.bf16.msra.mxu0 0
        %3582 = vmatprep.subr.bf16.mxu0 0
        %3583 = vmatpush1.bf16.msra.mxu0 0
        %3584 = vmatprep.subr.bf16.mxu0 0
        %3585 = vmatpush1.bf16.msra.mxu0 0
        %3586 = vmatprep.subr.bf16.mxu0 0
        %3587 = vmatpush1.bf16.msra.mxu0 0
        %3588 = vmatprep.subr.bf16.mxu0 0
        %3589 = vmatpush1.bf16.msra.mxu0 0
        %3590 = vmatprep.subr.bf16.mxu0 0
        %3591 = vmatpush1.bf16.msra.mxu0 0
        %3592 = vmatprep.subr.bf16.mxu0 0
        %3593 = vmatpush1.bf16.msra.mxu0 0
        %3594 = vmatprep.subr.bf16.mxu0 0
        %3595 = vmatpush1.bf16.msra.mxu0 0
        %3596 = vmatprep.subr.bf16.mxu0 0
        %3597 = vmatpush1.bf16.msra.mxu0 0
        %3598 = vmatprep.subr.bf16.mxu0 0
        %3599 = vmatpush1.bf16.msra.mxu0 0
        %3600 = vmatprep.subr.bf16.mxu0 0
        %3601 = vmatpush1.bf16.msra.mxu0 0
        %3602 = vmatprep.subr.bf16.mxu0 0
        %3603 = vmatpush1.bf16.msra.mxu0 0
        %3604 = vmatprep.mubr.bf16.mxu0 0
        %3605 = vmatmul.mubr.bf16.gmra.mrb[0].mxu0 %v3570
        %v3606 = vpop.f32.mrb[0].mxu0
        %v3607 = vadd.f32 0.0, %v3606
        %v3608 = vpop.f32.mrb[0].mxu0
        %v3609 = vpop.f32.mrb[0].mxu0
        %v3610 = vadd.f32 0.0, %v3609
        %v3611 = vpop.f32.mrb[0].mxu0
        %3612 = vdwg.mxu0
        %3621 = vrot.lane.b32.xlu0 %v2495, 8
        %v3622 = vpop.permute.xlu0 %3621
        %3623 = vrot.lane.b32.xlu0 %v2498, 8
        %v3624 = vpop.permute.xlu0 %3623
        %3625 = vrot.lane.b32.xlu0 %v2543, 8
        %v3626 = vpop.permute.xlu0 %3625
        %3627 = vrot.lane.b32.xlu0 %v2546, 8
        %v3628 = vpop.permute.xlu0 %3627
        %3629 = vrot.lane.b32.xlu0 %v2591, 8
        %v3630 = vpop.permute.xlu0 %3629
        %3631 = vrot.lane.b32.xlu0 %v2594, 8
        %v3632 = vpop.permute.xlu0 %3631
        %3633 = vrot.lane.b32.xlu0 %v2639, 8
        %v3634 = vpop.permute.xlu0 %3633
        %3635 = vrot.lane.b32.xlu0 %v2642, 8
        %v3636 = vpop.permute.xlu0 %3635
        %3653 = vrot.lane.b32.xlu0 %v2982, 16
        %v3654 = vpop.permute.xlu0 %3653
        %3655 = vrot.lane.b32.xlu0 %v2985, 16
        %v3656 = vpop.permute.xlu0 %3655
        %3657 = vrot.lane.b32.xlu0 %v3029, 16
        %v3658 = vpop.permute.xlu0 %3657
        %3659 = vrot.lane.b32.xlu0 %v3032, 16
        %v3660 = vpop.permute.xlu0 %3659
        %3661 = vrot.lane.b32.xlu0 %v3076, 16
        %v3662 = vpop.permute.xlu0 %3661
        %3663 = vrot.lane.b32.xlu0 %v3079, 16
        %v3664 = vpop.permute.xlu0 %3663
        %3665 = vrot.lane.b32.xlu0 %v3123, 16
        %v3666 = vpop.permute.xlu0 %3665
        %3667 = vrot.lane.b32.xlu0 %v3126, 16
        %v3668 = vpop.permute.xlu0 %3667
        %3685 = vrot.lane.b32.xlu0 %v3466, 24
        %v3686 = vpop.permute.xlu0 %3685
        %3687 = vrot.lane.b32.xlu0 %v3469, 24
        %v3688 = vpop.permute.xlu0 %3687
        %3689 = vrot.lane.b32.xlu0 %v3513, 24
        %v3690 = vpop.permute.xlu0 %3689
        %3691 = vrot.lane.b32.xlu0 %v3516, 24
        %v3692 = vpop.permute.xlu0 %3691
        %3693 = vrot.lane.b32.xlu0 %v3560, 24
        %v3694 = vpop.permute.xlu0 %3693
        %3695 = vrot.lane.b32.xlu0 %v3563, 24
        %v3696 = vpop.permute.xlu0 %3695
        %3697 = vrot.lane.b32.xlu0 %v3607, 24
        %v3698 = vpop.permute.xlu0 %3697
        %3699 = vrot.lane.b32.xlu0 %v3610, 24
        %v3700 = vpop.permute.xlu0 %3699
        %v3709 = vsel %vm1687, %v2011, %v3622
        %v3710 = vsel %vm1687, %v2014, %v3624
        %v3711 = vsel %vm1687, %v2055, %v3626
        %v3712 = vsel %vm1687, %v2058, %v3628
        %v3713 = vsel %vm1687, %v2099, %v3630
        %v3714 = vsel %vm1687, %v2102, %v3632
        %v3715 = vsel %vm1687, %v2143, %v3634
        %v3716 = vsel %vm1687, %v2146, %v3636
        %v3717 = vsel %vm1876, %v3709, %v3654
        %v3718 = vsel %vm1876, %v3710, %v3656
        %v3719 = vsel %vm1876, %v3711, %v3658
        %v3720 = vsel %vm1876, %v3712, %v3660
        %v3721 = vsel %vm1876, %v3713, %v3662
        %v3722 = vsel %vm1876, %v3714, %v3664
        %v3723 = vsel %vm1876, %v3715, %v3666
        %v3724 = vsel %vm1876, %v3716, %v3668
        %vm3725 = vcmask 195584
        %v3726 = vsel %vm3725, %v3717, %v3686
        %v3727 = vsel %vm3725, %v3718, %v3688
        %v3728 = vsel %vm3725, %v3719, %v3690
        %v3729 = vsel %vm3725, %v3720, %v3692
        %v3730 = vsel %vm3725, %v3721, %v3694
        %v3731 = vsel %vm3725, %v3722, %v3696
        %v3732 = vsel %vm3725, %v3723, %v3698
        %v3733 = vsel %vm3725, %v3724, %v3700
        %v3734 = vpack.c.bf16 %v3727, %v3726
        %v3735 = vpack.c.bf16 %v3729, %v3728
        %v3736 = vpack.c.bf16 %v3731, %v3730
        %v3737 = vpack.c.bf16 %v3733, %v3732
        %v3742 = vunpack.c.l.b16 %v1233
        %v3743 = vunpack.c.l.b16 %v1234
        %v3744 = vunpack.c.l.b16 %v1235
        %v3745 = vunpack.c.l.b16 %v1236
        %v3746 = vpack.c.b16 %v3743, %v3742
        %v3747 = vpack.c.b16 %v3745, %v3744
        %v3751 = vsel %vm1272, %v3734, 0
        %v3754 = vsel %vm1272, %v3735, 0
        %v3757 = vsel %vm1272, %v3736, 0
        %v3760 = vsel %vm1272, %v3737, 0
        %3762 = vmatprep.subr.bf16.mxu0 0
        %3763 = vmatpush1.bf16.msra.mxu0 %v3746
        %3764 = vmatprep.subr.bf16.mxu0 0
        %3765 = vmatpush1.bf16.msra.mxu0 %v3747
        %3766 = vmatprep.subr.bf16.mxu0 0
        %3767 = vmatpush1.bf16.msra.mxu0 0
        %3768 = vmatprep.subr.bf16.mxu0 0
        %3769 = vmatpush1.bf16.msra.mxu0 0
        %3770 = vmatprep.subr.bf16.mxu0 0
        %3771 = vmatpush1.bf16.msra.mxu0 0
        %3772 = vmatprep.subr.bf16.mxu0 0
        %3773 = vmatpush1.bf16.msra.mxu0 0
        %3774 = vmatprep.subr.bf16.mxu0 0
        %3775 = vmatpush1.bf16.msra.mxu0 0
        %3776 = vmatprep.subr.bf16.mxu0 0
        %3777 = vmatpush1.bf16.msra.mxu0 0
        %3778 = vmatprep.subr.bf16.mxu0 0
        %3779 = vmatpush1.bf16.msra.mxu0 0
        %3780 = vmatprep.subr.bf16.mxu0 0
        %3781 = vmatpush1.bf16.msra.mxu0 0
        %3782 = vmatprep.subr.bf16.mxu0 0
        %3783 = vmatpush1.bf16.msra.mxu0 0
        %3784 = vmatprep.subr.bf16.mxu0 0
        %3785 = vmatpush1.bf16.msra.mxu0 0
        %3786 = vmatprep.subr.bf16.mxu0 0
        %3787 = vmatpush1.bf16.msra.mxu0 0
        %3788 = vmatprep.subr.bf16.mxu0 0
        %3789 = vmatpush1.bf16.msra.mxu0 0
        %3790 = vmatprep.subr.bf16.mxu0 0
        %3791 = vmatpush1.bf16.msra.mxu0 0
        %3792 = vmatprep.subr.bf16.mxu0 0
        %3793 = vmatpush1.bf16.msra.mxu0 0
        %3794 = vmatprep.mubr.bf16.mxu0 0
        %3795 = vmatmul.mubr.bf16.gmra.mrb[0].mxu0 %v3751
        %v3796 = vpop.f32.mrb[0].mxu0
        %v3797 = vadd.f32 0.0, %v3796
        %v3798 = vpop.f32.mrb[0].mxu0
        %v3799 = vpop.f32.mrb[0].mxu0
        %v3800 = vadd.f32 0.0, %v3799
        %v3801 = vpop.f32.mrb[0].mxu0
        %3802 = vmatprep.mubr.bf16.mxu0 0
        %3803 = vmatmul.mubr.bf16.gmra.mrb[0].mxu0 %v3754
        %v3804 = vpop.f32.mrb[0].mxu0
        %v3805 = vadd.f32 0.0, %v3804
        %v3806 = vpop.f32.mrb[0].mxu0
        %v3807 = vpop.f32.mrb[0].mxu0
        %v3808 = vadd.f32 0.0, %v3807
        %v3809 = vpop.f32.mrb[0].mxu0
        %3810 = vmatprep.mubr.bf16.mxu0 0
        %3811 = vmatmul.mubr.bf16.gmra.mrb[0].mxu0 %v3757
        %v3812 = vpop.f32.mrb[0].mxu0
        %v3813 = vadd.f32 0.0, %v3812
        %v3814 = vpop.f32.mrb[0].mxu0
        %v3815 = vpop.f32.mrb[0].mxu0
        %v3816 = vadd.f32 0.0, %v3815
        %v3817 = vpop.f32.mrb[0].mxu0
        %3818 = vmatprep.mubr.bf16.mxu0 0
        %3819 = vmatmul.mubr.bf16.gmra.mrb[0].mxu0 %v3760
        %v3820 = vpop.f32.mrb[0].mxu0
        %v3821 = vadd.f32 0.0, %v3820
        %v3822 = vpop.f32.mrb[0].mxu0
        %v3823 = vpop.f32.mrb[0].mxu0
        %v3824 = vadd.f32 0.0, %v3823
        %v3825 = vpop.f32.mrb[0].mxu0
        %3826 = vdwg.mxu0
        %v3827 = vadd.f32 %v1256, %v3797
        %v3828 = vadd.f32 %v1257, %v3800
        %v3829 = vadd.f32 %v1258, %v3805
        %v3830 = vadd.f32 %v1259, %v3808
        %v3831 = vadd.f32 %v1260, %v3813
        %v3832 = vadd.f32 %v1261, %v3816
        %v3833 = vadd.f32 %v1262, %v3821
        %v3834 = vadd.f32 %v1263, %v3824
        %v3836 = vlaneseq
        %v3837 = vshrl.u32 %v3836, 7
        %v3838 = vsub.s32 0, %v3837
        %v3839 = vrot.slane %v1237, %v3838
        %v3841 = vadd.f32 %v3827, %v3839
        %v3842 = vadd.f32 %v3828, %v3839
        %v3843 = vadd.f32 %v3829, %v3839
        %v3844 = vadd.f32 %v3830, %v3839
        %v3845 = vadd.f32 %v3831, %v3839
        %v3846 = vadd.f32 %v3832, %v3839
        %v3847 = vadd.f32 %v3833, %v3839
        %v3848 = vadd.f32 %v3834, %v3839
        %v3849 = vsel %vm1272, %v3841, 0.0
        %3850 = vadd.xlane.f32.xlu0 %v3849
        %v3851 = vpop.xlane.xlu0 %3850
        %v3852 = vsel %vm1272, %v3842, 0.0
        %3853 = vadd.xlane.f32.xlu0 %v3852
        %v3854 = vpop.xlane.xlu0 %3853
        %v3855 = vsel %vm1272, %v3843, 0.0
        %3856 = vadd.xlane.f32.xlu0 %v3855
        %v3857 = vpop.xlane.xlu0 %3856
        %v3858 = vsel %vm1272, %v3844, 0.0
        %3859 = vadd.xlane.f32.xlu0 %v3858
        %v3860 = vpop.xlane.xlu0 %3859
        %v3861 = vsel %vm1272, %v3845, 0.0
        %3862 = vadd.xlane.f32.xlu0 %v3861
        %v3863 = vpop.xlane.xlu0 %3862
        %v3864 = vsel %vm1272, %v3846, 0.0
        %3865 = vadd.xlane.f32.xlu0 %v3864
        %v3866 = vpop.xlane.xlu0 %3865
        %v3867 = vsel %vm1272, %v3847, 0.0
        %3868 = vadd.xlane.f32.xlu0 %v3867
        %v3869 = vpop.xlane.xlu0 %3868
        %v3870 = vsel %vm1272, %v3848, 0.0
        %3871 = vadd.xlane.f32.xlu0 %v3870
        %v3872 = vpop.xlane.xlu0 %3871
        %v3873 = vmul.f32 %v3851, %v1297
        %v3874 = vmul.f32 %v3854, %v1297
        %v3875 = vmul.f32 %v3857, %v1297
        %v3876 = vmul.f32 %v3860, %v1297
        %v3877 = vmul.f32 %v3863, %v1297
        %v3878 = vmul.f32 %v3866, %v1297
        %v3879 = vmul.f32 %v3869, %v1297
        %v3880 = vmul.f32 %v3872, %v1297
        %v3881 = vsub.f32 %v3841, %v3873
        %v3882 = vsub.f32 %v3842, %v3874
        %v3883 = vsub.f32 %v3843, %v3875
        %v3884 = vsub.f32 %v3844, %v3876
        %v3885 = vsub.f32 %v3845, %v3877
        %v3886 = vsub.f32 %v3846, %v3878
        %v3887 = vsub.f32 %v3847, %v3879
        %v3888 = vsub.f32 %v3848, %v3880
        %v3889 = vmul.f32 %v3881, %v3881
        %v3890 = vmul.f32 %v3882, %v3882
        %v3891 = vmul.f32 %v3883, %v3883
        %v3892 = vmul.f32 %v3884, %v3884
        %v3893 = vmul.f32 %v3885, %v3885
        %v3894 = vmul.f32 %v3886, %v3886
        %v3895 = vmul.f32 %v3887, %v3887
        %v3896 = vmul.f32 %v3888, %v3888
        %v3897 = vsel %vm1272, %v3889, 0.0
        %3898 = vadd.xlane.f32.xlu0 %v3897
        %v3899 = vpop.xlane.xlu0 %3898
        %v3900 = vsel %vm1272, %v3890, 0.0
        %3901 = vadd.xlane.f32.xlu0 %v3900
        %v3902 = vpop.xlane.xlu0 %3901
        %v3903 = vsel %vm1272, %v3891, 0.0
        %3904 = vadd.xlane.f32.xlu0 %v3903
        %v3905 = vpop.xlane.xlu0 %3904
        %v3906 = vsel %vm1272, %v3892, 0.0
        %3907 = vadd.xlane.f32.xlu0 %v3906
        %v3908 = vpop.xlane.xlu0 %3907
        %v3909 = vsel %vm1272, %v3893, 0.0
        %3910 = vadd.xlane.f32.xlu0 %v3909
        %v3911 = vpop.xlane.xlu0 %3910
        %v3912 = vsel %vm1272, %v3894, 0.0
        %3913 = vadd.xlane.f32.xlu0 %v3912
        %v3914 = vpop.xlane.xlu0 %3913
        %v3915 = vsel %vm1272, %v3895, 0.0
        %3916 = vadd.xlane.f32.xlu0 %v3915
        %v3917 = vpop.xlane.xlu0 %3916
        %v3918 = vsel %vm1272, %v3896, 0.0
        %3919 = vadd.xlane.f32.xlu0 %v3918
        %v3920 = vpop.xlane.xlu0 %3919
        %v3921 = vmul.f32 %v3899, %v1297
        %v3922 = vmul.f32 %v3902, %v1297
        %v3923 = vmul.f32 %v3905, %v1297
        %v3924 = vmul.f32 %v3908, %v1297
        %v3925 = vmul.f32 %v3911, %v1297
        %v3926 = vmul.f32 %v3914, %v1297
        %v3927 = vmul.f32 %v3917, %v1297
        %v3928 = vmul.f32 %v3920, %v1297
        %v3929 = vadd.f32 %v3921, 1e-05
        %v3930 = vadd.f32 %v3922, 1e-05
        %v3931 = vadd.f32 %v3923, 1e-05
        %v3932 = vadd.f32 %v3924, 1e-05
        %v3933 = vadd.f32 %v3925, 1e-05
        %v3934 = vadd.f32 %v3926, 1e-05
        %v3935 = vadd.f32 %v3927, 1e-05
        %v3936 = vadd.f32 %v3928, 1e-05
        %v3937 = vrsqrt.pop %v3929
        %v3938 = vrsqrt.pop %v3930
        %v3939 = vrsqrt.pop %v3931
        %v3940 = vrsqrt.pop %v3932
        %v3941 = vrsqrt.pop %v3933
        %v3942 = vrsqrt.pop %v3934
        %v3943 = vrsqrt.pop %v3935
        %v3944 = vrsqrt.pop %v3936
        %v3945 = vmul.f32 %v3881, %v3937
        %v3946 = vmul.f32 %v3882, %v3938
        %v3947 = vmul.f32 %v3883, %v3939
        %v3948 = vmul.f32 %v3884, %v3940
        %v3949 = vmul.f32 %v3885, %v3941
        %v3950 = vmul.f32 %v3886, %v3942
        %v3951 = vmul.f32 %v3887, %v3943
        %v3952 = vmul.f32 %v3888, %v3944
        %v3954 = vlaneseq
        %v3955 = vshrl.u32 %v3954, 7
        %v3956 = vsub.s32 0, %v3955
        %v3957 = vrot.slane %v1240, %v3956
        %v3959 = vmul.f32 %v3945, %v3957
        %v3960 = vmul.f32 %v3946, %v3957
        %v3961 = vmul.f32 %v3947, %v3957
        %v3962 = vmul.f32 %v3948, %v3957
        %v3963 = vmul.f32 %v3949, %v3957
        %v3964 = vmul.f32 %v3950, %v3957
        %v3965 = vmul.f32 %v3951, %v3957
        %v3966 = vmul.f32 %v3952, %v3957
        %v3968 = vlaneseq
        %v3969 = vshrl.u32 %v3968, 7
        %v3970 = vsub.s32 0, %v3969
        %v3971 = vrot.slane %v1241, %v3970
        %v3973 = vadd.f32 %v3959, %v3971
        %v3974 = vadd.f32 %v3960, %v3971
        %v3975 = vadd.f32 %v3961, %v3971
        %v3976 = vadd.f32 %v3962, %v3971
        %v3977 = vadd.f32 %v3963, %v3971
        %v3978 = vadd.f32 %v3964, %v3971
        %v3979 = vadd.f32 %v3965, %v3971
        %v3980 = vadd.f32 %v3966, %v3971
        %v3981 = vpack.c.bf16 %v3974, %v3973
        %v3982 = vpack.c.bf16 %v3976, %v3975
        %v3983 = vpack.c.bf16 %v3978, %v3977
        %v3984 = vpack.c.bf16 %v3980, %v3979
        %v3986 = vlaneseq
        %v3987 = vshrl.u32 %v3986, 7
        %v3988 = vsub.s32 0, %v3987
        %v3989 = vrot.slane %v1246, %v3988
        %v3995 = vunpack.c.l.b16 %v1242
        %v3996 = vunpack.c.l.b16 %v1243
        %v3997 = vunpack.c.l.b16 %v1244
        %v3998 = vunpack.c.l.b16 %v1245
        %v3999 = vpack.c.b16 %v3996, %v3995
        %v4000 = vpack.c.b16 %v3998, %v3997
        %v4004 = vsel %vm1272, %v3981, 0
        %v4007 = vsel %vm1272, %v3982, 0
        %v4010 = vsel %vm1272, %v3983, 0
        %v4013 = vsel %vm1272, %v3984, 0
        %4015 = vmatprep.subr.bf16.mxu0 0
        %4016 = vmatpush1.bf16.msra.mxu0 %v3999
        %4017 = vmatprep.subr.bf16.mxu0 0
        %4018 = vmatpush1.bf16.msra.mxu0 %v4000
        %4019 = vmatprep.subr.bf16.mxu0 0
        %4020 = vmatpush1.bf16.msra.mxu0 0
        %4021 = vmatprep.subr.bf16.mxu0 0
        %4022 = vmatpush1.bf16.msra.mxu0 0
        %4023 = vmatprep.subr.bf16.mxu0 0
        %4024 = vmatpush1.bf16.msra.mxu0 0
        %4025 = vmatprep.subr.bf16.mxu0 0
        %4026 = vmatpush1.bf16.msra.mxu0 0
        %4027 = vmatprep.subr.bf16.mxu0 0
        %4028 = vmatpush1.bf16.msra.mxu0 0
        %4029 = vmatprep.subr.bf16.mxu0 0
        %4030 = vmatpush1.bf16.msra.mxu0 0
        %4031 = vmatprep.subr.bf16.mxu0 0
        %4032 = vmatpush1.bf16.msra.mxu0 0
        %4033 = vmatprep.subr.bf16.mxu0 0
        %4034 = vmatpush1.bf16.msra.mxu0 0
        %4035 = vmatprep.subr.bf16.mxu0 0
        %4036 = vmatpush1.bf16.msra.mxu0 0
        %4037 = vmatprep.subr.bf16.mxu0 0
        %4038 = vmatpush1.bf16.msra.mxu0 0
        %4039 = vmatprep.subr.bf16.mxu0 0
        %4040 = vmatpush1.bf16.msra.mxu0 0
        %4041 = vmatprep.subr.bf16.mxu0 0
        %4042 = vmatpush1.bf16.msra.mxu0 0
        %4043 = vmatprep.subr.bf16.mxu0 0
        %4044 = vmatpush1.bf16.msra.mxu0 0
        %4045 = vmatprep.subr.bf16.mxu0 0
        %4046 = vmatpush1.bf16.msra.mxu0 0
        %4047 = vmatprep.mubr.bf16.mxu0 0
        %4048 = vmatmul.mubr.bf16.gmra.mrb[0].mxu0 %v4004
        %v4049 = vpop.f32.mrb[0].mxu0
        %v4050 = vadd.f32 %v3989, %v4049
        %v4051 = vpop.f32.mrb[0].mxu0
        %v4052 = vpop.f32.mrb[0].mxu0
        %v4053 = vadd.f32 %v3989, %v4052
        %v4054 = vpop.f32.mrb[0].mxu0
        %4055 = vmatprep.mubr.bf16.mxu0 0
        %4056 = vmatmul.mubr.bf16.gmra.mrb[0].mxu0 %v4007
        %v4057 = vpop.f32.mrb[0].mxu0
        %v4058 = vadd.f32 %v3989, %v4057
        %v4059 = vpop.f32.mrb[0].mxu0
        %v4060 = vpop.f32.mrb[0].mxu0
        %v4061 = vadd.f32 %v3989, %v4060
        %v4062 = vpop.f32.mrb[0].mxu0
        %4063 = vmatprep.mubr.bf16.mxu0 0
        %4064 = vmatmul.mubr.bf16.gmra.mrb[0].mxu0 %v4010
        %v4065 = vpop.f32.mrb[0].mxu0
        %v4066 = vadd.f32 %v3989, %v4065
        %v4067 = vpop.f32.mrb[0].mxu0
        %v4068 = vpop.f32.mrb[0].mxu0
        %v4069 = vadd.f32 %v3989, %v4068
        %v4070 = vpop.f32.mrb[0].mxu0
        %4071 = vmatprep.mubr.bf16.mxu0 0
        %4072 = vmatmul.mubr.bf16.gmra.mrb[0].mxu0 %v4013
        %v4073 = vpop.f32.mrb[0].mxu0
        %v4074 = vadd.f32 %v3989, %v4073
        %v4075 = vpop.f32.mrb[0].mxu0
        %v4076 = vpop.f32.mrb[0].mxu0
        %v4077 = vadd.f32 %v3989, %v4076
        %v4078 = vpop.f32.mrb[0].mxu0
        %4079 = vdwg.mxu0
        %v4080 = vmul.f32 %v4050, 1.702
        %v4081 = vmul.f32 %v4053, 1.702
        %v4082 = vmul.f32 %v4058, 1.702
        %v4083 = vmul.f32 %v4061, 1.702
        %v4084 = vmul.f32 %v4066, 1.702
        %v4085 = vmul.f32 %v4069, 1.702
        %v4086 = vmul.f32 %v4074, 1.702
        %v4087 = vmul.f32 %v4077, 1.702
        %v4088 = vxor.u32 %v4080, 2147483648
        %v4089 = vxor.u32 %v4081, 2147483648
        %v4090 = vxor.u32 %v4082, 2147483648
        %v4091 = vxor.u32 %v4083, 2147483648
        %v4092 = vxor.u32 %v4084, 2147483648
        %v4093 = vxor.u32 %v4085, 2147483648
        %v4094 = vxor.u32 %v4086, 2147483648
        %v4095 = vxor.u32 %v4087, 2147483648
        %v4096 = vmul.f32 %v4088, 1.442695
        %v4097 = vpow.pop %v4096
        %v4098 = vmul.f32 %v4089, 1.442695
        %v4099 = vpow.pop %v4098
        %v4100 = vmul.f32 %v4090, 1.442695
        %v4101 = vpow.pop %v4100
        %v4102 = vmul.f32 %v4091, 1.442695
        %v4103 = vpow.pop %v4102
        %v4104 = vmul.f32 %v4092, 1.442695
        %v4105 = vpow.pop %v4104
        %v4106 = vmul.f32 %v4093, 1.442695
        %v4107 = vpow.pop %v4106
        %v4108 = vmul.f32 %v4094, 1.442695
        %v4109 = vpow.pop %v4108
        %v4110 = vmul.f32 %v4095, 1.442695
        %v4111 = vpow.pop %v4110
        %v4112 = vadd.f32 %v4097, 1.0
        %v4113 = vadd.f32 %v4099, 1.0
        %v4114 = vadd.f32 %v4101, 1.0
        %v4115 = vadd.f32 %v4103, 1.0
        %v4116 = vadd.f32 %v4105, 1.0
        %v4117 = vadd.f32 %v4107, 1.0
        %v4118 = vadd.f32 %v4109, 1.0
        %v4119 = vadd.f32 %v4111, 1.0
        %v4120 = vrcp.pop %v4112
        %v4121 = vmul.f32 1.0, %v4120
        %v4122 = vrcp.pop %v4113
        %v4123 = vmul.f32 1.0, %v4122
        %v4124 = vrcp.pop %v4114
        %v4125 = vmul.f32 1.0, %v4124
        %v4126 = vrcp.pop %v4115
        %v4127 = vmul.f32 1.0, %v4126
        %v4128 = vrcp.pop %v4116
        %v4129 = vmul.f32 1.0, %v4128
        %v4130 = vrcp.pop %v4117
        %v4131 = vmul.f32 1.0, %v4130
        %v4132 = vrcp.pop %v4118
        %v4133 = vmul.f32 1.0, %v4132
        %v4134 = vrcp.pop %v4119
        %v4135 = vmul.f32 1.0, %v4134
        %v4136 = vmul.f32 %v4050, %v4121
        %v4137 = vmul.f32 %v4053, %v4123
        %v4138 = vmul.f32 %v4058, %v4125
        %v4139 = vmul.f32 %v4061, %v4127
        %v4140 = vmul.f32 %v4066, %v4129
        %v4141 = vmul.f32 %v4069, %v4131
        %v4142 = vmul.f32 %v4074, %v4133
        %v4143 = vmul.f32 %v4077, %v4135
        %v4144 = vpack.c.bf16 %v4137, %v4136
        %v4145 = vpack.c.bf16 %v4139, %v4138
        %v4146 = vpack.c.bf16 %v4141, %v4140
        %v4147 = vpack.c.bf16 %v4143, %v4142
        %v4149 = vlaneseq
        %v4150 = vshrl.u32 %v4149, 7
        %v4151 = vsub.s32 0, %v4150
        %v4152 = vrot.slane %v1255, %v4151
        %v4162 = vunpack.c.l.b16 %v1247
        %v4163 = vunpack.c.l.b16 %v1248
        %v4164 = vunpack.c.l.b16 %v1249
        %v4165 = vunpack.c.l.b16 %v1250
        %v4166 = vunpack.c.l.b16 %v1251
        %v4167 = vunpack.c.l.b16 %v1252
        %v4168 = vunpack.c.l.b16 %v1253
        %v4169 = vunpack.c.l.b16 %v1254
        %v4170 = vpack.c.b16 %v4163, %v4162
        %v4171 = vpack.c.b16 %v4165, %v4164
        %v4172 = vpack.c.b16 %v4167, %v4166
        %v4173 = vpack.c.b16 %v4169, %v4168
        %vm4178 = vcmask 523264
        %v4180 = vsel %vm4178, %v4144, 0
        %v4183 = vsel %vm4178, %v4145, 0
        %v4186 = vsel %vm4178, %v4146, 0
        %v4189 = vsel %vm4178, %v4147, 0
        %4191 = vmatprep.subr.bf16.mxu0 0
        %4192 = vmatpush1.bf16.msra.mxu0 %v4170
        %4193 = vmatprep.subr.bf16.mxu0 0
        %4194 = vmatpush1.bf16.msra.mxu0 %v4171
        %4195 = vmatprep.subr.bf16.mxu0 0
        %4196 = vmatpush1.bf16.msra.mxu0 %v4172
        %4197 = vmatprep.subr.bf16.mxu0 0
        %4198 = vmatpush1.bf16.msra.mxu0 %v4173
        %4199 = vmatprep.subr.bf16.mxu0 0
        %4200 = vmatpush1.bf16.msra.mxu0 0
        %4201 = vmatprep.subr.bf16.mxu0 0
        %4202 = vmatpush1.bf16.msra.mxu0 0
        %4203 = vmatprep.subr.bf16.mxu0 0
        %4204 = vmatpush1.bf16.msra.mxu0 0
        %4205 = vmatprep.subr.bf16.mxu0 0
        %4206 = vmatpush1.bf16.msra.mxu0 0
        %4207 = vmatprep.subr.bf16.mxu0 0
        %4208 = vmatpush1.bf16.msra.mxu0 0
        %4209 = vmatprep.subr.bf16.mxu0 0
        %4210 = vmatpush1.bf16.msra.mxu0 0
        %4211 = vmatprep.subr.bf16.mxu0 0
        %4212 = vmatpush1.bf16.msra.mxu0 0
        %4213 = vmatprep.subr.bf16.mxu0 0
        %4214 = vmatpush1.bf16.msra.mxu0 0
        %4215 = vmatprep.subr.bf16.mxu0 0
        %4216 = vmatpush1.bf16.msra.mxu0 0
        %4217 = vmatprep.subr.bf16.mxu0 0
        %4218 = vmatpush1.bf16.msra.mxu0 0
        %4219 = vmatprep.subr.bf16.mxu0 0
        %4220 = vmatpush1.bf16.msra.mxu0 0
        %4221 = vmatprep.subr.bf16.mxu0 0
        %4222 = vmatpush1.bf16.msra.mxu0 0
        %4223 = vmatprep.mubr.bf16.mxu0 0
        %4224 = vmatmul.mubr.bf16.gmra.mrb[0].mxu0 %v4180
        %v4225 = vpop.f32.mrb[0].mxu0
        %v4226 = vadd.f32 %v4152, %v4225
        %v4227 = vpop.f32.mrb[0].mxu0
        %v4228 = vpop.f32.mrb[0].mxu0
        %v4229 = vadd.f32 %v4152, %v4228
        %v4230 = vpop.f32.mrb[0].mxu0
        %4231 = vmatprep.mubr.bf16.mxu0 0
        %4232 = vmatmul.mubr.bf16.gmra.mrb[0].mxu0 %v4183
        %v4233 = vpop.f32.mrb[0].mxu0
        %v4234 = vadd.f32 %v4152, %v4233
        %v4235 = vpop.f32.mrb[0].mxu0
        %v4236 = vpop.f32.mrb[0].mxu0
        %v4237 = vadd.f32 %v4152, %v4236
        %v4238 = vpop.f32.mrb[0].mxu0
        %4239 = vmatprep.mubr.bf16.mxu0 0
        %4240 = vmatmul.mubr.bf16.gmra.mrb[0].mxu0 %v4186
        %v4241 = vpop.f32.mrb[0].mxu0
        %v4242 = vadd.f32 %v4152, %v4241
        %v4243 = vpop.f32.mrb[0].mxu0
        %v4244 = vpop.f32.mrb[0].mxu0
        %v4245 = vadd.f32 %v4152, %v4244
        %v4246 = vpop.f32.mrb[0].mxu0
        %4247 = vmatprep.mubr.bf16.mxu0 0
        %4248 = vmatmul.mubr.bf16.gmra.mrb[0].mxu0 %v4189
        %v4249 = vpop.f32.mrb[0].mxu0
        %v4250 = vadd.f32 %v4152, %v4249
        %v4251 = vpop.f32.mrb[0].mxu0
        %v4252 = vpop.f32.mrb[0].mxu0
        %v4253 = vadd.f32 %v4152, %v4252
        %v4254 = vpop.f32.mrb[0].mxu0
        %4255 = vdwg.mxu0
        %v4256 = vadd.f32 %v3841, %v4226
        %v4257 = vadd.f32 %v3842, %v4229
        %v4258 = vadd.f32 %v3843, %v4234
        %v4259 = vadd.f32 %v3844, %v4237
        %v4260 = vadd.f32 %v3845, %v4242
        %v4261 = vadd.f32 %v3846, %v4245
        %v4262 = vadd.f32 %v3847, %v4250
        %v4263 = vadd.f32 %v3848, %v4253
        %4264 = vst.msk [vmem:[#allocation2] sm:$0xff] %vm1272, %v4256
        %4265 = vst.msk [vmem:[#allocation2 + $0x8] sm:$0xff] %vm1272, %v4257
        %4266 = vst.msk [vmem:[#allocation2 + $0x10] sm:$0xff] %vm1272, %v4258
        %4267 = vst.msk [vmem:[#allocation2 + $0x18] sm:$0xff] %vm1272, %v4259
        %4268 = vst.msk [vmem:[#allocation2 + $0x20] sm:$0xff] %vm1272, %v4260
        %4269 = vst.msk [vmem:[#allocation2 + $0x28] sm:$0xff] %vm1272, %v4261
        %4270 = vst.msk [vmem:[#allocation2 + $0x30] sm:$0xff] %vm1272, %v4262
        %4271 = vst.msk [vmem:[#allocation2 + $0x38] sm:$0xff] %vm1272, %v4263
        %v4272 = vld [vmem:[#allocation6] sm:$0x1]
        %v4273 = vld [vmem:[#allocation6 + $0x1] sm:$0x1]
        %v4274 = vld [vmem:[#allocation6 + $0x2] sm:$0x1]
        %v4275 = vld [vmem:[#allocation6 + $0x3] sm:$0x1]
        %v4277 = vsel %vm1876, %v4272, 0
        %4279 = vmatprep.subr.mxu0 0.0
        %4280 = vmatpush1.msra.mxu0 %v4256
        %4281 = vmatprep.subr.mxu0 0.0
        %4282 = vmatpush1.msra.mxu0 %v4257
        %4283 = vmatprep.subr.mxu0 0.0
        %4284 = vmatpush1.msra.mxu0 0.0
        %4285 = vmatprep.subr.mxu0 0.0
        %4286 = vmatpush1.msra.mxu0 0.0
        %4287 = vmatprep.subr.mxu0 0.0
        %4288 = vmatpush1.msra.mxu0 0.0
        %4289 = vmatprep.subr.mxu0 0.0
        %4290 = vmatpush1.msra.mxu0 0.0
        %4291 = vmatprep.subr.mxu0 0.0
        %4292 = vmatpush1.msra.mxu0 0.0
        %4293 = vmatprep.subr.mxu0 0.0
        %4294 = vmatpush1.msra.mxu0 0.0
        %4295 = vmatprep.subr.mxu0 0.0
        %4296 = vmatpush1.msra.mxu0 0.0
        %4297 = vmatprep.subr.mxu0 0.0
        %4298 = vmatpush1.msra.mxu0 0.0
        %4299 = vmatprep.subr.mxu0 0.0
        %4300 = vmatpush1.msra.mxu0 0.0
        %4301 = vmatprep.subr.mxu0 0.0
        %4302 = vmatpush1.msra.mxu0 0.0
        %4303 = vmatprep.subr.mxu0 0.0
        %4304 = vmatpush1.msra.mxu0 0.0
        %4305 = vmatprep.subr.mxu0 0.0
        %4306 = vmatpush1.msra.mxu0 0.0
        %4307 = vmatprep.subr.mxu0 0.0
        %4308 = vmatpush1.msra.mxu0 0.0
        %4309 = vmatprep.subr.mxu0 0.0
        %4310 = vmatpush1.msra.mxu0 0.0
        %4311 = vmatprep.subr.mxu0 0.0
        %4312 = vmatpush1.msra.mxu0 0.0
        %4313 = vmatprep.subr.mxu0 0.0
        %4314 = vmatpush1.msra.mxu0 0.0
        %4315 = vmatprep.subr.mxu0 0.0
        %4316 = vmatpush1.msra.mxu0 0.0
        %4317 = vmatprep.subr.mxu0 0.0
        %4318 = vmatpush1.msra.mxu0 0.0
        %4319 = vmatprep.subr.mxu0 0.0
        %4320 = vmatpush1.msra.mxu0 0.0
        %4321 = vmatprep.subr.mxu0 0.0
        %4322 = vmatpush1.msra.mxu0 0.0
        %4323 = vmatprep.subr.mxu0 0.0
        %4324 = vmatpush1.msra.mxu0 0.0
        %4325 = vmatprep.subr.mxu0 0.0
        %4326 = vmatpush1.msra.mxu0 0.0
        %4327 = vmatprep.subr.mxu0 0.0
        %4328 = vmatpush1.msra.mxu0 0.0
        %4329 = vmatprep.subr.mxu0 0.0
        %4330 = vmatpush1.msra.mxu0 0.0
        %4331 = vmatprep.subr.mxu0 0.0
        %4332 = vmatpush1.msra.mxu0 0.0
        %4333 = vmatprep.subr.mxu0 0.0
        %4334 = vmatpush1.msra.mxu0 0.0
        %4335 = vmatprep.subr.mxu0 0.0
        %4336 = vmatpush1.msra.mxu0 0.0
        %4337 = vmatprep.subr.mxu0 0.0
        %4338 = vmatpush1.msra.mxu0 0.0
        %4339 = vmatprep.subr.mxu0 0.0
        %4340 = vmatpush1.msra.mxu0 0.0
        %4341 = vmatprep.subr.mxu0 0.0
        %4342 = vmatpush1.msra.mxu0 0.0
        %4343 = vmatprep.mubr.f32.mxu0 0.0
        %4344 = vmatmul.mubr.f32.gmra.mrb[0].mxu0 %v4277
        %v4345 = vpop.f32.mrb[0].mxu0
        %v4346 = vadd.f32 0.0, %v4345
        %v4347 = vpop.f32.mrb[0].mxu0
        %4348 = vdwg.mxu0
        %v4350 = vsel %vm1876, %v4273, 0
        %4352 = vmatprep.subr.mxu0 0.0
        %4353 = vmatpush1.msra.mxu0 %v4258
        %4354 = vmatprep.subr.mxu0 0.0
        %4355 = vmatpush1.msra.mxu0 %v4259
        %4356 = vmatprep.subr.mxu0 0.0
        %4357 = vmatpush1.msra.mxu0 0.0
        %4358 = vmatprep.subr.mxu0 0.0
        %4359 = vmatpush1.msra.mxu0 0.0
        %4360 = vmatprep.subr.mxu0 0.0
        %4361 = vmatpush1.msra.mxu0 0.0
        %4362 = vmatprep.subr.mxu0 0.0
        %4363 = vmatpush1.msra.mxu0 0.0
        %4364 = vmatprep.subr.mxu0 0.0
        %4365 = vmatpush1.msra.mxu0 0.0
        %4366 = vmatprep.subr.mxu0 0.0
        %4367 = vmatpush1.msra.mxu0 0.0
        %4368 = vmatprep.subr.mxu0 0.0
        %4369 = vmatpush1.msra.mxu0 0.0
        %4370 = vmatprep.subr.mxu0 0.0
        %4371 = vmatpush1.msra.mxu0 0.0
        %4372 = vmatprep.subr.mxu0 0.0
        %4373 = vmatpush1.msra.mxu0 0.0
        %4374 = vmatprep.subr.mxu0 0.0
        %4375 = vmatpush1.msra.mxu0 0.0
        %4376 = vmatprep.subr.mxu0 0.0
        %4377 = vmatpush1.msra.mxu0 0.0
        %4378 = vmatprep.subr.mxu0 0.0
        %4379 = vmatpush1.msra.mxu0 0.0
        %4380 = vmatprep.subr.mxu0 0.0
        %4381 = vmatpush1.msra.mxu0 0.0
        %4382 = vmatprep.subr.mxu0 0.0
        %4383 = vmatpush1.msra.mxu0 0.0
        %4384 = vmatprep.subr.mxu0 0.0
        %4385 = vmatpush1.msra.mxu0 0.0
        %4386 = vmatprep.subr.mxu0 0.0
        %4387 = vmatpush1.msra.mxu0 0.0
        %4388 = vmatprep.subr.mxu0 0.0
        %4389 = vmatpush1.msra.mxu0 0.0
        %4390 = vmatprep.subr.mxu0 0.0
        %4391 = vmatpush1.msra.mxu0 0.0
        %4392 = vmatprep.subr.mxu0 0.0
        %4393 = vmatpush1.msra.mxu0 0.0
        %4394 = vmatprep.subr.mxu0 0.0
        %4395 = vmatpush1.msra.mxu0 0.0
        %4396 = vmatprep.subr.mxu0 0.0
        %4397 = vmatpush1.msra.mxu0 0.0
        %4398 = vmatprep.subr.mxu0 0.0
        %4399 = vmatpush1.msra.mxu0 0.0
        %4400 = vmatprep.subr.mxu0 0.0
        %4401 = vmatpush1.msra.mxu0 0.0
        %4402 = vmatprep.subr.mxu0 0.0
        %4403 = vmatpush1.msra.mxu0 0.0
        %4404 = vmatprep.subr.mxu0 0.0
        %4405 = vmatpush1.msra.mxu0 0.0
        %4406 = vmatprep.subr.mxu0 0.0
        %4407 = vmatpush1.msra.mxu0 0.0
        %4408 = vmatprep.subr.mxu0 0.0
        %4409 = vmatpush1.msra.mxu0 0.0
        %4410 = vmatprep.subr.mxu0 0.0
        %4411 = vmatpush1.msra.mxu0 0.0
        %4412 = vmatprep.subr.mxu0 0.0
        %4413 = vmatpush1.msra.mxu0 0.0
        %4414 = vmatprep.subr.mxu0 0.0
        %4415 = vmatpush1.msra.mxu0 0.0
        %4416 = vmatprep.mubr.f32.mxu0 0.0
        %4417 = vmatmul.mubr.f32.gmra.mrb[0].mxu0 %v4350
        %v4418 = vpop.f32.mrb[0].mxu0
        %v4419 = vadd.f32 0.0, %v4418
        %v4420 = vpop.f32.mrb[0].mxu0
        %4421 = vdwg.mxu0
        %v4423 = vsel %vm1876, %v4274, 0
        %4425 = vmatprep.subr.mxu0 0.0
        %4426 = vmatpush1.msra.mxu0 %v4260
        %4427 = vmatprep.subr.mxu0 0.0
        %4428 = vmatpush1.msra.mxu0 %v4261
        %4429 = vmatprep.subr.mxu0 0.0
        %4430 = vmatpush1.msra.mxu0 0.0
        %4431 = vmatprep.subr.mxu0 0.0
        %4432 = vmatpush1.msra.mxu0 0.0
        %4433 = vmatprep.subr.mxu0 0.0
        %4434 = vmatpush1.msra.mxu0 0.0
        %4435 = vmatprep.subr.mxu0 0.0
        %4436 = vmatpush1.msra.mxu0 0.0
        %4437 = vmatprep.subr.mxu0 0.0
        %4438 = vmatpush1.msra.mxu0 0.0
        %4439 = vmatprep.subr.mxu0 0.0
        %4440 = vmatpush1.msra.mxu0 0.0
        %4441 = vmatprep.subr.mxu0 0.0
        %4442 = vmatpush1.msra.mxu0 0.0
        %4443 = vmatprep.subr.mxu0 0.0
        %4444 = vmatpush1.msra.mxu0 0.0
        %4445 = vmatprep.subr.mxu0 0.0
        %4446 = vmatpush1.msra.mxu0 0.0
        %4447 = vmatprep.subr.mxu0 0.0
        %4448 = vmatpush1.msra.mxu0 0.0
        %4449 = vmatprep.subr.mxu0 0.0
        %4450 = vmatpush1.msra.mxu0 0.0
        %4451 = vmatprep.subr.mxu0 0.0
        %4452 = vmatpush1.msra.mxu0 0.0
        %4453 = vmatprep.subr.mxu0 0.0
        %4454 = vmatpush1.msra.mxu0 0.0
        %4455 = vmatprep.subr.mxu0 0.0
        %4456 = vmatpush1.msra.mxu0 0.0
        %4457 = vmatprep.subr.mxu0 0.0
        %4458 = vmatpush1.msra.mxu0 0.0
        %4459 = vmatprep.subr.mxu0 0.0
        %4460 = vmatpush1.msra.mxu0 0.0
        %4461 = vmatprep.subr.mxu0 0.0
        %4462 = vmatpush1.msra.mxu0 0.0
        %4463 = vmatprep.subr.mxu0 0.0
        %4464 = vmatpush1.msra.mxu0 0.0
        %4465 = vmatprep.subr.mxu0 0.0
        %4466 = vmatpush1.msra.mxu0 0.0
        %4467 = vmatprep.subr.mxu0 0.0
        %4468 = vmatpush1.msra.mxu0 0.0
        %4469 = vmatprep.subr.mxu0 0.0
        %4470 = vmatpush1.msra.mxu0 0.0
        %4471 = vmatprep.subr.mxu0 0.0
        %4472 = vmatpush1.msra.mxu0 0.0
        %4473 = vmatprep.subr.mxu0 0.0
        %4474 = vmatpush1.msra.mxu0 0.0
        %4475 = vmatprep.subr.mxu0 0.0
        %4476 = vmatpush1.msra.mxu0 0.0
        %4477 = vmatprep.subr.mxu0 0.0
        %4478 = vmatpush1.msra.mxu0 0.0
        %4479 = vmatprep.subr.mxu0 0.0
        %4480 = vmatpush1.msra.mxu0 0.0
        %4481 = vmatprep.subr.mxu0 0.0
        %4482 = vmatpush1.msra.mxu0 0.0
        %4483 = vmatprep.subr.mxu0 0.0
        %4484 = vmatpush1.msra.mxu0 0.0
        %4485 = vmatprep.subr.mxu0 0.0
        %4486 = vmatpush1.msra.mxu0 0.0
        %4487 = vmatprep.subr.mxu0 0.0
        %4488 = vmatpush1.msra.mxu0 0.0
        %4489 = vmatprep.mubr.f32.mxu0 0.0
        %4490 = vmatmul.mubr.f32.gmra.mrb[0].mxu0 %v4423
        %v4491 = vpop.f32.mrb[0].mxu0
        %v4492 = vadd.f32 0.0, %v4491
        %v4493 = vpop.f32.mrb[0].mxu0
        %4494 = vdwg.mxu0
        %v4496 = vsel %vm1876, %v4275, 0
        %4498 = vmatprep.subr.mxu0 0.0
        %4499 = vmatpush1.msra.mxu0 %v4262
        %4500 = vmatprep.subr.mxu0 0.0
        %4501 = vmatpush1.msra.mxu0 %v4263
        %4502 = vmatprep.subr.mxu0 0.0
        %4503 = vmatpush1.msra.mxu0 0.0
        %4504 = vmatprep.subr.mxu0 0.0
        %4505 = vmatpush1.msra.mxu0 0.0
        %4506 = vmatprep.subr.mxu0 0.0
        %4507 = vmatpush1.msra.mxu0 0.0
        %4508 = vmatprep.subr.mxu0 0.0
        %4509 = vmatpush1.msra.mxu0 0.0
        %4510 = vmatprep.subr.mxu0 0.0
        %4511 = vmatpush1.msra.mxu0 0.0
        %4512 = vmatprep.subr.mxu0 0.0
        %4513 = vmatpush1.msra.mxu0 0.0
        %4514 = vmatprep.subr.mxu0 0.0
        %4515 = vmatpush1.msra.mxu0 0.0
        %4516 = vmatprep.subr.mxu0 0.0
        %4517 = vmatpush1.msra.mxu0 0.0
        %4518 = vmatprep.subr.mxu0 0.0
        %4519 = vmatpush1.msra.mxu0 0.0
        %4520 = vmatprep.subr.mxu0 0.0
        %4521 = vmatpush1.msra.mxu0 0.0
        %4522 = vmatprep.subr.mxu0 0.0
        %4523 = vmatpush1.msra.mxu0 0.0
        %4524 = vmatprep.subr.mxu0 0.0
        %4525 = vmatpush1.msra.mxu0 0.0
        %4526 = vmatprep.subr.mxu0 0.0
        %4527 = vmatpush1.msra.mxu0 0.0
        %4528 = vmatprep.subr.mxu0 0.0
        %4529 = vmatpush1.msra.mxu0 0.0
        %4530 = vmatprep.subr.mxu0 0.0
        %4531 = vmatpush1.msra.mxu0 0.0
        %4532 = vmatprep.subr.mxu0 0.0
        %4533 = vmatpush1.msra.mxu0 0.0
        %4534 = vmatprep.subr.mxu0 0.0
        %4535 = vmatpush1.msra.mxu0 0.0
        %4536 = vmatprep.subr.mxu0 0.0
        %4537 = vmatpush1.msra.mxu0 0.0
        %4538 = vmatprep.subr.mxu0 0.0
        %4539 = vmatpush1.msra.mxu0 0.0
        %4540 = vmatprep.subr.mxu0 0.0
        %4541 = vmatpush1.msra.mxu0 0.0
        %4542 = vmatprep.subr.mxu0 0.0
        %4543 = vmatpush1.msra.mxu0 0.0
        %4544 = vmatprep.subr.mxu0 0.0
        %4545 = vmatpush1.msra.mxu0 0.0
        %4546 = vmatprep.subr.mxu0 0.0
        %4547 = vmatpush1.msra.mxu0 0.0
        %4548 = vmatprep.subr.mxu0 0.0
        %4549 = vmatpush1.msra.mxu0 0.0
        %4550 = vmatprep.subr.mxu0 0.0
        %4551 = vmatpush1.msra.mxu0 0.0
        %4552 = vmatprep.subr.mxu0 0.0
        %4553 = vmatpush1.msra.mxu0 0.0
        %4554 = vmatprep.subr.mxu0 0.0
        %4555 = vmatpush1.msra.mxu0 0.0
        %4556 = vmatprep.subr.mxu0 0.0
        %4557 = vmatpush1.msra.mxu0 0.0
        %4558 = vmatprep.subr.mxu0 0.0
        %4559 = vmatpush1.msra.mxu0 0.0
        %4560 = vmatprep.subr.mxu0 0.0
        %4561 = vmatpush1.msra.mxu0 0.0
        %4562 = vmatprep.mubr.f32.mxu0 0.0
        %4563 = vmatmul.mubr.f32.gmra.mrb[0].mxu0 %v4496
        %v4564 = vpop.f32.mrb[0].mxu0
        %v4565 = vadd.f32 0.0, %v4564
        %v4566 = vpop.f32.mrb[0].mxu0
        %4567 = vdwg.mxu0
        %v4568 = vmul.f32 %v4346, %v4346
        %v4569 = vmul.f32 %v4419, %v4419
        %v4570 = vmul.f32 %v4492, %v4492
        %v4571 = vmul.f32 %v4565, %v4565
        %v4576 = vrot.slane %v4569, 7
        %vm4577 = vcmask 1041409
        %v4578 = vsel %vm4577, %v4576, %v4568
        %v4579 = vrot.slane %v4570, 6
        %vm4580 = vcmask 1042434
        %v4581 = vsel %vm4580, %v4579, %v4578
        %v4582 = vrot.slane %v4571, 5
        %vm4583 = vcmask 1043459
        %v4584 = vsel %vm4583, %v4582, %v4581
        %vm4586 = vcmask 257024
        %v4587 = vsel %vm4586, %v4584, 0.0
        %4588 = vadd.xlane.f32.xlu0 %v4587
        %v4589 = vpop.xlane.xlu0 %4588
        %v4590 = vrsqrt.pop %v4589
        %v4591 = vmul.f32 %v4589, %v4590
        %vm4592 = vcmp.eq.f32.partialorder %v4589, inf
        %v4593 = vsel %vm4592, %v4589, %v4591
        %vm4594 = vcmp.eq.f32.partialorder %v4589, 0.0
        %v4595 = vand.u32 %v4589, 2147483648
        %v4596 = vsel %vm4594, %v4595, %v4593
        %v4597 = vmax.f32 %v4596, 1e-12
        %v4599 = vrot.slane %v4597, 1
        %v4600 = vrot.slane %v4597, 2
        %v4601 = vrot.slane %v4597, 3
        %v4606 = vrcp.pop %v4597
        %v4607 = vmul.f32 %v4346, %v4606
        %v4608 = vrcp.pop %v4599
        %v4609 = vmul.f32 %v4419, %v4608
        %v4610 = vrcp.pop %v4600
        %v4611 = vmul.f32 %v4492, %v4610
        %v4612 = vrcp.pop %v4601
        %v4613 = vmul.f32 %v4565, %v4612
        %v4618 = vrot.slane %v4609, 7
        %v4619 = vsel %vm4577, %v4618, %v4607
        %v4620 = vrot.slane %v4611, 6
        %v4621 = vsel %vm4580, %v4620, %v4619
        %v4622 = vrot.slane %v4613, 5
        %v4623 = vsel %vm4583, %v4622, %v4621
        %4625 = vst.msk [vmem:[%s1177] sm:$0xf] %vm4586, %v4623
        %p4626 = scmp.eq.s32.totalorder %s41, 1
        // Predicated region
        $region173: #{tpu_custom_call.1} parent=107 // pred_check
          %p4627 = pneg %p4626
        $region174: #{tpu_custom_call.1} parent=107 // pred_check_branch
          %4629 = sbr.rel (%p4627) target = $region176
        $region175: #{tpu_custom_call.1} parent=107 // pred_region
          %v4630 = vld [vmem:[%s19] sm:$0x1]
          %v4631 = vld [vmem:[%s20] sm:$0x1]
          %v4632 = vsel %vm1272, %v4256, 0.0
          %4633 = vadd.xlane.f32.xlu0 %v4632
          %v4634 = vpop.xlane.xlu0 %4633
          %v4635 = vsel %vm1272, %v4257, 0.0
          %4636 = vadd.xlane.f32.xlu0 %v4635
          %v4637 = vpop.xlane.xlu0 %4636
          %v4638 = vsel %vm1272, %v4258, 0.0
          %4639 = vadd.xlane.f32.xlu0 %v4638
          %v4640 = vpop.xlane.xlu0 %4639
          %v4641 = vsel %vm1272, %v4259, 0.0
          %4642 = vadd.xlane.f32.xlu0 %v4641
          %v4643 = vpop.xlane.xlu0 %4642
          %v4644 = vsel %vm1272, %v4260, 0.0
          %4645 = vadd.xlane.f32.xlu0 %v4644
          %v4646 = vpop.xlane.xlu0 %4645
          %v4647 = vsel %vm1272, %v4261, 0.0
          %4648 = vadd.xlane.f32.xlu0 %v4647
          %v4649 = vpop.xlane.xlu0 %4648
          %v4650 = vsel %vm1272, %v4262, 0.0
          %4651 = vadd.xlane.f32.xlu0 %v4650
          %v4652 = vpop.xlane.xlu0 %4651
          %v4653 = vsel %vm1272, %v4263, 0.0
          %4654 = vadd.xlane.f32.xlu0 %v4653
          %v4655 = vpop.xlane.xlu0 %4654
          %v4656 = vmul.f32 %v4634, %v1297
          %v4657 = vmul.f32 %v4637, %v1297
          %v4658 = vmul.f32 %v4640, %v1297
          %v4659 = vmul.f32 %v4643, %v1297
          %v4660 = vmul.f32 %v4646, %v1297
          %v4661 = vmul.f32 %v4649, %v1297
          %v4662 = vmul.f32 %v4652, %v1297
          %v4663 = vmul.f32 %v4655, %v1297
          %v4664 = vsub.f32 %v4256, %v4656
          %v4665 = vsub.f32 %v4257, %v4657
          %v4666 = vsub.f32 %v4258, %v4658
          %v4667 = vsub.f32 %v4259, %v4659
          %v4668 = vsub.f32 %v4260, %v4660
          %v4669 = vsub.f32 %v4261, %v4661
          %v4670 = vsub.f32 %v4262, %v4662
          %v4671 = vsub.f32 %v4263, %v4663
          %v4672 = vmul.f32 %v4664, %v4664
          %v4673 = vmul.f32 %v4665, %v4665
          %v4674 = vmul.f32 %v4666, %v4666
          %v4675 = vmul.f32 %v4667, %v4667
          %v4676 = vmul.f32 %v4668, %v4668
          %v4677 = vmul.f32 %v4669, %v4669
          %v4678 = vmul.f32 %v4670, %v4670
          %v4679 = vmul.f32 %v4671, %v4671
          %v4680 = vsel %vm1272, %v4672, 0.0
          %4681 = vadd.xlane.f32.xlu0 %v4680
          %v4682 = vpop.xlane.xlu0 %4681
          %v4683 = vsel %vm1272, %v4673, 0.0
          %4684 = vadd.xlane.f32.xlu0 %v4683
          %v4685 = vpop.xlane.xlu0 %4684
          %v4686 = vsel %vm1272, %v4674, 0.0
          %4687 = vadd.xlane.f32.xlu0 %v4686
          %v4688 = vpop.xlane.xlu0 %4687
          %v4689 = vsel %vm1272, %v4675, 0.0
          %4690 = vadd.xlane.f32.xlu0 %v4689
          %v4691 = vpop.xlane.xlu0 %4690
          %v4692 = vsel %vm1272, %v4676, 0.0
          %4693 = vadd.xlane.f32.xlu0 %v4692
          %v4694 = vpop.xlane.xlu0 %4693
          %v4695 = vsel %vm1272, %v4677, 0.0
          %4696 = vadd.xlane.f32.xlu0 %v4695
          %v4697 = vpop.xlane.xlu0 %4696
          %v4698 = vsel %vm1272, %v4678, 0.0
          %4699 = vadd.xlane.f32.xlu0 %v4698
          %v4700 = vpop.xlane.xlu0 %4699
          %v4701 = vsel %vm1272, %v4679, 0.0
          %4702 = vadd.xlane.f32.xlu0 %v4701
          %v4703 = vpop.xlane.xlu0 %4702
          %v4704 = vmul.f32 %v4682, %v1297
          %v4705 = vmul.f32 %v4685, %v1297
          %v4706 = vmul.f32 %v4688, %v1297
          %v4707 = vmul.f32 %v4691, %v1297
          %v4708 = vmul.f32 %v4694, %v1297
          %v4709 = vmul.f32 %v4697, %v1297
          %v4710 = vmul.f32 %v4700, %v1297
          %v4711 = vmul.f32 %v4703, %v1297
          %v4712 = vadd.f32 %v4704, 1e-05
          %v4713 = vadd.f32 %v4705, 1e-05
          %v4714 = vadd.f32 %v4706, 1e-05
          %v4715 = vadd.f32 %v4707, 1e-05
          %v4716 = vadd.f32 %v4708, 1e-05
          %v4717 = vadd.f32 %v4709, 1e-05
          %v4718 = vadd.f32 %v4710, 1e-05
          %v4719 = vadd.f32 %v4711, 1e-05
          %v4720 = vrsqrt.pop %v4712
          %v4721 = vrsqrt.pop %v4713
          %v4722 = vrsqrt.pop %v4714
          %v4723 = vrsqrt.pop %v4715
          %v4724 = vrsqrt.pop %v4716
          %v4725 = vrsqrt.pop %v4717
          %v4726 = vrsqrt.pop %v4718
          %v4727 = vrsqrt.pop %v4719
          %v4728 = vmul.f32 %v4664, %v4720
          %v4729 = vmul.f32 %v4665, %v4721
          %v4730 = vmul.f32 %v4666, %v4722
          %v4731 = vmul.f32 %v4667, %v4723
          %v4732 = vmul.f32 %v4668, %v4724
          %v4733 = vmul.f32 %v4669, %v4725
          %v4734 = vmul.f32 %v4670, %v4726
          %v4735 = vmul.f32 %v4671, %v4727
          %v4737 = vlaneseq
          %v4738 = vshrl.u32 %v4737, 7
          %v4739 = vsub.s32 0, %v4738
          %v4740 = vrot.slane %v4630, %v4739
          %v4742 = vmul.f32 %v4728, %v4740
          %v4743 = vmul.f32 %v4729, %v4740
          %v4744 = vmul.f32 %v4730, %v4740
          %v4745 = vmul.f32 %v4731, %v4740
          %v4746 = vmul.f32 %v4732, %v4740
          %v4747 = vmul.f32 %v4733, %v4740
          %v4748 = vmul.f32 %v4734, %v4740
          %v4749 = vmul.f32 %v4735, %v4740
          %v4751 = vlaneseq
          %v4752 = vshrl.u32 %v4751, 7
          %v4753 = vsub.s32 0, %v4752
          %v4754 = vrot.slane %v4631, %v4753
          %v4756 = vadd.f32 %v4742, %v4754
          %v4757 = vadd.f32 %v4743, %v4754
          %v4758 = vadd.f32 %v4744, %v4754
          %v4759 = vadd.f32 %v4745, %v4754
          %v4760 = vadd.f32 %v4746, %v4754
          %v4761 = vadd.f32 %v4747, %v4754
          %v4762 = vadd.f32 %v4748, %v4754
          %v4763 = vadd.f32 %v4749, %v4754
          %v4764 = vld [vmem:[#allocation6] sm:$0x1]
          %v4765 = vld [vmem:[#allocation6 + $0x1] sm:$0x1]
          %v4766 = vld [vmem:[#allocation6 + $0x2] sm:$0x1]
          %v4767 = vld [vmem:[#allocation6 + $0x3] sm:$0x1]
          %v4769 = vsel %vm1876, %v4764, 0
          %4771 = vmatprep.subr.mxu0 0.0
          %4772 = vmatpush1.msra.mxu0 %v4756
          %4773 = vmatprep.subr.mxu0 0.0
          %4774 = vmatpush1.msra.mxu0 %v4757
          %4775 = vmatprep.subr.mxu0 0.0
          %4776 = vmatpush1.msra.mxu0 0.0
          %4777 = vmatprep.subr.mxu0 0.0
          %4778 = vmatpush1.msra.mxu0 0.0
          %4779 = vmatprep.subr.mxu0 0.0
          %4780 = vmatpush1.msra.mxu0 0.0
          %4781 = vmatprep.subr.mxu0 0.0
          %4782 = vmatpush1.msra.mxu0 0.0
          %4783 = vmatprep.subr.mxu0 0.0
          %4784 = vmatpush1.msra.mxu0 0.0
          %4785 = vmatprep.subr.mxu0 0.0
          %4786 = vmatpush1.msra.mxu0 0.0
          %4787 = vmatprep.subr.mxu0 0.0
          %4788 = vmatpush1.msra.mxu0 0.0
          %4789 = vmatprep.subr.mxu0 0.0
          %4790 = vmatpush1.msra.mxu0 0.0
          %4791 = vmatprep.subr.mxu0 0.0
          %4792 = vmatpush1.msra.mxu0 0.0
          %4793 = vmatprep.subr.mxu0 0.0
          %4794 = vmatpush1.msra.mxu0 0.0
          %4795 = vmatprep.subr.mxu0 0.0
          %4796 = vmatpush1.msra.mxu0 0.0
          %4797 = vmatprep.subr.mxu0 0.0
          %4798 = vmatpush1.msra.mxu0 0.0
          %4799 = vmatprep.subr.mxu0 0.0
          %4800 = vmatpush1.msra.mxu0 0.0
          %4801 = vmatprep.subr.mxu0 0.0
          %4802 = vmatpush1.msra.mxu0 0.0
          %4803 = vmatprep.subr.mxu0 0.0
          %4804 = vmatpush1.msra.mxu0 0.0
          %4805 = vmatprep.subr.mxu0 0.0
          %4806 = vmatpush1.msra.mxu0 0.0
          %4807 = vmatprep.subr.mxu0 0.0
          %4808 = vmatpush1.msra.mxu0 0.0
          %4809 = vmatprep.subr.mxu0 0.0
          %4810 = vmatpush1.msra.mxu0 0.0
          %4811 = vmatprep.subr.mxu0 0.0
          %4812 = vmatpush1.msra.mxu0 0.0
          %4813 = vmatprep.subr.mxu0 0.0
          %4814 = vmatpush1.msra.mxu0 0.0
          %4815 = vmatprep.subr.mxu0 0.0
          %4816 = vmatpush1.msra.mxu0 0.0
          %4817 = vmatprep.subr.mxu0 0.0
          %4818 = vmatpush1.msra.mxu0 0.0
          %4819 = vmatprep.subr.mxu0 0.0
          %4820 = vmatpush1.msra.mxu0 0.0
          %4821 = vmatprep.subr.mxu0 0.0
          %4822 = vmatpush1.msra.mxu0 0.0
          %4823 = vmatprep.subr.mxu0 0.0
          %4824 = vmatpush1.msra.mxu0 0.0
          %4825 = vmatprep.subr.mxu0 0.0
          %4826 = vmatpush1.msra.mxu0 0.0
          %4827 = vmatprep.subr.mxu0 0.0
          %4828 = vmatpush1.msra.mxu0 0.0
          %4829 = vmatprep.subr.mxu0 0.0
          %4830 = vmatpush1.msra.mxu0 0.0
          %4831 = vmatprep.subr.mxu0 0.0
          %4832 = vmatpush1.msra.mxu0 0.0
          %4833 = vmatprep.subr.mxu0 0.0
          %4834 = vmatpush1.msra.mxu0 0.0
          %4835 = vmatprep.mubr.f32.mxu0 0.0
          %4836 = vmatmul.mubr.f32.gmra.mrb[0].mxu0 %v4769
          %v4837 = vpop.f32.mrb[0].mxu0
          %v4838 = vadd.f32 0.0, %v4837
          %v4839 = vpop.f32.mrb[0].mxu0
          %4840 = vdwg.mxu0
          %v4842 = vsel %vm1876, %v4765, 0
          %4844 = vmatprep.subr.mxu0 0.0
          %4845 = vmatpush1.msra.mxu0 %v4758
          %4846 = vmatprep.subr.mxu0 0.0
          %4847 = vmatpush1.msra.mxu0 %v4759
          %4848 = vmatprep.subr.mxu0 0.0
          %4849 = vmatpush1.msra.mxu0 0.0
          %4850 = vmatprep.subr.mxu0 0.0
          %4851 = vmatpush1.msra.mxu0 0.0
          %4852 = vmatprep.subr.mxu0 0.0
          %4853 = vmatpush1.msra.mxu0 0.0
          %4854 = vmatprep.subr.mxu0 0.0
          %4855 = vmatpush1.msra.mxu0 0.0
          %4856 = vmatprep.subr.mxu0 0.0
          %4857 = vmatpush1.msra.mxu0 0.0
          %4858 = vmatprep.subr.mxu0 0.0
          %4859 = vmatpush1.msra.mxu0 0.0
          %4860 = vmatprep.subr.mxu0 0.0
          %4861 = vmatpush1.msra.mxu0 0.0
          %4862 = vmatprep.subr.mxu0 0.0
          %4863 = vmatpush1.msra.mxu0 0.0
          %4864 = vmatprep.subr.mxu0 0.0
          %4865 = vmatpush1.msra.mxu0 0.0
          %4866 = vmatprep.subr.mxu0 0.0
          %4867 = vmatpush1.msra.mxu0 0.0
          %4868 = vmatprep.subr.mxu0 0.0
          %4869 = vmatpush1.msra.mxu0 0.0
          %4870 = vmatprep.subr.mxu0 0.0
          %4871 = vmatpush1.msra.mxu0 0.0
          %4872 = vmatprep.subr.mxu0 0.0
          %4873 = vmatpush1.msra.mxu0 0.0
          %4874 = vmatprep.subr.mxu0 0.0
          %4875 = vmatpush1.msra.mxu0 0.0
          %4876 = vmatprep.subr.mxu0 0.0
          %4877 = vmatpush1.msra.mxu0 0.0
          %4878 = vmatprep.subr.mxu0 0.0
          %4879 = vmatpush1.msra.mxu0 0.0
          %4880 = vmatprep.subr.mxu0 0.0
          %4881 = vmatpush1.msra.mxu0 0.0
          %4882 = vmatprep.subr.mxu0 0.0
          %4883 = vmatpush1.msra.mxu0 0.0
          %4884 = vmatprep.subr.mxu0 0.0
          %4885 = vmatpush1.msra.mxu0 0.0
          %4886 = vmatprep.subr.mxu0 0.0
          %4887 = vmatpush1.msra.mxu0 0.0
          %4888 = vmatprep.subr.mxu0 0.0
          %4889 = vmatpush1.msra.mxu0 0.0
          %4890 = vmatprep.subr.mxu0 0.0
          %4891 = vmatpush1.msra.mxu0 0.0
          %4892 = vmatprep.subr.mxu0 0.0
          %4893 = vmatpush1.msra.mxu0 0.0
          %4894 = vmatprep.subr.mxu0 0.0
          %4895 = vmatpush1.msra.mxu0 0.0
          %4896 = vmatprep.subr.mxu0 0.0
          %4897 = vmatpush1.msra.mxu0 0.0
          %4898 = vmatprep.subr.mxu0 0.0
          %4899 = vmatpush1.msra.mxu0 0.0
          %4900 = vmatprep.subr.mxu0 0.0
          %4901 = vmatpush1.msra.mxu0 0.0
          %4902 = vmatprep.subr.mxu0 0.0
          %4903 = vmatpush1.msra.mxu0 0.0
          %4904 = vmatprep.subr.mxu0 0.0
          %4905 = vmatpush1.msra.mxu0 0.0
          %4906 = vmatprep.subr.mxu0 0.0
          %4907 = vmatpush1.msra.mxu0 0.0
          %4908 = vmatprep.mubr.f32.mxu0 0.0
          %4909 = vmatmul.mubr.f32.gmra.mrb[0].mxu0 %v4842
          %v4910 = vpop.f32.mrb[0].mxu0
          %v4911 = vadd.f32 0.0, %v4910
          %v4912 = vpop.f32.mrb[0].mxu0
          %4913 = vdwg.mxu0
          %v4915 = vsel %vm1876, %v4766, 0
          %4917 = vmatprep.subr.mxu0 0.0
          %4918 = vmatpush1.msra.mxu0 %v4760
          %4919 = vmatprep.subr.mxu0 0.0
          %4920 = vmatpush1.msra.mxu0 %v4761
          %4921 = vmatprep.subr.mxu0 0.0
          %4922 = vmatpush1.msra.mxu0 0.0
          %4923 = vmatprep.subr.mxu0 0.0
          %4924 = vmatpush1.msra.mxu0 0.0
          %4925 = vmatprep.subr.mxu0 0.0
          %4926 = vmatpush1.msra.mxu0 0.0
          %4927 = vmatprep.subr.mxu0 0.0
          %4928 = vmatpush1.msra.mxu0 0.0
          %4929 = vmatprep.subr.mxu0 0.0
          %4930 = vmatpush1.msra.mxu0 0.0
          %4931 = vmatprep.subr.mxu0 0.0
          %4932 = vmatpush1.msra.mxu0 0.0
          %4933 = vmatprep.subr.mxu0 0.0
          %4934 = vmatpush1.msra.mxu0 0.0
          %4935 = vmatprep.subr.mxu0 0.0
          %4936 = vmatpush1.msra.mxu0 0.0
          %4937 = vmatprep.subr.mxu0 0.0
          %4938 = vmatpush1.msra.mxu0 0.0
          %4939 = vmatprep.subr.mxu0 0.0
          %4940 = vmatpush1.msra.mxu0 0.0
          %4941 = vmatprep.subr.mxu0 0.0
          %4942 = vmatpush1.msra.mxu0 0.0
          %4943 = vmatprep.subr.mxu0 0.0
          %4944 = vmatpush1.msra.mxu0 0.0
          %4945 = vmatprep.subr.mxu0 0.0
          %4946 = vmatpush1.msra.mxu0 0.0
          %4947 = vmatprep.subr.mxu0 0.0
          %4948 = vmatpush1.msra.mxu0 0.0
          %4949 = vmatprep.subr.mxu0 0.0
          %4950 = vmatpush1.msra.mxu0 0.0
          %4951 = vmatprep.subr.mxu0 0.0
          %4952 = vmatpush1.msra.mxu0 0.0
          %4953 = vmatprep.subr.mxu0 0.0
          %4954 = vmatpush1.msra.mxu0 0.0
          %4955 = vmatprep.subr.mxu0 0.0
          %4956 = vmatpush1.msra.mxu0 0.0
          %4957 = vmatprep.subr.mxu0 0.0
          %4958 = vmatpush1.msra.mxu0 0.0
          %4959 = vmatprep.subr.mxu0 0.0
          %4960 = vmatpush1.msra.mxu0 0.0
          %4961 = vmatprep.subr.mxu0 0.0
          %4962 = vmatpush1.msra.mxu0 0.0
          %4963 = vmatprep.subr.mxu0 0.0
          %4964 = vmatpush1.msra.mxu0 0.0
          %4965 = vmatprep.subr.mxu0 0.0
          %4966 = vmatpush1.msra.mxu0 0.0
          %4967 = vmatprep.subr.mxu0 0.0
          %4968 = vmatpush1.msra.mxu0 0.0
          %4969 = vmatprep.subr.mxu0 0.0
          %4970 = vmatpush1.msra.mxu0 0.0
          %4971 = vmatprep.subr.mxu0 0.0
          %4972 = vmatpush1.msra.mxu0 0.0
          %4973 = vmatprep.subr.mxu0 0.0
          %4974 = vmatpush1.msra.mxu0 0.0
          %4975 = vmatprep.subr.mxu0 0.0
          %4976 = vmatpush1.msra.mxu0 0.0
          %4977 = vmatprep.subr.mxu0 0.0
          %4978 = vmatpush1.msra.mxu0 0.0
          %4979 = vmatprep.subr.mxu0 0.0
          %4980 = vmatpush1.msra.mxu0 0.0
          %4981 = vmatprep.mubr.f32.mxu0 0.0
          %4982 = vmatmul.mubr.f32.gmra.mrb[0].mxu0 %v4915
          %v4983 = vpop.f32.mrb[0].mxu0
          %v4984 = vadd.f32 0.0, %v4983
          %v4985 = vpop.f32.mrb[0].mxu0
          %4986 = vdwg.mxu0
          %v4988 = vsel %vm1876, %v4767, 0
          %4990 = vmatprep.subr.mxu0 0.0
          %4991 = vmatpush1.msra.mxu0 %v4762
          %4992 = vmatprep.subr.mxu0 0.0
          %4993 = vmatpush1.msra.mxu0 %v4763
          %4994 = vmatprep.subr.mxu0 0.0
          %4995 = vmatpush1.msra.mxu0 0.0
          %4996 = vmatprep.subr.mxu0 0.0
          %4997 = vmatpush1.msra.mxu0 0.0
          %4998 = vmatprep.subr.mxu0 0.0
          %4999 = vmatpush1.msra.mxu0 0.0
          %5000 = vmatprep.subr.mxu0 0.0
          %5001 = vmatpush1.msra.mxu0 0.0
          %5002 = vmatprep.subr.mxu0 0.0
          %5003 = vmatpush1.msra.mxu0 0.0
          %5004 = vmatprep.subr.mxu0 0.0
          %5005 = vmatpush1.msra.mxu0 0.0
          %5006 = vmatprep.subr.mxu0 0.0
          %5007 = vmatpush1.msra.mxu0 0.0
          %5008 = vmatprep.subr.mxu0 0.0
          %5009 = vmatpush1.msra.mxu0 0.0
          %5010 = vmatprep.subr.mxu0 0.0
          %5011 = vmatpush1.msra.mxu0 0.0
          %5012 = vmatprep.subr.mxu0 0.0
          %5013 = vmatpush1.msra.mxu0 0.0
          %5014 = vmatprep.subr.mxu0 0.0
          %5015 = vmatpush1.msra.mxu0 0.0
          %5016 = vmatprep.subr.mxu0 0.0
          %5017 = vmatpush1.msra.mxu0 0.0
          %5018 = vmatprep.subr.mxu0 0.0
          %5019 = vmatpush1.msra.mxu0 0.0
          %5020 = vmatprep.subr.mxu0 0.0
          %5021 = vmatpush1.msra.mxu0 0.0
          %5022 = vmatprep.subr.mxu0 0.0
          %5023 = vmatpush1.msra.mxu0 0.0
          %5024 = vmatprep.subr.mxu0 0.0
          %5025 = vmatpush1.msra.mxu0 0.0
          %5026 = vmatprep.subr.mxu0 0.0
          %5027 = vmatpush1.msra.mxu0 0.0
          %5028 = vmatprep.subr.mxu0 0.0
          %5029 = vmatpush1.msra.mxu0 0.0
          %5030 = vmatprep.subr.mxu0 0.0
          %5031 = vmatpush1.msra.mxu0 0.0
          %5032 = vmatprep.subr.mxu0 0.0
          %5033 = vmatpush1.msra.mxu0 0.0
          %5034 = vmatprep.subr.mxu0 0.0
          %5035 = vmatpush1.msra.mxu0 0.0
          %5036 = vmatprep.subr.mxu0 0.0
          %5037 = vmatpush1.msra.mxu0 0.0
          %5038 = vmatprep.subr.mxu0 0.0
          %5039 = vmatpush1.msra.mxu0 0.0
          %5040 = vmatprep.subr.mxu0 0.0
          %5041 = vmatpush1.msra.mxu0 0.0
          %5042 = vmatprep.subr.mxu0 0.0
          %5043 = vmatpush1.msra.mxu0 0.0
          %5044 = vmatprep.subr.mxu0 0.0
          %5045 = vmatpush1.msra.mxu0 0.0
          %5046 = vmatprep.subr.mxu0 0.0
          %5047 = vmatpush1.msra.mxu0 0.0
          %5048 = vmatprep.subr.mxu0 0.0
          %5049 = vmatpush1.msra.mxu0 0.0
          %5050 = vmatprep.subr.mxu0 0.0
          %5051 = vmatpush1.msra.mxu0 0.0
          %5052 = vmatprep.subr.mxu0 0.0
          %5053 = vmatpush1.msra.mxu0 0.0
          %5054 = vmatprep.mubr.f32.mxu0 0.0
          %5055 = vmatmul.mubr.f32.gmra.mrb[0].mxu0 %v4988
          %v5056 = vpop.f32.mrb[0].mxu0
          %v5057 = vadd.f32 0.0, %v5056
          %v5058 = vpop.f32.mrb[0].mxu0
          %5059 = vdwg.mxu0
          %v5060 = vld [vmem:[#allocation20] sm:$0xf]
          %v5061 = vld [vmem:[#allocation20 + $0x4] sm:$0xf]
          %v5062 = vld [vmem:[#allocation20 + $0x8] sm:$0xf]
          %v5063 = vld [vmem:[#allocation20 + $0xc] sm:$0xf]
          %v5064 = vpack.c.bf16 %v4838, %v4838
          %v5065 = vpack.c.bf16 %v4911, %v4911
          %v5066 = vpack.c.bf16 %v4984, %v4984
          %v5067 = vpack.c.bf16 %v5057, %v5057
          %v5072 = vunpack.c.l.b16 %v5064
          %v5073 = vunpack.c.l.b16 %v5065
          %v5074 = vunpack.c.l.b16 %v5066
          %v5075 = vunpack.c.l.b16 %v5067
          %v5076 = vrot.slane %v5073, 7
          %v5077 = vsel %vm4577, %v5076, %v5072
          %v5078 = vrot.slane %v5074, 6
          %v5079 = vsel %vm4580, %v5078, %v5077
          %v5080 = vrot.slane %v5075, 5
          %v5081 = vsel %vm4583, %v5080, %v5079
          %v5082 = vpack.c.b16 %v5081, %v5081
          %v5087 = vunpack.c.l.b16 %v5060
          %v5088 = vunpack.c.l.b16 %v5061
          %v5089 = vunpack.c.l.b16 %v5062
          %v5090 = vunpack.c.l.b16 %v5063
          %v5091 = vpack.c.b16 %v5088, %v5087
          %v5092 = vpack.c.b16 %v5090, %v5089
          %v5096 = vsel %vm1272, %v5082, 0
          %5098 = vmatprep.subr.bf16.mxu0 0
          %5099 = vmatpush1.bf16.msra.mxu0 %v5091
          %5100 = vmatprep.subr.bf16.mxu0 0
          %5101 = vmatpush1.bf16.msra.mxu0 %v5092
          %5102 = vmatprep.subr.bf16.mxu0 0
          %5103 = vmatpush1.bf16.msra.mxu0 0
          %5104 = vmatprep.subr.bf16.mxu0 0
          %5105 = vmatpush1.bf16.msra.mxu0 0
          %5106 = vmatprep.subr.bf16.mxu0 0
          %5107 = vmatpush1.bf16.msra.mxu0 0
          %5108 = vmatprep.subr.bf16.mxu0 0
          %5109 = vmatpush1.bf16.msra.mxu0 0
          %5110 = vmatprep.subr.bf16.mxu0 0
          %5111 = vmatpush1.bf16.msra.mxu0 0
          %5112 = vmatprep.subr.bf16.mxu0 0
          %5113 = vmatpush1.bf16.msra.mxu0 0
          %5114 = vmatprep.subr.bf16.mxu0 0
          %5115 = vmatpush1.bf16.msra.mxu0 0
          %5116 = vmatprep.subr.bf16.mxu0 0
          %5117 = vmatpush1.bf16.msra.mxu0 0
          %5118 = vmatprep.subr.bf16.mxu0 0
          %5119 = vmatpush1.bf16.msra.mxu0 0
          %5120 = vmatprep.subr.bf16.mxu0 0
          %5121 = vmatpush1.bf16.msra.mxu0 0
          %5122 = vmatprep.subr.bf16.mxu0 0
          %5123 = vmatpush1.bf16.msra.mxu0 0
          %5124 = vmatprep.subr.bf16.mxu0 0
          %5125 = vmatpush1.bf16.msra.mxu0 0
          %5126 = vmatprep.subr.bf16.mxu0 0
          %5127 = vmatpush1.bf16.msra.mxu0 0
          %5128 = vmatprep.subr.bf16.mxu0 0
          %5129 = vmatpush1.bf16.msra.mxu0 0
          %5130 = vmatprep.mubr.bf16.mxu0 0
          %5131 = vmatmul.mubr.bf16.gmra.mrb[0].mxu0 %v5096
          %v5132 = vpop.f32.mrb[0].mxu0
          %v5133 = vadd.f32 0.0, %v5132
          %v5134 = vpop.f32.mrb[0].mxu0
          %v5135 = vpop.f32.mrb[0].mxu0
          %v5136 = vpop.f32.mrb[0].mxu0
          %5137 = vdwg.mxu0
          %v5138 = vmul.f32 %v5133, %v5133
          %v5139 = vsel %vm4586, %v5138, 0.0
          %5140 = vadd.xlane.f32.xlu0 %v5139
          %v5141 = vpop.xlane.xlu0 %5140
          %v5142 = vrsqrt.pop %v5141
          %v5143 = vmul.f32 %v5141, %v5142
          %vm5144 = vcmp.eq.f32.partialorder %v5141, inf
          %v5145 = vsel %vm5144, %v5141, %v5143
          %vm5146 = vcmp.eq.f32.partialorder %v5141, 0.0
          %v5147 = vand.u32 %v5141, 2147483648
          %v5148 = vsel %vm5146, %v5147, %v5145
          %v5149 = vmax.f32 %v5148, 1e-12
          %v5150 = vrcp.pop %v5149
          %v5151 = vmul.f32 %v5133, %v5150
          %5152 = vst.msk [vmem:[#allocation21] sm:$0xf] %vm4586, %v5151
        $region176: #{tpu_custom_call.1} parent=107 // pred_fallthru
          _
        %s5153 = sand.u32 %s612, 1
        %s5154 = scalar_lea.sflag [#allocation23], %s5153
        %s5155 = sand.u32 %s612, 1
        %s5156 = smul.addr %s5155, 4
        %s5157 = scalar_lea.vmem [#allocation22], %s5156
        // Predicated region
        $region177: #{tpu_custom_call.1} parent=107 // pred_check
          %p5158 = pneg %p596
        $region178: #{tpu_custom_call.1} parent=107 // pred_check_branch
          %5160 = sbr.rel (%p5158) target = $region180
        $region179: #{tpu_custom_call.1} parent=107 // pred_region
          %s5162 = ssub.s32 64, 64
          %5163 = vsyncadd [#allocation5], %s5162
          %s5165 = sshll.u32 [#allocation21], 4
          %s5166 = int_to_ptr.vmem [resolvable:$true] %s5165
          %5168 = dma.vmem_to_hbm [thread:$0]  %s5166, 64, %s22, [#allocation5]
        $region180: #{tpu_custom_call.1} parent=107 // pred_fallthru
          _
        // Predicated region
        $region181: #{tpu_custom_call.1} parent=107 // pred_check
          %p5169 = pneg %p622
        $region182: #{tpu_custom_call.1} parent=107 // pred_check_branch
          %5171 = sbr.rel (%p5169) target = $region184
        $region183: #{tpu_custom_call.1} parent=107 // pred_region
          %s5173 = ssub.s32 64, 64
          %5174 = vsyncadd %s5154, %s5173
          %s5175 = smul.addr %s41, 64
          %s5176 = scalar_lea.hbm %s23, %s5175
          %s5178 = sshll.u32 %s5157, 4
          %s5179 = int_to_ptr.vmem [resolvable:$true] %s5178
          %5181 = dma.vmem_to_hbm [thread:$0]  %s5179, 64, %s5176, %s5154
        $region184: #{tpu_custom_call.1} parent=107 // pred_fallthru
          _
        // Predicated region
        $region185: #{tpu_custom_call.1} parent=107 // pred_check
          %p5182 = pneg %p596
        $region186: #{tpu_custom_call.1} parent=107 // pred_check_branch
          %5184 = sbr.rel (%p5182) target = $region188
        $region187: #{tpu_custom_call.1} parent=107 // pred_region
          %5185 = dma.done [#allocation5], 64
        $region188: #{tpu_custom_call.1} parent=107 // pred_fallthru
          _
      $region108: #{tpu_custom_call.1} parent=5 // pred_fallthru
        _
      %p5186 = scmp.le.s32.totalorder 2, %s36
      // Predicated region
      $region189: #{tpu_custom_call.1} parent=5 // pred_check
        %p5187 = pneg %p5186
      $region190: #{tpu_custom_call.1} parent=5 // pred_check_branch
        %5189 = sbr.rel (%p5187) target = $region192
      $region191: #{tpu_custom_call.1} parent=5 // pred_region
        %s5190 = ssub.s32 %s36, 2
        // Predicated region
        $region193: #{tpu_custom_call.1} parent=191 // pred_check
          %p5191 = pneg %p628
        $region194: #{tpu_custom_call.1} parent=191 // pred_check_branch
          %5193 = sbr.rel (%p5191) target = $region196
        $region195: #{tpu_custom_call.1} parent=191 // pred_region
          %s5194 = sand.u32 %s613, 1
          %s5195 = scalar_lea.sflag [#allocation23], %s5194
          %s5196 = sand.u32 %s613, 1
          %s5197 = smul.addr %s5196, 4
          %s5198 = scalar_lea.vmem [#allocation22], %s5197
          %5199 = dma.done %s5195, 64
        $region196: #{tpu_custom_call.1} parent=191 // pred_fallthru
          _
      $region192: #{tpu_custom_call.1} parent=5 // pred_fallthru
        _
    $region6: #{tpu_custom_call.1} parent=1 // loop_footer
      %s40 = sadd.s32 1, %s36
    $region7: #{tpu_custom_call.1} parent=1 // loop_footer_branch
      %35 = sbr.rel target = $region3
    $region8: #{tpu_custom_call.1} parent=1 // loop_exit
      _
    %5200 = vsyncpa [#allocation4], 1
    %s5201 = scalar_lea.sflag [#allocation4], 1
    %5202 = vsyncpa %s5201, 1
    %5203 = vsyncpa [#allocation7], 1
    %5204 = vsyncpa [#allocation5], 1
    %s5205 = scalar_lea.sflag [#allocation5], 1
    %5206 = vsyncpa %s5205, 1
    %5207 = vsyncpa [#allocation23], 1
    %s5208 = scalar_lea.sflag [#allocation23], 1
    %5209 = vsyncpa %s5208, 1

</llo_original>
